<compile_context>
chip_gen: v5e
topology: v5e:2x2
jax: 0.10.0
libtpu: 0.0.40
codegen_flags: <defaults>
</compile_context>

<pallas_src>
import functools

import jax
import jax.numpy as jnp
from jax.experimental import pallas as pl
from jax.experimental.pallas import tpu as pltpu


def _round_up(x, m):
    return (x + m - 1) // m * m


# ------------------------------ fused kernel ------------------------------- #
def _set_conv_kernel(
    # set inputs (flattened batch*set rows), masks, per-batch-row norms
    sx_ref, sm_ref, sn_ref,
    px_ref, pm_ref, pn_ref,
    jx_ref, jm_ref, jn_ref,
    # branch MLP weights, (in, out) layout
    sW1_ref, sb1_ref, sW2_ref, sb2_ref,
    pW1_ref, pb1_ref, pW2_ref, pb2_ref,
    jW1_ref, jb1_ref, jW2_ref, jb2_ref,
    # output MLP: oW1 split per branch, oW2 passed as a (1, H) row
    oW1s_ref, oW1p_ref, oW1j_ref, ob1_ref, oW2r_ref, ob2_ref,
    out_ref,
):
    def branch(x_ref, m_ref, n_ref, w1_ref, b1_ref, w2_ref, b2_ref):
        x = x_ref[...]                      # (TB*N, F)
        m = m_ref[...]                      # (TB*N, 1)
        norm = n_ref[...]                   # (TB, 1), already clamped >= 1
        tb = norm.shape[0]
        n = x.shape[0] // tb
        h = jnp.dot(x, w1_ref[...], preferred_element_type=jnp.float32) + b1_ref[...]
        h = jnp.maximum(h, 0.0)
        h = jnp.dot(h, w2_ref[...], preferred_element_type=jnp.float32) + b2_ref[...]
        h = jnp.maximum(h, 0.0)
        h = h * m                                                   # zero padded members
        hsum = jnp.sum(h.reshape(tb, n, h.shape[-1]), axis=1)       # (TB, H)
        return hsum * pl.reciprocal(norm, approx=True)              # (TB, H)

    hs = branch(sx_ref, sm_ref, sn_ref, sW1_ref, sb1_ref, sW2_ref, sb2_ref)
    hp = branch(px_ref, pm_ref, pn_ref, pW1_ref, pb1_ref, pW2_ref, pb2_ref)
    hj = branch(jx_ref, jm_ref, jn_ref, jW1_ref, jb1_ref, jW2_ref, jb2_ref)

    # hid = relu(concat(hs, hp, hj) @ oW1 + ob1) == sum of per-branch matmuls.
    h = (jnp.dot(hs, oW1s_ref[...], preferred_element_type=jnp.float32)
         + jnp.dot(hp, oW1p_ref[...], preferred_element_type=jnp.float32)
         + jnp.dot(hj, oW1j_ref[...], preferred_element_type=jnp.float32)
         + ob1_ref[...])
    h = jnp.maximum(h, 0.0)
    # Final H -> 1 projection as a lane reduction (frees the MXU).
    o = jnp.sum(h * oW2r_ref[...], axis=-1, keepdims=True) + ob2_ref[...]    # (TB, 1)
    o = jax.nn.sigmoid(o)
    # Lane-dense, unmasked store: broadcast across the 128-lane output slab.
    out_ref[...] = jnp.broadcast_to(o, out_ref.shape)


# ------------------------------ host wrapper ------------------------------- #
def _prep_branch(x, mask, tb):
    """Pad batch to a multiple of tb, set dim to a multiple of 8, flatten rows."""
    B, N, _ = x.shape
    Np = _round_up(N, 8)
    Bp = _round_up(B, tb)
    norm = jnp.maximum(jnp.sum(mask, axis=1), 1.0)                  # (B, 1)
    x = jnp.pad(x, ((0, Bp - B), (0, Np - N), (0, 0)))
    mask = jnp.pad(mask, ((0, Bp - B), (0, Np - N), (0, 0)))
    norm = jnp.pad(norm, ((0, Bp - B), (0, 0)), constant_values=1.0)
    return x.reshape(Bp * Np, -1), mask.reshape(Bp * Np, 1), norm, Np


@functools.partial(jax.jit, static_argnames=("tb",))
def set_conv_forward(params, samples, predicates, joins,
                     sample_mask, predicate_mask, join_mask, *, tb=256):
    B = samples.shape[0]
    H = params["sW1"].shape[1]

    tb = _round_up(min(tb, _round_up(B, 8)), 8)     # multiple of 8, <= padded B
    Bp = _round_up(B, tb)
    grid = (Bp // tb,)

    sx, sm, sn, Ns = _prep_branch(samples, sample_mask, tb)
    px, pm, pn, Np = _prep_branch(predicates, predicate_mask, tb)
    jx, jm, jn, Nj = _prep_branch(joins, join_mask, tb)

    oW1s = params["oW1"][:H]
    oW1p = params["oW1"][H:2 * H]
    oW1j = params["oW1"][2 * H:]
    oW2r = params["oW2"].reshape(1, H)

    def tiled(nrows, ncols):
        return pl.BlockSpec((nrows, ncols), lambda i: (i, 0))

    def full(a):
        return pl.BlockSpec(a.shape, lambda i: (0, 0))

    out = pl.pallas_call(
        _set_conv_kernel,
        out_shape=jax.ShapeDtypeStruct((Bp, 128), jnp.float32),
        grid=grid,
        in_specs=[
            tiled(tb * Ns, sx.shape[1]), tiled(tb * Ns, 1), tiled(tb, 1),
            tiled(tb * Np, px.shape[1]), tiled(tb * Np, 1), tiled(tb, 1),
            tiled(tb * Nj, jx.shape[1]), tiled(tb * Nj, 1), tiled(tb, 1),
            full(params["sW1"]), full(params["sb1"]),
            full(params["sW2"]), full(params["sb2"]),
            full(params["pW1"]), full(params["pb1"]),
            full(params["pW2"]), full(params["pb2"]),
            full(params["jW1"]), full(params["jb1"]),
            full(params["jW2"]), full(params["jb2"]),
            full(oW1s), full(oW1p), full(oW1j), full(params["ob1"]),
            full(oW2r), full(params["ob2"]),
        ],
        out_specs=pl.BlockSpec((tb, 128), lambda i: (i, 0)),
        compiler_params=pltpu.CompilerParams(dimension_semantics=("parallel",)),
    )(
        sx, sm, sn, px, pm, pn, jx, jm, jn,
        params["sW1"], params["sb1"], params["sW2"], params["sb2"],
        params["pW1"], params["pb1"], params["pW2"], params["pb2"],
        params["jW1"], params["jb1"], params["jW2"], params["jb2"],
        oW1s, oW1p, oW1j, params["ob1"], oW2r, params["ob2"],
    )
    return out[:B, :1]


# ------------------------------ pure-JAX ref ------------------------------- #
def _ref_branch(x, mask, w1, b1, w2, b2):
    h = jax.nn.relu(x @ w1 + b1)
    h = jax.nn.relu(h @ w2 + b2)
    h = h * mask
    return jnp.sum(h, axis=1) / jnp.sum(mask, axis=1)


def _ref_forward(params, samples, predicates, joins, sm, pm, jm):
    hs = _ref_branch(samples, sm, params["sW1"], params["sb1"], params["sW2"], params["sb2"])
    hp = _ref_branch(predicates, pm, params["pW1"], params["pb1"], params["pW2"], params["pb2"])
    hj = _ref_branch(joins, jm, params["jW1"], params["jb1"], params["jW2"], params["jb2"])
    hid = jnp.concatenate([hs, hp, hj], axis=1)
    hid = jax.nn.relu(hid @ params["oW1"] + params["ob1"])
    return jax.nn.sigmoid(hid @ params["oW2"] + params["ob2"])


# ------------------------------ param init --------------------------------- #
def init_params(key, sample_feats, predicate_feats, join_feats, hid_units):
    """Deterministic init mimicking nn.Linear's U(-1/sqrt(fan_in), 1/sqrt(fan_in))."""
    def linear(k, fan_in, fan_out):
        kw, kb = jax.random.split(k)
        bound = 1.0 / jnp.sqrt(fan_in)
        w = jax.random.uniform(kw, (fan_in, fan_out), jnp.float32, -bound, bound)
        b = jax.random.uniform(kb, (1, fan_out), jnp.float32, -bound, bound)
        return w, b

    ks = jax.random.split(key, 8)
    p = {}
    p["sW1"], p["sb1"] = linear(ks[0], sample_feats, hid_units)
    p["sW2"], p["sb2"] = linear(ks[1], hid_units, hid_units)
    p["pW1"], p["pb1"] = linear(ks[2], predicate_feats, hid_units)
    p["pW2"], p["pb2"] = linear(ks[3], hid_units, hid_units)
    p["jW1"], p["jb1"] = linear(ks[4], join_feats, hid_units)
    p["jW2"], p["jb2"] = linear(ks[5], hid_units, hid_units)
    p["oW1"], p["ob1"] = linear(ks[6], hid_units * 3, hid_units)
    p["oW2"], p["ob2"] = linear(ks[7], hid_units, 1)
    return p


# --------------------------------- main ------------------------------------ #
if __name__ == "__main__":
    B = 64
    N_SAMPLE, N_PRED, N_JOIN = 8, 16, 8
    SAMPLE_FEATS, PRED_FEATS, JOIN_FEATS = 16, 12, 8
    HID = 32
    TB = 32          # 2 grid steps at B=64 -> both v7x TensorCores get work

    key = jax.random.PRNGKey(0)
    kp, k1, k2, k3, km1, km2, km3 = jax.random.split(key, 7)

    params = init_params(kp, SAMPLE_FEATS, PRED_FEATS, JOIN_FEATS, HID)

    samples = jax.random.normal(k1, (B, N_SAMPLE, SAMPLE_FEATS), jnp.float32)
    predicates = jax.random.normal(k2, (B, N_PRED, PRED_FEATS), jnp.float32)
    joins = jax.random.normal(k3, (B, N_JOIN, JOIN_FEATS), jnp.float32)

    def make_mask(k, n):
        # valid lengths in [1, n]; mask 1.0 for valid set members, 0.0 for padding
        lens = jax.random.randint(k, (B,), 1, n + 1)
        idx = jnp.arange(n)[None, :]
        return (idx < lens[:, None]).astype(jnp.float32)[:, :, None]   # (B, N, 1)

    sample_mask = make_mask(km1, N_SAMPLE)
    predicate_mask = make_mask(km2, N_PRED)
    join_mask = make_mask(km3, N_JOIN)

    out = set_conv_forward(params, samples, predicates, joins,
                           sample_mask, predicate_mask, join_mask, tb=TB)
    out = jax.block_until_ready(out)

    ref = _ref_forward(params, samples, predicates, joins,
                       sample_mask, predicate_mask, join_mask)
    assert out.shape == (B, 1), out.shape
    # approx reciprocal (EUP) in the kernel -> relaxed tolerance vs f32 reference
    assert jnp.allclose(out, ref, atol=2e-3, rtol=2e-3), (
        float(jnp.max(jnp.abs(out - ref))))

    print("KERNEL_OK")
</pallas_src>

<mosaic_0001>
module attributes {stable_mosaic.version = 11 : i64} {
  func.func @_set_conv_kernel(%arg0: i32, %arg1: memref<256x16xf32, #tpu.memory_space<vmem>>, %arg2: memref<256x1xf32, #tpu.memory_space<vmem>>, %arg3: memref<32x1xf32, #tpu.memory_space<vmem>>, %arg4: memref<512x12xf32, #tpu.memory_space<vmem>>, %arg5: memref<512x1xf32, #tpu.memory_space<vmem>>, %arg6: memref<32x1xf32, #tpu.memory_space<vmem>>, %arg7: memref<256x8xf32, #tpu.memory_space<vmem>>, %arg8: memref<256x1xf32, #tpu.memory_space<vmem>>, %arg9: memref<32x1xf32, #tpu.memory_space<vmem>>, %arg10: memref<16x32xf32, #tpu.memory_space<vmem>>, %arg11: memref<1x32xf32, #tpu.memory_space<vmem>>, %arg12: memref<32x32xf32, #tpu.memory_space<vmem>>, %arg13: memref<1x32xf32, #tpu.memory_space<vmem>>, %arg14: memref<12x32xf32, #tpu.memory_space<vmem>>, %arg15: memref<1x32xf32, #tpu.memory_space<vmem>>, %arg16: memref<32x32xf32, #tpu.memory_space<vmem>>, %arg17: memref<1x32xf32, #tpu.memory_space<vmem>>, %arg18: memref<8x32xf32, #tpu.memory_space<vmem>>, %arg19: memref<1x32xf32, #tpu.memory_space<vmem>>, %arg20: memref<32x32xf32, #tpu.memory_space<vmem>>, %arg21: memref<1x32xf32, #tpu.memory_space<vmem>>, %arg22: memref<32x32xf32, #tpu.memory_space<vmem>>, %arg23: memref<32x32xf32, #tpu.memory_space<vmem>>, %arg24: memref<32x32xf32, #tpu.memory_space<vmem>>, %arg25: memref<1x32xf32, #tpu.memory_space<vmem>>, %arg26: memref<1x32xf32, #tpu.memory_space<vmem>>, %arg27: memref<1x1xf32, #tpu.memory_space<vmem>>, %arg28: memref<32x128xf32, #tpu.memory_space<vmem>>) attributes {dimension_semantics = [#tpu.dimension_semantics<parallel>], iteration_bounds = array<i64: 2>, scalar_prefetch = 0 : i64, scratch_operands = 0 : i64, tpu.core_type = #tpu.core_type<tc>, window_params = [{transform_indices = @transform_0, window_bounds = array<i64: 256, 16>}, {transform_indices = @transform_1, window_bounds = array<i64: 256, 1>}, {transform_indices = @transform_2, window_bounds = array<i64: 32, 1>}, {transform_indices = @transform_3, window_bounds = array<i64: 512, 12>}, {transform_indices = @transform_4, window_bounds = array<i64: 512, 1>}, {transform_indices = @transform_5, window_bounds = array<i64: 32, 1>}, {transform_indices = @transform_6, window_bounds = array<i64: 256, 8>}, {transform_indices = @transform_7, window_bounds = array<i64: 256, 1>}, {transform_indices = @transform_8, window_bounds = array<i64: 32, 1>}, {pipeline_mode = #tpu.pipeline_mode<synchronous>, transform_indices = @transform_9, window_bounds = array<i64: 16, 32>}, {pipeline_mode = #tpu.pipeline_mode<synchronous>, transform_indices = @transform_10, window_bounds = array<i64: 1, 32>}, {pipeline_mode = #tpu.pipeline_mode<synchronous>, transform_indices = @transform_11, window_bounds = array<i64: 32, 32>}, {pipeline_mode = #tpu.pipeline_mode<synchronous>, transform_indices = @transform_12, window_bounds = array<i64: 1, 32>}, {pipeline_mode = #tpu.pipeline_mode<synchronous>, transform_indices = @transform_13, window_bounds = array<i64: 12, 32>}, {pipeline_mode = #tpu.pipeline_mode<synchronous>, transform_indices = @transform_14, window_bounds = array<i64: 1, 32>}, {pipeline_mode = #tpu.pipeline_mode<synchronous>, transform_indices = @transform_15, window_bounds = array<i64: 32, 32>}, {pipeline_mode = #tpu.pipeline_mode<synchronous>, transform_indices = @transform_16, window_bounds = array<i64: 1, 32>}, {pipeline_mode = #tpu.pipeline_mode<synchronous>, transform_indices = @transform_17, window_bounds = array<i64: 8, 32>}, {pipeline_mode = #tpu.pipeline_mode<synchronous>, transform_indices = @transform_18, window_bounds = array<i64: 1, 32>}, {pipeline_mode = #tpu.pipeline_mode<synchronous>, transform_indices = @transform_19, window_bounds = array<i64: 32, 32>}, {pipeline_mode = #tpu.pipeline_mode<synchronous>, transform_indices = @transform_20, window_bounds = array<i64: 1, 32>}, {pipeline_mode = #tpu.pipeline_mode<synchronous>, transform_indices = @transform_21, window_bounds = array<i64: 32, 32>}, {pipeline_mode = #tpu.pipeline_mode<synchronous>, transform_indices = @transform_22, window_bounds = array<i64: 32, 32>}, {pipeline_mode = #tpu.pipeline_mode<synchronous>, transform_indices = @transform_23, window_bounds = array<i64: 32, 32>}, {pipeline_mode = #tpu.pipeline_mode<synchronous>, transform_indices = @transform_24, window_bounds = array<i64: 1, 32>}, {pipeline_mode = #tpu.pipeline_mode<synchronous>, transform_indices = @transform_25, window_bounds = array<i64: 1, 32>}, {pipeline_mode = #tpu.pipeline_mode<synchronous>, transform_indices = @transform_26, window_bounds = array<i64: 1, 1>}, {transform_indices = @transform_27, window_bounds = array<i64: 32, 128>}]} {
    %c0 = arith.constant 0 : index
    %c0_0 = arith.constant 0 : index
    %0 = vector.load %arg1[%c0, %c0_0] : memref<256x16xf32, #tpu.memory_space<vmem>>, vector<256x16xf32>
    %c0_1 = arith.constant 0 : index
    %c0_2 = arith.constant 0 : index
    %1 = vector.load %arg2[%c0_1, %c0_2] : memref<256x1xf32, #tpu.memory_space<vmem>>, vector<256x1xf32>
    %c0_3 = arith.constant 0 : index
    %c0_4 = arith.constant 0 : index
    %2 = vector.load %arg3[%c0_3, %c0_4] : memref<32x1xf32, #tpu.memory_space<vmem>>, vector<32x1xf32>
    %c0_5 = arith.constant 0 : index
    %c0_6 = arith.constant 0 : index
    %3 = vector.load %arg10[%c0_5, %c0_6] : memref<16x32xf32, #tpu.memory_space<vmem>>, vector<16x32xf32>
    %cst = arith.constant dense<0.000000e+00> : vector<256x32xf32>
    %4 = tpu.matmul %0, %3, %cst {dimension_numbers = #tpu.dot_dimension_numbers<[1], [0], [0], [1], [0, 0, 1, 1], [], []>} : vector<256x16xf32>, vector<16x32xf32>, vector<256x32xf32> -> vector<256x32xf32>
    %c0_7 = arith.constant 0 : index
    %c0_8 = arith.constant 0 : index
    %5 = vector.load %arg11[%c0_7, %c0_8] : memref<1x32xf32, #tpu.memory_space<vmem>>, vector<1x32xf32>
    %6 = vector.broadcast %5 : vector<1x32xf32> to vector<256x32xf32>
    %7 = arith.addf %4, %6 : vector<256x32xf32>
    %cst_9 = arith.constant 0.000000e+00 : f32
    %8 = vector.broadcast %cst_9 : f32 to vector<256x32xf32>
    %9 = arith.maximumf %7, %8 : vector<256x32xf32>
    %c0_10 = arith.constant 0 : index
    %c0_11 = arith.constant 0 : index
    %10 = vector.load %arg12[%c0_10, %c0_11] : memref<32x32xf32, #tpu.memory_space<vmem>>, vector<32x32xf32>
    %cst_12 = arith.constant dense<0.000000e+00> : vector<256x32xf32>
    %11 = tpu.matmul %9, %10, %cst_12 {dimension_numbers = #tpu.dot_dimension_numbers<[1], [0], [0], [1], [0, 0, 1, 1], [], []>} : vector<256x32xf32>, vector<32x32xf32>, vector<256x32xf32> -> vector<256x32xf32>
    %c0_13 = arith.constant 0 : index
    %c0_14 = arith.constant 0 : index
    %12 = vector.load %arg13[%c0_13, %c0_14] : memref<1x32xf32, #tpu.memory_space<vmem>>, vector<1x32xf32>
    %13 = vector.broadcast %12 : vector<1x32xf32> to vector<256x32xf32>
    %14 = arith.addf %11, %13 : vector<256x32xf32>
    %cst_15 = arith.constant 0.000000e+00 : f32
    %15 = vector.broadcast %cst_15 : f32 to vector<256x32xf32>
    %16 = arith.maximumf %14, %15 : vector<256x32xf32>
    %17 = vector.broadcast %1 : vector<256x1xf32> to vector<256x32xf32>
    %18 = arith.mulf %16, %17 : vector<256x32xf32>
    %19 = vector.shape_cast %18 : vector<256x32xf32> to vector<32x8x32xf32>
    %cst_16 = arith.constant dense<0.000000e+00> : vector<32x32xf32>
    %20 = vector.multi_reduction <add>, %19, %cst_16 [1] : vector<32x8x32xf32> to vector<32x32xf32>
    %21 = tpu.reciprocal %2 {approx = true} : vector<32x1xf32> -> vector<32x1xf32>
    %22 = vector.broadcast %21 : vector<32x1xf32> to vector<32x32xf32>
    %23 = arith.mulf %20, %22 : vector<32x32xf32>
    %c0_17 = arith.constant 0 : index
    %c0_18 = arith.constant 0 : index
    %24 = vector.load %arg4[%c0_17, %c0_18] : memref<512x12xf32, #tpu.memory_space<vmem>>, vector<512x12xf32>
    %c0_19 = arith.constant 0 : index
    %c0_20 = arith.constant 0 : index
    %25 = vector.load %arg5[%c0_19, %c0_20] : memref<512x1xf32, #tpu.memory_space<vmem>>, vector<512x1xf32>
    %c0_21 = arith.constant 0 : index
    %c0_22 = arith.constant 0 : index
    %26 = vector.load %arg6[%c0_21, %c0_22] : memref<32x1xf32, #tpu.memory_space<vmem>>, vector<32x1xf32>
    %c0_23 = arith.constant 0 : index
    %c0_24 = arith.constant 0 : index
    %27 = vector.load %arg14[%c0_23, %c0_24] : memref<12x32xf32, #tpu.memory_space<vmem>>, vector<12x32xf32>
    %cst_25 = arith.constant dense<0.000000e+00> : vector<512x32xf32>
    %28 = tpu.matmul %24, %27, %cst_25 {dimension_numbers = #tpu.dot_dimension_numbers<[1], [0], [0], [1], [0, 0, 1, 1], [], []>} : vector<512x12xf32>, vector<12x32xf32>, vector<512x32xf32> -> vector<512x32xf32>
    %c0_26 = arith.constant 0 : index
    %c0_27 = arith.constant 0 : index
    %29 = vector.load %arg15[%c0_26, %c0_27] : memref<1x32xf32, #tpu.memory_space<vmem>>, vector<1x32xf32>
    %30 = vector.broadcast %29 : vector<1x32xf32> to vector<512x32xf32>
    %31 = arith.addf %28, %30 : vector<512x32xf32>
    %cst_28 = arith.constant 0.000000e+00 : f32
    %32 = vector.broadcast %cst_28 : f32 to vector<512x32xf32>
    %33 = arith.maximumf %31, %32 : vector<512x32xf32>
    %c0_29 = arith.constant 0 : index
    %c0_30 = arith.constant 0 : index
    %34 = vector.load %arg16[%c0_29, %c0_30] : memref<32x32xf32, #tpu.memory_space<vmem>>, vector<32x32xf32>
    %cst_31 = arith.constant dense<0.000000e+00> : vector<512x32xf32>
    %35 = tpu.matmul %33, %34, %cst_31 {dimension_numbers = #tpu.dot_dimension_numbers<[1], [0], [0], [1], [0, 0, 1, 1], [], []>} : vector<512x32xf32>, vector<32x32xf32>, vector<512x32xf32> -> vector<512x32xf32>
    %c0_32 = arith.constant 0 : index
    %c0_33 = arith.constant 0 : index
    %36 = vector.load %arg17[%c0_32, %c0_33] : memref<1x32xf32, #tpu.memory_space<vmem>>, vector<1x32xf32>
    %37 = vector.broadcast %36 : vector<1x32xf32> to vector<512x32xf32>
    %38 = arith.addf %35, %37 : vector<512x32xf32>
    %cst_34 = arith.constant 0.000000e+00 : f32
    %39 = vector.broadcast %cst_34 : f32 to vector<512x32xf32>
    %40 = arith.maximumf %38, %39 : vector<512x32xf32>
    %41 = vector.broadcast %25 : vector<512x1xf32> to vector<512x32xf32>
    %42 = arith.mulf %40, %41 : vector<512x32xf32>
    %43 = vector.shape_cast %42 : vector<512x32xf32> to vector<32x16x32xf32>
    %cst_35 = arith.constant dense<0.000000e+00> : vector<32x32xf32>
    %44 = vector.multi_reduction <add>, %43, %cst_35 [1] : vector<32x16x32xf32> to vector<32x32xf32>
    %45 = tpu.reciprocal %26 {approx = true} : vector<32x1xf32> -> vector<32x1xf32>
    %46 = vector.broadcast %45 : vector<32x1xf32> to vector<32x32xf32>
    %47 = arith.mulf %44, %46 : vector<32x32xf32>
    %c0_36 = arith.constant 0 : index
    %c0_37 = arith.constant 0 : index
    %48 = vector.load %arg7[%c0_36, %c0_37] : memref<256x8xf32, #tpu.memory_space<vmem>>, vector<256x8xf32>
    %c0_38 = arith.constant 0 : index
    %c0_39 = arith.constant 0 : index
    %49 = vector.load %arg8[%c0_38, %c0_39] : memref<256x1xf32, #tpu.memory_space<vmem>>, vector<256x1xf32>
    %c0_40 = arith.constant 0 : index
    %c0_41 = arith.constant 0 : index
    %50 = vector.load %arg9[%c0_40, %c0_41] : memref<32x1xf32, #tpu.memory_space<vmem>>, vector<32x1xf32>
    %c0_42 = arith.constant 0 : index
    %c0_43 = arith.constant 0 : index
    %51 = vector.load %arg18[%c0_42, %c0_43] : memref<8x32xf32, #tpu.memory_space<vmem>>, vector<8x32xf32>
    %cst_44 = arith.constant dense<0.000000e+00> : vector<256x32xf32>
    %52 = tpu.matmul %48, %51, %cst_44 {dimension_numbers = #tpu.dot_dimension_numbers<[1], [0], [0], [1], [0, 0, 1, 1], [], []>} : vector<256x8xf32>, vector<8x32xf32>, vector<256x32xf32> -> vector<256x32xf32>
    %c0_45 = arith.constant 0 : index
    %c0_46 = arith.constant 0 : index
    %53 = vector.load %arg19[%c0_45, %c0_46] : memref<1x32xf32, #tpu.memory_space<vmem>>, vector<1x32xf32>
    %54 = vector.broadcast %53 : vector<1x32xf32> to vector<256x32xf32>
    %55 = arith.addf %52, %54 : vector<256x32xf32>
    %cst_47 = arith.constant 0.000000e+00 : f32
    %56 = vector.broadcast %cst_47 : f32 to vector<256x32xf32>
    %57 = arith.maximumf %55, %56 : vector<256x32xf32>
    %c0_48 = arith.constant 0 : index
    %c0_49 = arith.constant 0 : index
    %58 = vector.load %arg20[%c0_48, %c0_49] : memref<32x32xf32, #tpu.memory_space<vmem>>, vector<32x32xf32>
    %cst_50 = arith.constant dense<0.000000e+00> : vector<256x32xf32>
    %59 = tpu.matmul %57, %58, %cst_50 {dimension_numbers = #tpu.dot_dimension_numbers<[1], [0], [0], [1], [0, 0, 1, 1], [], []>} : vector<256x32xf32>, vector<32x32xf32>, vector<256x32xf32> -> vector<256x32xf32>
    %c0_51 = arith.constant 0 : index
    %c0_52 = arith.constant 0 : index
    %60 = vector.load %arg21[%c0_51, %c0_52] : memref<1x32xf32, #tpu.memory_space<vmem>>, vector<1x32xf32>
    %61 = vector.broadcast %60 : vector<1x32xf32> to vector<256x32xf32>
    %62 = arith.addf %59, %61 : vector<256x32xf32>
    %cst_53 = arith.constant 0.000000e+00 : f32
    %63 = vector.broadcast %cst_53 : f32 to vector<256x32xf32>
    %64 = arith.maximumf %62, %63 : vector<256x32xf32>
    %65 = vector.broadcast %49 : vector<256x1xf32> to vector<256x32xf32>
    %66 = arith.mulf %64, %65 : vector<256x32xf32>
    %67 = vector.shape_cast %66 : vector<256x32xf32> to vector<32x8x32xf32>
    %cst_54 = arith.constant dense<0.000000e+00> : vector<32x32xf32>
    %68 = vector.multi_reduction <add>, %67, %cst_54 [1] : vector<32x8x32xf32> to vector<32x32xf32>
    %69 = tpu.reciprocal %50 {approx = true} : vector<32x1xf32> -> vector<32x1xf32>
    %70 = vector.broadcast %69 : vector<32x1xf32> to vector<32x32xf32>
    %71 = arith.mulf %68, %70 : vector<32x32xf32>
    %c0_55 = arith.constant 0 : index
    %c0_56 = arith.constant 0 : index
    %72 = vector.load %arg22[%c0_55, %c0_56] : memref<32x32xf32, #tpu.memory_space<vmem>>, vector<32x32xf32>
    %cst_57 = arith.constant dense<0.000000e+00> : vector<32x32xf32>
    %73 = tpu.matmul %23, %72, %cst_57 {dimension_numbers = #tpu.dot_dimension_numbers<[1], [0], [0], [1], [0, 0, 1, 1], [], []>} : vector<32x32xf32>, vector<32x32xf32>, vector<32x32xf32> -> vector<32x32xf32>
    %c0_58 = arith.constant 0 : index
    %c0_59 = arith.constant 0 : index
    %74 = vector.load %arg23[%c0_58, %c0_59] : memref<32x32xf32, #tpu.memory_space<vmem>>, vector<32x32xf32>
    %cst_60 = arith.constant dense<0.000000e+00> : vector<32x32xf32>
    %75 = tpu.matmul %47, %74, %cst_60 {dimension_numbers = #tpu.dot_dimension_numbers<[1], [0], [0], [1], [0, 0, 1, 1], [], []>} : vector<32x32xf32>, vector<32x32xf32>, vector<32x32xf32> -> vector<32x32xf32>
    %76 = arith.addf %73, %75 : vector<32x32xf32>
    %c0_61 = arith.constant 0 : index
    %c0_62 = arith.constant 0 : index
    %77 = vector.load %arg24[%c0_61, %c0_62] : memref<32x32xf32, #tpu.memory_space<vmem>>, vector<32x32xf32>
    %cst_63 = arith.constant dense<0.000000e+00> : vector<32x32xf32>
    %78 = tpu.matmul %71, %77, %cst_63 {dimension_numbers = #tpu.dot_dimension_numbers<[1], [0], [0], [1], [0, 0, 1, 1], [], []>} : vector<32x32xf32>, vector<32x32xf32>, vector<32x32xf32> -> vector<32x32xf32>
    %79 = arith.addf %76, %78 : vector<32x32xf32>
    %c0_64 = arith.constant 0 : index
    %c0_65 = arith.constant 0 : index
    %80 = vector.load %arg25[%c0_64, %c0_65] : memref<1x32xf32, #tpu.memory_space<vmem>>, vector<1x32xf32>
    %81 = vector.broadcast %80 : vector<1x32xf32> to vector<32x32xf32>
    %82 = arith.addf %79, %81 : vector<32x32xf32>
    %cst_66 = arith.constant 0.000000e+00 : f32
    %83 = vector.broadcast %cst_66 : f32 to vector<32x32xf32>
    %84 = arith.maximumf %82, %83 : vector<32x32xf32>
    %c0_67 = arith.constant 0 : index
    %c0_68 = arith.constant 0 : index
    %85 = vector.load %arg26[%c0_67, %c0_68] : memref<1x32xf32, #tpu.memory_space<vmem>>, vector<1x32xf32>
    %86 = vector.broadcast %85 : vector<1x32xf32> to vector<32x32xf32>
    %87 = arith.mulf %84, %86 : vector<32x32xf32>
    %cst_69 = arith.constant dense<0.000000e+00> : vector<32xf32>
    %88 = vector.multi_reduction <add>, %87, %cst_69 [1] : vector<32x32xf32> to vector<32xf32>
    %89 = vector.shape_cast %88 : vector<32xf32> to vector<32x1xf32>
    %c0_70 = arith.constant 0 : index
    %c0_71 = arith.constant 0 : index
    %90 = vector.load %arg27[%c0_70, %c0_71] : memref<1x1xf32, #tpu.memory_space<vmem>>, vector<1x1xf32>
    %91 = vector.broadcast %90 : vector<1x1xf32> to vector<32x1xf32>
    %92 = arith.addf %89, %91 : vector<32x1xf32>
    %93 = arith.negf %92 : vector<32x1xf32>
    %94 = math.exp %93 : vector<32x1xf32>
    %cst_72 = arith.constant 1.000000e+00 : f32
    %95 = vector.broadcast %cst_72 : f32 to vector<32x1xf32>
    %96 = arith.addf %95, %94 : vector<32x1xf32>
    %97 = arith.divf %95, %96 : vector<32x1xf32>
    %98 = vector.shape_cast %97 : vector<32x1xf32> to vector<32x1xf32>
    %99 = vector.broadcast %98 : vector<32x1xf32> to vector<32x128xf32>
    %c0_73 = arith.constant 0 : index
    %c0_74 = arith.constant 0 : index
    %100 = vector.load %arg28[%c0_73, %c0_74] : memref<32x128xf32, #tpu.memory_space<vmem>>, vector<32x128xf32>
    tpu.vector_store %arg28[%c0_73, %c0_74], %99 {strides = array<i32>} : memref<32x128xf32, #tpu.memory_space<vmem>>, vector<32x128xf32>,
    return
  }
  func.func @transform_0(%arg0: i32) -> (i32, i32) {
    %c0_i32 = arith.constant 0 : i32
    %c0_i32_0 = arith.constant 0 : i32
    return %arg0, %c0_i32 : i32, i32
  }
  func.func @transform_1(%arg0: i32) -> (i32, i32) {
    %c0_i32 = arith.constant 0 : i32
    %c0_i32_0 = arith.constant 0 : i32
    return %arg0, %c0_i32 : i32, i32
  }
  func.func @transform_2(%arg0: i32) -> (i32, i32) {
    %c0_i32 = arith.constant 0 : i32
    %c0_i32_0 = arith.constant 0 : i32
    return %arg0, %c0_i32 : i32, i32
  }
  func.func @transform_3(%arg0: i32) -> (i32, i32) {
    %c0_i32 = arith.constant 0 : i32
    %c0_i32_0 = arith.constant 0 : i32
    return %arg0, %c0_i32 : i32, i32
  }
  func.func @transform_4(%arg0: i32) -> (i32, i32) {
    %c0_i32 = arith.constant 0 : i32
    %c0_i32_0 = arith.constant 0 : i32
    return %arg0, %c0_i32 : i32, i32
  }
  func.func @transform_5(%arg0: i32) -> (i32, i32) {
    %c0_i32 = arith.constant 0 : i32
    %c0_i32_0 = arith.constant 0 : i32
    return %arg0, %c0_i32 : i32, i32
  }
  func.func @transform_6(%arg0: i32) -> (i32, i32) {
    %c0_i32 = arith.constant 0 : i32
    %c0_i32_0 = arith.constant 0 : i32
    return %arg0, %c0_i32 : i32, i32
  }
  func.func @transform_7(%arg0: i32) -> (i32, i32) {
    %c0_i32 = arith.constant 0 : i32
    %c0_i32_0 = arith.constant 0 : i32
    return %arg0, %c0_i32 : i32, i32
  }
  func.func @transform_8(%arg0: i32) -> (i32, i32) {
    %c0_i32 = arith.constant 0 : i32
    %c0_i32_0 = arith.constant 0 : i32
    return %arg0, %c0_i32 : i32, i32
  }
  func.func @transform_9(%arg0: i32) -> (i32, i32) {
    %c0_i32 = arith.constant 0 : i32
    %c0_i32_0 = arith.constant 0 : i32
    %c0_i32_1 = arith.constant 0 : i32
    return %c0_i32, %c0_i32_0 : i32, i32
  }
  func.func @transform_10(%arg0: i32) -> (i32, i32) {
    %c0_i32 = arith.constant 0 : i32
    %c0_i32_0 = arith.constant 0 : i32
    %c0_i32_1 = arith.constant 0 : i32
    return %c0_i32, %c0_i32_0 : i32, i32
  }
  func.func @transform_11(%arg0: i32) -> (i32, i32) {
    %c0_i32 = arith.constant 0 : i32
    %c0_i32_0 = arith.constant 0 : i32
    %c0_i32_1 = arith.constant 0 : i32
    return %c0_i32, %c0_i32_0 : i32, i32
  }
  func.func @transform_12(%arg0: i32) -> (i32, i32) {
    %c0_i32 = arith.constant 0 : i32
    %c0_i32_0 = arith.constant 0 : i32
    %c0_i32_1 = arith.constant 0 : i32
    return %c0_i32, %c0_i32_0 : i32, i32
  }
  func.func @transform_13(%arg0: i32) -> (i32, i32) {
    %c0_i32 = arith.constant 0 : i32
    %c0_i32_0 = arith.constant 0 : i32
    %c0_i32_1 = arith.constant 0 : i32
    return %c0_i32, %c0_i32_0 : i32, i32
  }
  func.func @transform_14(%arg0: i32) -> (i32, i32) {
    %c0_i32 = arith.constant 0 : i32
    %c0_i32_0 = arith.constant 0 : i32
    %c0_i32_1 = arith.constant 0 : i32
    return %c0_i32, %c0_i32_0 : i32, i32
  }
  func.func @transform_15(%arg0: i32) -> (i32, i32) {
    %c0_i32 = arith.constant 0 : i32
    %c0_i32_0 = arith.constant 0 : i32
    %c0_i32_1 = arith.constant 0 : i32
    return %c0_i32, %c0_i32_0 : i32, i32
  }
  func.func @transform_16(%arg0: i32) -> (i32, i32) {
    %c0_i32 = arith.constant 0 : i32
    %c0_i32_0 = arith.constant 0 : i32
    %c0_i32_1 = arith.constant 0 : i32
    return %c0_i32, %c0_i32_0 : i32, i32
  }
  func.func @transform_17(%arg0: i32) -> (i32, i32) {
    %c0_i32 = arith.constant 0 : i32
    %c0_i32_0 = arith.constant 0 : i32
    %c0_i32_1 = arith.constant 0 : i32
    return %c0_i32, %c0_i32_0 : i32, i32
  }
  func.func @transform_18(%arg0: i32) -> (i32, i32) {
    %c0_i32 = arith.constant 0 : i32
    %c0_i32_0 = arith.constant 0 : i32
    %c0_i32_1 = arith.constant 0 : i32
    return %c0_i32, %c0_i32_0 : i32, i32
  }
  func.func @transform_19(%arg0: i32) -> (i32, i32) {
    %c0_i32 = arith.constant 0 : i32
    %c0_i32_0 = arith.constant 0 : i32
    %c0_i32_1 = arith.constant 0 : i32
    return %c0_i32, %c0_i32_0 : i32, i32
  }
  func.func @transform_20(%arg0: i32) -> (i32, i32) {
    %c0_i32 = arith.constant 0 : i32
    %c0_i32_0 = arith.constant 0 : i32
    %c0_i32_1 = arith.constant 0 : i32
    return %c0_i32, %c0_i32_0 : i32, i32
  }
  func.func @transform_21(%arg0: i32) -> (i32, i32) {
    %c0_i32 = arith.constant 0 : i32
    %c0_i32_0 = arith.constant 0 : i32
    %c0_i32_1 = arith.constant 0 : i32
    return %c0_i32, %c0_i32_0 : i32, i32
  }
  func.func @transform_22(%arg0: i32) -> (i32, i32) {
    %c0_i32 = arith.constant 0 : i32
    %c0_i32_0 = arith.constant 0 : i32
    %c0_i32_1 = arith.constant 0 : i32
    return %c0_i32, %c0_i32_0 : i32, i32
  }
  func.func @transform_23(%arg0: i32) -> (i32, i32) {
    %c0_i32 = arith.constant 0 : i32
    %c0_i32_0 = arith.constant 0 : i32
    %c0_i32_1 = arith.constant 0 : i32
    return %c0_i32, %c0_i32_0 : i32, i32
  }
  func.func @transform_24(%arg0: i32) -> (i32, i32) {
    %c0_i32 = arith.constant 0 : i32
    %c0_i32_0 = arith.constant 0 : i32
    %c0_i32_1 = arith.constant 0 : i32
    return %c0_i32, %c0_i32_0 : i32, i32
  }
  func.func @transform_25(%arg0: i32) -> (i32, i32) {
    %c0_i32 = arith.constant 0 : i32
    %c0_i32_0 = arith.constant 0 : i32
    %c0_i32_1 = arith.constant 0 : i32
    return %c0_i32, %c0_i32_0 : i32, i32
  }
  func.func @transform_26(%arg0: i32) -> (i32, i32) {
    %c0_i32 = arith.constant 0 : i32
    %c0_i32_0 = arith.constant 0 : i32
    %c0_i32_1 = arith.constant 0 : i32
    return %c0_i32, %c0_i32_0 : i32, i32
  }
  func.func @transform_27(%arg0: i32) -> (i32, i32) {
    %c0_i32 = arith.constant 0 : i32
    %c0_i32_0 = arith.constant 0 : i32
    return %arg0, %c0_i32 : i32, i32
  }
}

</mosaic_0001>

<llo_original>
// kernel: set_conv_forward.1
$region0: #{set_conv_forward.1}
  #allocation0 [shape = 'u32[]', space=smem, size = 0x4, offset = 0x4, fixed_abs, tag = 'smem constant byte address 0x4 - core index']
  #allocation1 [shape = 'u32[72,128]{1,0:T(1,128)}', space=vmem, size = 0x9000, scoped, tag = 'internal scratch']
  #allocation2 [shape = 'f32[1,1]{1,0:T(1,128)S(1)}', space=vmem, size = 0x200, scoped, tag = 'scoped memory for set_conv_forward.1']
  %s0 = inlined_call_operand.vmem [shape: f32[512,16], index: 0, kind: input, shape index: {}]
  %s1 = inlined_call_operand.vmem [shape: f32[512,1], index: 1, kind: input, shape index: {}]
  %s2 = inlined_call_operand.vmem [shape: f32[64,1], index: 2, kind: input, shape index: {}]
  %s3 = inlined_call_operand.vmem [shape: f32[1024,12], index: 3, kind: input, shape index: {}]
  %s4 = inlined_call_operand.vmem [shape: f32[1024,1], index: 4, kind: input, shape index: {}]
  %s5 = inlined_call_operand.vmem [shape: f32[64,1], index: 5, kind: input, shape index: {}]
  %s6 = inlined_call_operand.vmem [shape: f32[512,8], index: 6, kind: input, shape index: {}]
  %s7 = inlined_call_operand.vmem [shape: f32[512,1], index: 7, kind: input, shape index: {}]
  %s8 = inlined_call_operand.vmem [shape: f32[64,1], index: 8, kind: input, shape index: {}]
  %s9 = inlined_call_operand.vmem [shape: f32[16,32], index: 9, kind: input, shape index: {}]
  %s10 = inlined_call_operand.vmem [shape: f32[1,32], index: 10, kind: input, shape index: {}]
  %s11 = inlined_call_operand.vmem [shape: f32[32,32], index: 11, kind: input, shape index: {}]
  %s12 = inlined_call_operand.vmem [shape: f32[1,32], index: 12, kind: input, shape index: {}]
  %s13 = inlined_call_operand.vmem [shape: f32[12,32], index: 13, kind: input, shape index: {}]
  %s14 = inlined_call_operand.vmem [shape: f32[1,32], index: 14, kind: input, shape index: {}]
  %s15 = inlined_call_operand.vmem [shape: f32[32,32], index: 15, kind: input, shape index: {}]
  %s16 = inlined_call_operand.vmem [shape: f32[1,32], index: 16, kind: input, shape index: {}]
  %s17 = inlined_call_operand.vmem [shape: f32[8,32], index: 17, kind: input, shape index: {}]
  %s18 = inlined_call_operand.vmem [shape: f32[1,32], index: 18, kind: input, shape index: {}]
  %s19 = inlined_call_operand.vmem [shape: f32[32,32], index: 19, kind: input, shape index: {}]
  %s20 = inlined_call_operand.vmem [shape: f32[1,32], index: 20, kind: input, shape index: {}]
  %s21 = inlined_call_operand.vmem [shape: f32[32,32], index: 21, kind: input, shape index: {}]
  %s22 = inlined_call_operand.vmem [shape: f32[32,32], index: 22, kind: input, shape index: {}]
  %s23 = inlined_call_operand.vmem [shape: f32[32,32], index: 23, kind: input, shape index: {}]
  %s24 = inlined_call_operand.vmem [shape: f32[1,32], index: 24, kind: input, shape index: {}]
  %s25 = inlined_call_operand.vmem [shape: f32[1,32], index: 25, kind: input, shape index: {}]
  %s26 = inlined_call_operand.<no memory space> [shape: f32[1,1], index: 26, kind: input, shape index: {}]
  %s27 = inlined_call_operand.vmem [shape: f32[64,128], index: 27, kind: output, shape index: {}]
  %s28 = sld [smem:[#allocation0]]
  $region141: #{set_conv_forward.1} parent=0
    _
  %s30 = ssub.s32 1, %s28
  %s31 = scalar_select 0, %s30, %s28
  %v32 = vstv %s26
  %33 = vst [vmem:[#allocation2] sm:$0x1] %v32
  loop: start=0, step=1, limit=4
  $region2: #{set_conv_forward.1} parent=0 // loop_pre_header
    _
  $region3: #{set_conv_forward.1} parent=0 // loop_header
    %s35 = sphi 0, %s39
    %p36 = scmp.ge.s32.totalorder %s35, 4
    %s45 = sphi 0, %s47
    %s48 = sphi 0, %s45
    %s49 = sphi 0, %s48
    %s65 = sphi 0, %s49
    %s71 = sphi 0, %s73
    %s74 = sphi 0, %s71
    %s75 = sphi 0, %s74
    %s91 = sphi 0, %s75
    %s97 = sphi 0, %s99
    %s100 = sphi 0, %s97
    %s101 = sphi 0, %s100
    %s117 = sphi 0, %s101
    %s123 = sphi 0, %s125
    %s126 = sphi 0, %s123
    %s127 = sphi 0, %s126
    %s143 = sphi 0, %s127
    %s149 = sphi 0, %s151
    %s152 = sphi 0, %s149
    %s153 = sphi 0, %s152
    %s169 = sphi 0, %s153
    %s175 = sphi 0, %s177
    %s178 = sphi 0, %s175
    %s179 = sphi 0, %s178
    %s195 = sphi 0, %s179
    %s201 = sphi 0, %s203
    %s204 = sphi 0, %s201
    %s205 = sphi 0, %s204
    %s221 = sphi 0, %s205
    %s227 = sphi 0, %s229
    %s230 = sphi 0, %s227
    %s231 = sphi 0, %s230
    %s247 = sphi 0, %s231
    %s253 = sphi 0, %s255
    %s256 = sphi 0, %s253
    %s257 = sphi 0, %s256
    %s273 = sphi 0, %s257
    %s277 = sphi 0, %s277
    %s279 = sphi 0, %s277
    %s280 = sphi 0, %s279
    %s294 = sphi 0, %s280
    %s298 = sphi 0, %s298
    %s300 = sphi 0, %s298
    %s301 = sphi 0, %s300
    %s315 = sphi 0, %s301
    %s319 = sphi 0, %s319
    %s321 = sphi 0, %s319
    %s322 = sphi 0, %s321
    %s336 = sphi 0, %s322
    %s340 = sphi 0, %s340
    %s342 = sphi 0, %s340
    %s343 = sphi 0, %s342
    %s357 = sphi 0, %s343
    %s361 = sphi 0, %s361
    %s363 = sphi 0, %s361
    %s364 = sphi 0, %s363
    %s378 = sphi 0, %s364
    %s382 = sphi 0, %s382
    %s384 = sphi 0, %s382
    %s385 = sphi 0, %s384
    %s399 = sphi 0, %s385
    %s403 = sphi 0, %s403
    %s405 = sphi 0, %s403
    %s406 = sphi 0, %s405
    %s420 = sphi 0, %s406
    %s424 = sphi 0, %s424
    %s426 = sphi 0, %s424
    %s427 = sphi 0, %s426
    %s441 = sphi 0, %s427
    %s445 = sphi 0, %s445
    %s447 = sphi 0, %s445
    %s448 = sphi 0, %s447
    %s462 = sphi 0, %s448
    %s466 = sphi 0, %s466
    %s468 = sphi 0, %s466
    %s469 = sphi 0, %s468
    %s483 = sphi 0, %s469
    %s487 = sphi 0, %s487
    %s489 = sphi 0, %s487
    %s490 = sphi 0, %s489
    %s504 = sphi 0, %s490
    %s508 = sphi 0, %s508
    %s510 = sphi 0, %s508
    %s511 = sphi 0, %s510
    %s525 = sphi 0, %s511
    %s529 = sphi 0, %s529
    %s531 = sphi 0, %s529
    %s532 = sphi 0, %s531
    %s546 = sphi 0, %s532
    %s550 = sphi 0, %s550
    %s552 = sphi 0, %s550
    %s553 = sphi 0, %s552
    %s567 = sphi 0, %s553
    %s571 = sphi 0, %s571
    %s573 = sphi 0, %s571
    %s574 = sphi 0, %s573
    %s588 = sphi 0, %s574
    %s592 = sphi 0, %s592
    %s594 = sphi 0, %s592
    %s595 = sphi 0, %s594
    %s609 = sphi 0, %s595
    %s613 = sphi 0, %s613
    %s615 = sphi 0, %s613
    %s616 = sphi 0, %s615
    %s630 = sphi 0, %s616
    %s634 = sphi 0, %s634
    %s636 = sphi 0, %s634
    %s637 = sphi 0, %s636
    %s651 = sphi 0, %s637
    %s657 = sphi 0, %s659
    %s660 = sphi 0, %s657
    %s661 = sphi 0, %s660
    %s677 = sphi 0, %s661
  $region4: #{set_conv_forward.1} parent=0 // loop_header_branch
    %38 = sbr.rel (%p36) target = $region8
  $region5: #{set_conv_forward.1} parent=0 // loop_body
    %s40 = ssub.s32 %s35, 1
    %s41 = ssub.s32 %s35, 2
    %s42 = sadd.s32 %s35, 1
    %s43 = ssub.s32 %s35, %s42
    %p44 = scmp.eq.s32.totalorder %s43, 0
    %s46 = sadd.s32 %s45, 1
    %s47 = scalar_select %p44, %s45, %s46
    %p50 = pneg %p44
    %p51 = scmp.eq.s32.totalorder %s35, 1
    %p52 = por %p50, %p51
    %p53 = scmp.ne.s32.totalorder %s45, %s48
    %p54 = scmp.eq.s32.totalorder %s35, 0
    %p55 = por %p53, %p54
    %p56 = scmp.ne.s32.totalorder %s45, %s48
    %p57 = scmp.eq.s32.totalorder %s40, 1
    %p58 = por %p56, %p57
    %p59 = scmp.ne.s32.totalorder %s48, %s49
    %p60 = scmp.eq.s32.totalorder %s40, 0
    %p61 = por %p59, %p60
    %p62 = scmp.ne.s32.totalorder %s48, %s49
    %p63 = scmp.eq.s32.totalorder %s41, 1
    %p64 = por %p62, %p63
    %p66 = scmp.ne.s32.totalorder %s49, %s65
    %p67 = scmp.eq.s32.totalorder %s41, 0
    %p68 = por %p66, %p67
    %s69 = ssub.s32 %s35, %s42
    %p70 = scmp.eq.s32.totalorder %s69, 0
    %s72 = sadd.s32 %s71, 1
    %s73 = scalar_select %p70, %s71, %s72
    %p76 = pneg %p70
    %p77 = scmp.eq.s32.totalorder %s35, 1
    %p78 = por %p76, %p77
    %p79 = scmp.ne.s32.totalorder %s71, %s74
    %p80 = scmp.eq.s32.totalorder %s35, 0
    %p81 = por %p79, %p80
    %p82 = scmp.ne.s32.totalorder %s71, %s74
    %p83 = scmp.eq.s32.totalorder %s40, 1
    %p84 = por %p82, %p83
    %p85 = scmp.ne.s32.totalorder %s74, %s75
    %p86 = scmp.eq.s32.totalorder %s40, 0
    %p87 = por %p85, %p86
    %p88 = scmp.ne.s32.totalorder %s74, %s75
    %p89 = scmp.eq.s32.totalorder %s41, 1
    %p90 = por %p88, %p89
    %p92 = scmp.ne.s32.totalorder %s75, %s91
    %p93 = scmp.eq.s32.totalorder %s41, 0
    %p94 = por %p92, %p93
    %s95 = ssub.s32 %s35, %s42
    %p96 = scmp.eq.s32.totalorder %s95, 0
    %s98 = sadd.s32 %s97, 1
    %s99 = scalar_select %p96, %s97, %s98
    %p102 = pneg %p96
    %p103 = scmp.eq.s32.totalorder %s35, 1
    %p104 = por %p102, %p103
    %p105 = scmp.ne.s32.totalorder %s97, %s100
    %p106 = scmp.eq.s32.totalorder %s35, 0
    %p107 = por %p105, %p106
    %p108 = scmp.ne.s32.totalorder %s97, %s100
    %p109 = scmp.eq.s32.totalorder %s40, 1
    %p110 = por %p108, %p109
    %p111 = scmp.ne.s32.totalorder %s100, %s101
    %p112 = scmp.eq.s32.totalorder %s40, 0
    %p113 = por %p111, %p112
    %p114 = scmp.ne.s32.totalorder %s100, %s101
    %p115 = scmp.eq.s32.totalorder %s41, 1
    %p116 = por %p114, %p115
    %p118 = scmp.ne.s32.totalorder %s101, %s117
    %p119 = scmp.eq.s32.totalorder %s41, 0
    %p120 = por %p118, %p119
    %s121 = ssub.s32 %s35, %s42
    %p122 = scmp.eq.s32.totalorder %s121, 0
    %s124 = sadd.s32 %s123, 1
    %s125 = scalar_select %p122, %s123, %s124
    %p128 = pneg %p122
    %p129 = scmp.eq.s32.totalorder %s35, 1
    %p130 = por %p128, %p129
    %p131 = scmp.ne.s32.totalorder %s123, %s126
    %p132 = scmp.eq.s32.totalorder %s35, 0
    %p133 = por %p131, %p132
    %p134 = scmp.ne.s32.totalorder %s123, %s126
    %p135 = scmp.eq.s32.totalorder %s40, 1
    %p136 = por %p134, %p135
    %p137 = scmp.ne.s32.totalorder %s126, %s127
    %p138 = scmp.eq.s32.totalorder %s40, 0
    %p139 = por %p137, %p138
    %p140 = scmp.ne.s32.totalorder %s126, %s127
    %p141 = scmp.eq.s32.totalorder %s41, 1
    %p142 = por %p140, %p141
    %p144 = scmp.ne.s32.totalorder %s127, %s143
    %p145 = scmp.eq.s32.totalorder %s41, 0
    %p146 = por %p144, %p145
    %s147 = ssub.s32 %s35, %s42
    %p148 = scmp.eq.s32.totalorder %s147, 0
    %s150 = sadd.s32 %s149, 1
    %s151 = scalar_select %p148, %s149, %s150
    %p154 = pneg %p148
    %p155 = scmp.eq.s32.totalorder %s35, 1
    %p156 = por %p154, %p155
    %p157 = scmp.ne.s32.totalorder %s149, %s152
    %p158 = scmp.eq.s32.totalorder %s35, 0
    %p159 = por %p157, %p158
    %p160 = scmp.ne.s32.totalorder %s149, %s152
    %p161 = scmp.eq.s32.totalorder %s40, 1
    %p162 = por %p160, %p161
    %p163 = scmp.ne.s32.totalorder %s152, %s153
    %p164 = scmp.eq.s32.totalorder %s40, 0
    %p165 = por %p163, %p164
    %p166 = scmp.ne.s32.totalorder %s152, %s153
    %p167 = scmp.eq.s32.totalorder %s41, 1
    %p168 = por %p166, %p167
    %p170 = scmp.ne.s32.totalorder %s153, %s169
    %p171 = scmp.eq.s32.totalorder %s41, 0
    %p172 = por %p170, %p171
    %s173 = ssub.s32 %s35, %s42
    %p174 = scmp.eq.s32.totalorder %s173, 0
    %s176 = sadd.s32 %s175, 1
    %s177 = scalar_select %p174, %s175, %s176
    %p180 = pneg %p174
    %p181 = scmp.eq.s32.totalorder %s35, 1
    %p182 = por %p180, %p181
    %p183 = scmp.ne.s32.totalorder %s175, %s178
    %p184 = scmp.eq.s32.totalorder %s35, 0
    %p185 = por %p183, %p184
    %p186 = scmp.ne.s32.totalorder %s175, %s178
    %p187 = scmp.eq.s32.totalorder %s40, 1
    %p188 = por %p186, %p187
    %p189 = scmp.ne.s32.totalorder %s178, %s179
    %p190 = scmp.eq.s32.totalorder %s40, 0
    %p191 = por %p189, %p190
    %p192 = scmp.ne.s32.totalorder %s178, %s179
    %p193 = scmp.eq.s32.totalorder %s41, 1
    %p194 = por %p192, %p193
    %p196 = scmp.ne.s32.totalorder %s179, %s195
    %p197 = scmp.eq.s32.totalorder %s41, 0
    %p198 = por %p196, %p197
    %s199 = ssub.s32 %s35, %s42
    %p200 = scmp.eq.s32.totalorder %s199, 0
    %s202 = sadd.s32 %s201, 1
    %s203 = scalar_select %p200, %s201, %s202
    %p206 = pneg %p200
    %p207 = scmp.eq.s32.totalorder %s35, 1
    %p208 = por %p206, %p207
    %p209 = scmp.ne.s32.totalorder %s201, %s204
    %p210 = scmp.eq.s32.totalorder %s35, 0
    %p211 = por %p209, %p210
    %p212 = scmp.ne.s32.totalorder %s201, %s204
    %p213 = scmp.eq.s32.totalorder %s40, 1
    %p214 = por %p212, %p213
    %p215 = scmp.ne.s32.totalorder %s204, %s205
    %p216 = scmp.eq.s32.totalorder %s40, 0
    %p217 = por %p215, %p216
    %p218 = scmp.ne.s32.totalorder %s204, %s205
    %p219 = scmp.eq.s32.totalorder %s41, 1
    %p220 = por %p218, %p219
    %p222 = scmp.ne.s32.totalorder %s205, %s221
    %p223 = scmp.eq.s32.totalorder %s41, 0
    %p224 = por %p222, %p223
    %s225 = ssub.s32 %s35, %s42
    %p226 = scmp.eq.s32.totalorder %s225, 0
    %s228 = sadd.s32 %s227, 1
    %s229 = scalar_select %p226, %s227, %s228
    %p232 = pneg %p226
    %p233 = scmp.eq.s32.totalorder %s35, 1
    %p234 = por %p232, %p233
    %p235 = scmp.ne.s32.totalorder %s227, %s230
    %p236 = scmp.eq.s32.totalorder %s35, 0
    %p237 = por %p235, %p236
    %p238 = scmp.ne.s32.totalorder %s227, %s230
    %p239 = scmp.eq.s32.totalorder %s40, 1
    %p240 = por %p238, %p239
    %p241 = scmp.ne.s32.totalorder %s230, %s231
    %p242 = scmp.eq.s32.totalorder %s40, 0
    %p243 = por %p241, %p242
    %p244 = scmp.ne.s32.totalorder %s230, %s231
    %p245 = scmp.eq.s32.totalorder %s41, 1
    %p246 = por %p244, %p245
    %p248 = scmp.ne.s32.totalorder %s231, %s247
    %p249 = scmp.eq.s32.totalorder %s41, 0
    %p250 = por %p248, %p249
    %s251 = ssub.s32 %s35, %s42
    %p252 = scmp.eq.s32.totalorder %s251, 0
    %s254 = sadd.s32 %s253, 1
    %s255 = scalar_select %p252, %s253, %s254
    %p258 = pneg %p252
    %p259 = scmp.eq.s32.totalorder %s35, 1
    %p260 = por %p258, %p259
    %p261 = scmp.ne.s32.totalorder %s253, %s256
    %p262 = scmp.eq.s32.totalorder %s35, 0
    %p263 = por %p261, %p262
    %p264 = scmp.ne.s32.totalorder %s253, %s256
    %p265 = scmp.eq.s32.totalorder %s40, 1
    %p266 = por %p264, %p265
    %p267 = scmp.ne.s32.totalorder %s256, %s257
    %p268 = scmp.eq.s32.totalorder %s40, 0
    %p269 = por %p267, %p268
    %p270 = scmp.ne.s32.totalorder %s256, %s257
    %p271 = scmp.eq.s32.totalorder %s41, 1
    %p272 = por %p270, %p271
    %p274 = scmp.ne.s32.totalorder %s257, %s273
    %p275 = scmp.eq.s32.totalorder %s41, 0
    %p276 = por %p274, %p275
    %s278 = sadd.s32 %s277, 1
    %p281 = scmp.eq.s32.totalorder %s35, 1
    %p282 = scmp.ne.s32.totalorder %s277, %s279
    %p283 = scmp.eq.s32.totalorder %s35, 0
    %p284 = por %p282, %p283
    %p285 = scmp.ne.s32.totalorder %s277, %s279
    %p286 = scmp.eq.s32.totalorder %s40, 1
    %p287 = por %p285, %p286
    %p288 = scmp.ne.s32.totalorder %s279, %s280
    %p289 = scmp.eq.s32.totalorder %s40, 0
    %p290 = por %p288, %p289
    %p291 = scmp.ne.s32.totalorder %s279, %s280
    %p292 = scmp.eq.s32.totalorder %s41, 1
    %p293 = por %p291, %p292
    %p295 = scmp.ne.s32.totalorder %s280, %s294
    %p296 = scmp.eq.s32.totalorder %s41, 0
    %p297 = por %p295, %p296
    %s299 = sadd.s32 %s298, 1
    %p302 = scmp.eq.s32.totalorder %s35, 1
    %p303 = scmp.ne.s32.totalorder %s298, %s300
    %p304 = scmp.eq.s32.totalorder %s35, 0
    %p305 = por %p303, %p304
    %p306 = scmp.ne.s32.totalorder %s298, %s300
    %p307 = scmp.eq.s32.totalorder %s40, 1
    %p308 = por %p306, %p307
    %p309 = scmp.ne.s32.totalorder %s300, %s301
    %p310 = scmp.eq.s32.totalorder %s40, 0
    %p311 = por %p309, %p310
    %p312 = scmp.ne.s32.totalorder %s300, %s301
    %p313 = scmp.eq.s32.totalorder %s41, 1
    %p314 = por %p312, %p313
    %p316 = scmp.ne.s32.totalorder %s301, %s315
    %p317 = scmp.eq.s32.totalorder %s41, 0
    %p318 = por %p316, %p317
    %s320 = sadd.s32 %s319, 1
    %p323 = scmp.eq.s32.totalorder %s35, 1
    %p324 = scmp.ne.s32.totalorder %s319, %s321
    %p325 = scmp.eq.s32.totalorder %s35, 0
    %p326 = por %p324, %p325
    %p327 = scmp.ne.s32.totalorder %s319, %s321
    %p328 = scmp.eq.s32.totalorder %s40, 1
    %p329 = por %p327, %p328
    %p330 = scmp.ne.s32.totalorder %s321, %s322
    %p331 = scmp.eq.s32.totalorder %s40, 0
    %p332 = por %p330, %p331
    %p333 = scmp.ne.s32.totalorder %s321, %s322
    %p334 = scmp.eq.s32.totalorder %s41, 1
    %p335 = por %p333, %p334
    %p337 = scmp.ne.s32.totalorder %s322, %s336
    %p338 = scmp.eq.s32.totalorder %s41, 0
    %p339 = por %p337, %p338
    %s341 = sadd.s32 %s340, 1
    %p344 = scmp.eq.s32.totalorder %s35, 1
    %p345 = scmp.ne.s32.totalorder %s340, %s342
    %p346 = scmp.eq.s32.totalorder %s35, 0
    %p347 = por %p345, %p346
    %p348 = scmp.ne.s32.totalorder %s340, %s342
    %p349 = scmp.eq.s32.totalorder %s40, 1
    %p350 = por %p348, %p349
    %p351 = scmp.ne.s32.totalorder %s342, %s343
    %p352 = scmp.eq.s32.totalorder %s40, 0
    %p353 = por %p351, %p352
    %p354 = scmp.ne.s32.totalorder %s342, %s343
    %p355 = scmp.eq.s32.totalorder %s41, 1
    %p356 = por %p354, %p355
    %p358 = scmp.ne.s32.totalorder %s343, %s357
    %p359 = scmp.eq.s32.totalorder %s41, 0
    %p360 = por %p358, %p359
    %s362 = sadd.s32 %s361, 1
    %p365 = scmp.eq.s32.totalorder %s35, 1
    %p366 = scmp.ne.s32.totalorder %s361, %s363
    %p367 = scmp.eq.s32.totalorder %s35, 0
    %p368 = por %p366, %p367
    %p369 = scmp.ne.s32.totalorder %s361, %s363
    %p370 = scmp.eq.s32.totalorder %s40, 1
    %p371 = por %p369, %p370
    %p372 = scmp.ne.s32.totalorder %s363, %s364
    %p373 = scmp.eq.s32.totalorder %s40, 0
    %p374 = por %p372, %p373
    %p375 = scmp.ne.s32.totalorder %s363, %s364
    %p376 = scmp.eq.s32.totalorder %s41, 1
    %p377 = por %p375, %p376
    %p379 = scmp.ne.s32.totalorder %s364, %s378
    %p380 = scmp.eq.s32.totalorder %s41, 0
    %p381 = por %p379, %p380
    %s383 = sadd.s32 %s382, 1
    %p386 = scmp.eq.s32.totalorder %s35, 1
    %p387 = scmp.ne.s32.totalorder %s382, %s384
    %p388 = scmp.eq.s32.totalorder %s35, 0
    %p389 = por %p387, %p388
    %p390 = scmp.ne.s32.totalorder %s382, %s384
    %p391 = scmp.eq.s32.totalorder %s40, 1
    %p392 = por %p390, %p391
    %p393 = scmp.ne.s32.totalorder %s384, %s385
    %p394 = scmp.eq.s32.totalorder %s40, 0
    %p395 = por %p393, %p394
    %p396 = scmp.ne.s32.totalorder %s384, %s385
    %p397 = scmp.eq.s32.totalorder %s41, 1
    %p398 = por %p396, %p397
    %p400 = scmp.ne.s32.totalorder %s385, %s399
    %p401 = scmp.eq.s32.totalorder %s41, 0
    %p402 = por %p400, %p401
    %s404 = sadd.s32 %s403, 1
    %p407 = scmp.eq.s32.totalorder %s35, 1
    %p408 = scmp.ne.s32.totalorder %s403, %s405
    %p409 = scmp.eq.s32.totalorder %s35, 0
    %p410 = por %p408, %p409
    %p411 = scmp.ne.s32.totalorder %s403, %s405
    %p412 = scmp.eq.s32.totalorder %s40, 1
    %p413 = por %p411, %p412
    %p414 = scmp.ne.s32.totalorder %s405, %s406
    %p415 = scmp.eq.s32.totalorder %s40, 0
    %p416 = por %p414, %p415
    %p417 = scmp.ne.s32.totalorder %s405, %s406
    %p418 = scmp.eq.s32.totalorder %s41, 1
    %p419 = por %p417, %p418
    %p421 = scmp.ne.s32.totalorder %s406, %s420
    %p422 = scmp.eq.s32.totalorder %s41, 0
    %p423 = por %p421, %p422
    %s425 = sadd.s32 %s424, 1
    %p428 = scmp.eq.s32.totalorder %s35, 1
    %p429 = scmp.ne.s32.totalorder %s424, %s426
    %p430 = scmp.eq.s32.totalorder %s35, 0
    %p431 = por %p429, %p430
    %p432 = scmp.ne.s32.totalorder %s424, %s426
    %p433 = scmp.eq.s32.totalorder %s40, 1
    %p434 = por %p432, %p433
    %p435 = scmp.ne.s32.totalorder %s426, %s427
    %p436 = scmp.eq.s32.totalorder %s40, 0
    %p437 = por %p435, %p436
    %p438 = scmp.ne.s32.totalorder %s426, %s427
    %p439 = scmp.eq.s32.totalorder %s41, 1
    %p440 = por %p438, %p439
    %p442 = scmp.ne.s32.totalorder %s427, %s441
    %p443 = scmp.eq.s32.totalorder %s41, 0
    %p444 = por %p442, %p443
    %s446 = sadd.s32 %s445, 1
    %p449 = scmp.eq.s32.totalorder %s35, 1
    %p450 = scmp.ne.s32.totalorder %s445, %s447
    %p451 = scmp.eq.s32.totalorder %s35, 0
    %p452 = por %p450, %p451
    %p453 = scmp.ne.s32.totalorder %s445, %s447
    %p454 = scmp.eq.s32.totalorder %s40, 1
    %p455 = por %p453, %p454
    %p456 = scmp.ne.s32.totalorder %s447, %s448
    %p457 = scmp.eq.s32.totalorder %s40, 0
    %p458 = por %p456, %p457
    %p459 = scmp.ne.s32.totalorder %s447, %s448
    %p460 = scmp.eq.s32.totalorder %s41, 1
    %p461 = por %p459, %p460
    %p463 = scmp.ne.s32.totalorder %s448, %s462
    %p464 = scmp.eq.s32.totalorder %s41, 0
    %p465 = por %p463, %p464
    %s467 = sadd.s32 %s466, 1
    %p470 = scmp.eq.s32.totalorder %s35, 1
    %p471 = scmp.ne.s32.totalorder %s466, %s468
    %p472 = scmp.eq.s32.totalorder %s35, 0
    %p473 = por %p471, %p472
    %p474 = scmp.ne.s32.totalorder %s466, %s468
    %p475 = scmp.eq.s32.totalorder %s40, 1
    %p476 = por %p474, %p475
    %p477 = scmp.ne.s32.totalorder %s468, %s469
    %p478 = scmp.eq.s32.totalorder %s40, 0
    %p479 = por %p477, %p478
    %p480 = scmp.ne.s32.totalorder %s468, %s469
    %p481 = scmp.eq.s32.totalorder %s41, 1
    %p482 = por %p480, %p481
    %p484 = scmp.ne.s32.totalorder %s469, %s483
    %p485 = scmp.eq.s32.totalorder %s41, 0
    %p486 = por %p484, %p485
    %s488 = sadd.s32 %s487, 1
    %p491 = scmp.eq.s32.totalorder %s35, 1
    %p492 = scmp.ne.s32.totalorder %s487, %s489
    %p493 = scmp.eq.s32.totalorder %s35, 0
    %p494 = por %p492, %p493
    %p495 = scmp.ne.s32.totalorder %s487, %s489
    %p496 = scmp.eq.s32.totalorder %s40, 1
    %p497 = por %p495, %p496
    %p498 = scmp.ne.s32.totalorder %s489, %s490
    %p499 = scmp.eq.s32.totalorder %s40, 0
    %p500 = por %p498, %p499
    %p501 = scmp.ne.s32.totalorder %s489, %s490
    %p502 = scmp.eq.s32.totalorder %s41, 1
    %p503 = por %p501, %p502
    %p505 = scmp.ne.s32.totalorder %s490, %s504
    %p506 = scmp.eq.s32.totalorder %s41, 0
    %p507 = por %p505, %p506
    %s509 = sadd.s32 %s508, 1
    %p512 = scmp.eq.s32.totalorder %s35, 1
    %p513 = scmp.ne.s32.totalorder %s508, %s510
    %p514 = scmp.eq.s32.totalorder %s35, 0
    %p515 = por %p513, %p514
    %p516 = scmp.ne.s32.totalorder %s508, %s510
    %p517 = scmp.eq.s32.totalorder %s40, 1
    %p518 = por %p516, %p517
    %p519 = scmp.ne.s32.totalorder %s510, %s511
    %p520 = scmp.eq.s32.totalorder %s40, 0
    %p521 = por %p519, %p520
    %p522 = scmp.ne.s32.totalorder %s510, %s511
    %p523 = scmp.eq.s32.totalorder %s41, 1
    %p524 = por %p522, %p523
    %p526 = scmp.ne.s32.totalorder %s511, %s525
    %p527 = scmp.eq.s32.totalorder %s41, 0
    %p528 = por %p526, %p527
    %s530 = sadd.s32 %s529, 1
    %p533 = scmp.eq.s32.totalorder %s35, 1
    %p534 = scmp.ne.s32.totalorder %s529, %s531
    %p535 = scmp.eq.s32.totalorder %s35, 0
    %p536 = por %p534, %p535
    %p537 = scmp.ne.s32.totalorder %s529, %s531
    %p538 = scmp.eq.s32.totalorder %s40, 1
    %p539 = por %p537, %p538
    %p540 = scmp.ne.s32.totalorder %s531, %s532
    %p541 = scmp.eq.s32.totalorder %s40, 0
    %p542 = por %p540, %p541
    %p543 = scmp.ne.s32.totalorder %s531, %s532
    %p544 = scmp.eq.s32.totalorder %s41, 1
    %p545 = por %p543, %p544
    %p547 = scmp.ne.s32.totalorder %s532, %s546
    %p548 = scmp.eq.s32.totalorder %s41, 0
    %p549 = por %p547, %p548
    %s551 = sadd.s32 %s550, 1
    %p554 = scmp.eq.s32.totalorder %s35, 1
    %p555 = scmp.ne.s32.totalorder %s550, %s552
    %p556 = scmp.eq.s32.totalorder %s35, 0
    %p557 = por %p555, %p556
    %p558 = scmp.ne.s32.totalorder %s550, %s552
    %p559 = scmp.eq.s32.totalorder %s40, 1
    %p560 = por %p558, %p559
    %p561 = scmp.ne.s32.totalorder %s552, %s553
    %p562 = scmp.eq.s32.totalorder %s40, 0
    %p563 = por %p561, %p562
    %p564 = scmp.ne.s32.totalorder %s552, %s553
    %p565 = scmp.eq.s32.totalorder %s41, 1
    %p566 = por %p564, %p565
    %p568 = scmp.ne.s32.totalorder %s553, %s567
    %p569 = scmp.eq.s32.totalorder %s41, 0
    %p570 = por %p568, %p569
    %s572 = sadd.s32 %s571, 1
    %p575 = scmp.eq.s32.totalorder %s35, 1
    %p576 = scmp.ne.s32.totalorder %s571, %s573
    %p577 = scmp.eq.s32.totalorder %s35, 0
    %p578 = por %p576, %p577
    %p579 = scmp.ne.s32.totalorder %s571, %s573
    %p580 = scmp.eq.s32.totalorder %s40, 1
    %p581 = por %p579, %p580
    %p582 = scmp.ne.s32.totalorder %s573, %s574
    %p583 = scmp.eq.s32.totalorder %s40, 0
    %p584 = por %p582, %p583
    %p585 = scmp.ne.s32.totalorder %s573, %s574
    %p586 = scmp.eq.s32.totalorder %s41, 1
    %p587 = por %p585, %p586
    %p589 = scmp.ne.s32.totalorder %s574, %s588
    %p590 = scmp.eq.s32.totalorder %s41, 0
    %p591 = por %p589, %p590
    %s593 = sadd.s32 %s592, 1
    %p596 = scmp.eq.s32.totalorder %s35, 1
    %p597 = scmp.ne.s32.totalorder %s592, %s594
    %p598 = scmp.eq.s32.totalorder %s35, 0
    %p599 = por %p597, %p598
    %p600 = scmp.ne.s32.totalorder %s592, %s594
    %p601 = scmp.eq.s32.totalorder %s40, 1
    %p602 = por %p600, %p601
    %p603 = scmp.ne.s32.totalorder %s594, %s595
    %p604 = scmp.eq.s32.totalorder %s40, 0
    %p605 = por %p603, %p604
    %p606 = scmp.ne.s32.totalorder %s594, %s595
    %p607 = scmp.eq.s32.totalorder %s41, 1
    %p608 = por %p606, %p607
    %p610 = scmp.ne.s32.totalorder %s595, %s609
    %p611 = scmp.eq.s32.totalorder %s41, 0
    %p612 = por %p610, %p611
    %s614 = sadd.s32 %s613, 1
    %p617 = scmp.eq.s32.totalorder %s35, 1
    %p618 = scmp.ne.s32.totalorder %s613, %s615
    %p619 = scmp.eq.s32.totalorder %s35, 0
    %p620 = por %p618, %p619
    %p621 = scmp.ne.s32.totalorder %s613, %s615
    %p622 = scmp.eq.s32.totalorder %s40, 1
    %p623 = por %p621, %p622
    %p624 = scmp.ne.s32.totalorder %s615, %s616
    %p625 = scmp.eq.s32.totalorder %s40, 0
    %p626 = por %p624, %p625
    %p627 = scmp.ne.s32.totalorder %s615, %s616
    %p628 = scmp.eq.s32.totalorder %s41, 1
    %p629 = por %p627, %p628
    %p631 = scmp.ne.s32.totalorder %s616, %s630
    %p632 = scmp.eq.s32.totalorder %s41, 0
    %p633 = por %p631, %p632
    %s635 = sadd.s32 %s634, 1
    %p638 = scmp.eq.s32.totalorder %s35, 1
    %p639 = scmp.ne.s32.totalorder %s634, %s636
    %p640 = scmp.eq.s32.totalorder %s35, 0
    %p641 = por %p639, %p640
    %p642 = scmp.ne.s32.totalorder %s634, %s636
    %p643 = scmp.eq.s32.totalorder %s40, 1
    %p644 = por %p642, %p643
    %p645 = scmp.ne.s32.totalorder %s636, %s637
    %p646 = scmp.eq.s32.totalorder %s40, 0
    %p647 = por %p645, %p646
    %p648 = scmp.ne.s32.totalorder %s636, %s637
    %p649 = scmp.eq.s32.totalorder %s41, 1
    %p650 = por %p648, %p649
    %p652 = scmp.ne.s32.totalorder %s637, %s651
    %p653 = scmp.eq.s32.totalorder %s41, 0
    %p654 = por %p652, %p653
    %s655 = ssub.s32 %s35, %s42
    %p656 = scmp.eq.s32.totalorder %s655, 0
    %s658 = sadd.s32 %s657, 1
    %s659 = scalar_select %p656, %s657, %s658
    %p662 = pneg %p656
    %p663 = scmp.eq.s32.totalorder %s35, 1
    %p664 = por %p662, %p663
    %p665 = scmp.ne.s32.totalorder %s657, %s660
    %p666 = scmp.eq.s32.totalorder %s35, 0
    %p667 = por %p665, %p666
    %p668 = scmp.ne.s32.totalorder %s657, %s660
    %p669 = scmp.eq.s32.totalorder %s40, 1
    %p670 = por %p668, %p669
    %p671 = scmp.ne.s32.totalorder %s660, %s661
    %p672 = scmp.eq.s32.totalorder %s40, 0
    %p673 = por %p671, %p672
    %p674 = scmp.ne.s32.totalorder %s660, %s661
    %p675 = scmp.eq.s32.totalorder %s41, 1
    %p676 = por %p674, %p675
    %p678 = scmp.ne.s32.totalorder %s661, %s677
    %p679 = scmp.eq.s32.totalorder %s41, 0
    %p680 = por %p678, %p679
    %p681 = scmp.le.s32.totalorder 1, %s35
    %p682 = scmp.lt.s32.totalorder %s35, 3
    %p683 = pnand %p681, %p682
    %p684 = pneg %p683
    // Predicated region
    $region9: #{set_conv_forward.1} parent=5 // pred_check
      _
    $region10: #{set_conv_forward.1} parent=5 // pred_check_branch
      %686 = sbr.rel (%p683) target = $region12
    $region11: #{set_conv_forward.1} parent=5 // pred_region
      %s687 = ssub.s32 %s35, 1
      // Predicated region
      $region13: #{set_conv_forward.1} parent=11 // pred_check
        %p688 = pneg %p290
      $region14: #{set_conv_forward.1} parent=11 // pred_check_branch
        %690 = sbr.rel (%p688) target = $region16
      $region15: #{set_conv_forward.1} parent=11 // pred_region
        _
      $region16: #{set_conv_forward.1} parent=11 // pred_fallthru
        _
      // Predicated region
      $region17: #{set_conv_forward.1} parent=11 // pred_check
        %p691 = pneg %p311
      $region18: #{set_conv_forward.1} parent=11 // pred_check_branch
        %693 = sbr.rel (%p691) target = $region20
      $region19: #{set_conv_forward.1} parent=11 // pred_region
        _
      $region20: #{set_conv_forward.1} parent=11 // pred_fallthru
        _
      // Predicated region
      $region21: #{set_conv_forward.1} parent=11 // pred_check
        %p694 = pneg %p332
      $region22: #{set_conv_forward.1} parent=11 // pred_check_branch
        %696 = sbr.rel (%p694) target = $region24
      $region23: #{set_conv_forward.1} parent=11 // pred_region
        _
      $region24: #{set_conv_forward.1} parent=11 // pred_fallthru
        _
      // Predicated region
      $region25: #{set_conv_forward.1} parent=11 // pred_check
        %p697 = pneg %p353
      $region26: #{set_conv_forward.1} parent=11 // pred_check_branch
        %699 = sbr.rel (%p697) target = $region28
      $region27: #{set_conv_forward.1} parent=11 // pred_region
        _
      $region28: #{set_conv_forward.1} parent=11 // pred_fallthru
        _
      // Predicated region
      $region29: #{set_conv_forward.1} parent=11 // pred_check
        %p700 = pneg %p374
      $region30: #{set_conv_forward.1} parent=11 // pred_check_branch
        %702 = sbr.rel (%p700) target = $region32
      $region31: #{set_conv_forward.1} parent=11 // pred_region
        _
      $region32: #{set_conv_forward.1} parent=11 // pred_fallthru
        _
      // Predicated region
      $region33: #{set_conv_forward.1} parent=11 // pred_check
        %p703 = pneg %p395
      $region34: #{set_conv_forward.1} parent=11 // pred_check_branch
        %705 = sbr.rel (%p703) target = $region36
      $region35: #{set_conv_forward.1} parent=11 // pred_region
        _
      $region36: #{set_conv_forward.1} parent=11 // pred_fallthru
        _
      // Predicated region
      $region37: #{set_conv_forward.1} parent=11 // pred_check
        %p706 = pneg %p416
      $region38: #{set_conv_forward.1} parent=11 // pred_check_branch
        %708 = sbr.rel (%p706) target = $region40
      $region39: #{set_conv_forward.1} parent=11 // pred_region
        _
      $region40: #{set_conv_forward.1} parent=11 // pred_fallthru
        _
      // Predicated region
      $region41: #{set_conv_forward.1} parent=11 // pred_check
        %p709 = pneg %p437
      $region42: #{set_conv_forward.1} parent=11 // pred_check_branch
        %711 = sbr.rel (%p709) target = $region44
      $region43: #{set_conv_forward.1} parent=11 // pred_region
        _
      $region44: #{set_conv_forward.1} parent=11 // pred_fallthru
        _
      // Predicated region
      $region45: #{set_conv_forward.1} parent=11 // pred_check
        %p712 = pneg %p458
      $region46: #{set_conv_forward.1} parent=11 // pred_check_branch
        %714 = sbr.rel (%p712) target = $region48
      $region47: #{set_conv_forward.1} parent=11 // pred_region
        _
      $region48: #{set_conv_forward.1} parent=11 // pred_fallthru
        _
      // Predicated region
      $region49: #{set_conv_forward.1} parent=11 // pred_check
        %p715 = pneg %p479
      $region50: #{set_conv_forward.1} parent=11 // pred_check_branch
        %717 = sbr.rel (%p715) target = $region52
      $region51: #{set_conv_forward.1} parent=11 // pred_region
        _
      $region52: #{set_conv_forward.1} parent=11 // pred_fallthru
        _
      // Predicated region
      $region53: #{set_conv_forward.1} parent=11 // pred_check
        %p718 = pneg %p500
      $region54: #{set_conv_forward.1} parent=11 // pred_check_branch
        %720 = sbr.rel (%p718) target = $region56
      $region55: #{set_conv_forward.1} parent=11 // pred_region
        _
      $region56: #{set_conv_forward.1} parent=11 // pred_fallthru
        _
      // Predicated region
      $region57: #{set_conv_forward.1} parent=11 // pred_check
        %p721 = pneg %p521
      $region58: #{set_conv_forward.1} parent=11 // pred_check_branch
        %723 = sbr.rel (%p721) target = $region60
      $region59: #{set_conv_forward.1} parent=11 // pred_region
        _
      $region60: #{set_conv_forward.1} parent=11 // pred_fallthru
        _
      // Predicated region
      $region61: #{set_conv_forward.1} parent=11 // pred_check
        %p724 = pneg %p542
      $region62: #{set_conv_forward.1} parent=11 // pred_check_branch
        %726 = sbr.rel (%p724) target = $region64
      $region63: #{set_conv_forward.1} parent=11 // pred_region
        _
      $region64: #{set_conv_forward.1} parent=11 // pred_fallthru
        _
      // Predicated region
      $region65: #{set_conv_forward.1} parent=11 // pred_check
        %p727 = pneg %p563
      $region66: #{set_conv_forward.1} parent=11 // pred_check_branch
        %729 = sbr.rel (%p727) target = $region68
      $region67: #{set_conv_forward.1} parent=11 // pred_region
        _
      $region68: #{set_conv_forward.1} parent=11 // pred_fallthru
        _
      // Predicated region
      $region69: #{set_conv_forward.1} parent=11 // pred_check
        %p730 = pneg %p584
      $region70: #{set_conv_forward.1} parent=11 // pred_check_branch
        %732 = sbr.rel (%p730) target = $region72
      $region71: #{set_conv_forward.1} parent=11 // pred_region
        _
      $region72: #{set_conv_forward.1} parent=11 // pred_fallthru
        _
      // Predicated region
      $region73: #{set_conv_forward.1} parent=11 // pred_check
        %p733 = pneg %p605
      $region74: #{set_conv_forward.1} parent=11 // pred_check_branch
        %735 = sbr.rel (%p733) target = $region76
      $region75: #{set_conv_forward.1} parent=11 // pred_region
        _
      $region76: #{set_conv_forward.1} parent=11 // pred_fallthru
        _
      // Predicated region
      $region77: #{set_conv_forward.1} parent=11 // pred_check
        %p736 = pneg %p626
      $region78: #{set_conv_forward.1} parent=11 // pred_check_branch
        %738 = sbr.rel (%p736) target = $region80
      $region79: #{set_conv_forward.1} parent=11 // pred_region
        _
      $region80: #{set_conv_forward.1} parent=11 // pred_fallthru
        _
      // Predicated region
      $region81: #{set_conv_forward.1} parent=11 // pred_check
        %p739 = pneg %p647
      $region82: #{set_conv_forward.1} parent=11 // pred_check_branch
        %741 = sbr.rel (%p739) target = $region84
      $region83: #{set_conv_forward.1} parent=11 // pred_region
        _
      $region84: #{set_conv_forward.1} parent=11 // pred_fallthru
        _
    $region12: #{set_conv_forward.1} parent=5 // pred_fallthru
      _
    %p742 = scmp.lt.s32.totalorder %s35, 2
    // Predicated region
    $region85: #{set_conv_forward.1} parent=5 // pred_check
      %p743 = pneg %p742
    $region86: #{set_conv_forward.1} parent=5 // pred_check_branch
      %745 = sbr.rel (%p743) target = $region88
    $region87: #{set_conv_forward.1} parent=5 // pred_region
      // Predicated region
      $region89: #{set_conv_forward.1} parent=87 // pred_check
        %p746 = pneg %p55
      $region90: #{set_conv_forward.1} parent=87 // pred_check_branch
        %748 = sbr.rel (%p746) target = $region92
      $region91: #{set_conv_forward.1} parent=87 // pred_region
        %s749 = smul.u32 32, %s35
        %p750 = scmp.lt.s32.totalorder %s749, 63
        %s751 = scalar_select %p750, %s749, 63
        %s752 = smul.addr %s751, 8
        %s753 = scalar_lea.vmem %s0, %s752
        %s754 = smul.u32 32, %s35
      $region92: #{set_conv_forward.1} parent=87 // pred_fallthru
        _
      // Predicated region
      $region93: #{set_conv_forward.1} parent=87 // pred_check
        %p755 = pneg %p81
      $region94: #{set_conv_forward.1} parent=87 // pred_check_branch
        %757 = sbr.rel (%p755) target = $region96
      $region95: #{set_conv_forward.1} parent=87 // pred_region
        %s758 = smul.u32 32, %s35
        %p759 = scmp.lt.s32.totalorder %s758, 63
        %s760 = scalar_select %p759, %s758, 63
        %s761 = smul.addr %s760, 8
        %s762 = scalar_lea.vmem %s1, %s761
        %s763 = smul.u32 32, %s35
      $region96: #{set_conv_forward.1} parent=87 // pred_fallthru
        _
      // Predicated region
      $region97: #{set_conv_forward.1} parent=87 // pred_check
        %p764 = pneg %p107
      $region98: #{set_conv_forward.1} parent=87 // pred_check_branch
        %766 = sbr.rel (%p764) target = $region100
      $region99: #{set_conv_forward.1} parent=87 // pred_region
        %s767 = smul.u32 4, %s35
        %p768 = scmp.lt.s32.totalorder %s767, 7
        %s769 = scalar_select %p768, %s767, 7
        %s770 = smul.addr %s769, 8
        %s771 = scalar_lea.vmem %s2, %s770
        %s772 = smul.u32 4, %s35
      $region100: #{set_conv_forward.1} parent=87 // pred_fallthru
        _
      // Predicated region
      $region101: #{set_conv_forward.1} parent=87 // pred_check
        %p773 = pneg %p133
      $region102: #{set_conv_forward.1} parent=87 // pred_check_branch
        %775 = sbr.rel (%p773) target = $region104
      $region103: #{set_conv_forward.1} parent=87 // pred_region
        %s776 = smul.u32 64, %s35
        %p777 = scmp.lt.s32.totalorder %s776, 127
        %s778 = scalar_select %p777, %s776, 127
        %s779 = smul.addr %s778, 8
        %s780 = scalar_lea.vmem %s3, %s779
        %s781 = smul.u32 64, %s35
      $region104: #{set_conv_forward.1} parent=87 // pred_fallthru
        _
      // Predicated region
      $region105: #{set_conv_forward.1} parent=87 // pred_check
        %p782 = pneg %p159
      $region106: #{set_conv_forward.1} parent=87 // pred_check_branch
        %784 = sbr.rel (%p782) target = $region108
      $region107: #{set_conv_forward.1} parent=87 // pred_region
        %s785 = smul.u32 64, %s35
        %p786 = scmp.lt.s32.totalorder %s785, 127
        %s787 = scalar_select %p786, %s785, 127
        %s788 = smul.addr %s787, 8
        %s789 = scalar_lea.vmem %s4, %s788
        %s790 = smul.u32 64, %s35
      $region108: #{set_conv_forward.1} parent=87 // pred_fallthru
        _
      // Predicated region
      $region109: #{set_conv_forward.1} parent=87 // pred_check
        %p791 = pneg %p185
      $region110: #{set_conv_forward.1} parent=87 // pred_check_branch
        %793 = sbr.rel (%p791) target = $region112
      $region111: #{set_conv_forward.1} parent=87 // pred_region
        %s794 = smul.u32 4, %s35
        %p795 = scmp.lt.s32.totalorder %s794, 7
        %s796 = scalar_select %p795, %s794, 7
        %s797 = smul.addr %s796, 8
        %s798 = scalar_lea.vmem %s5, %s797
        %s799 = smul.u32 4, %s35
      $region112: #{set_conv_forward.1} parent=87 // pred_fallthru
        _
      // Predicated region
      $region113: #{set_conv_forward.1} parent=87 // pred_check
        %p800 = pneg %p211
      $region114: #{set_conv_forward.1} parent=87 // pred_check_branch
        %802 = sbr.rel (%p800) target = $region116
      $region115: #{set_conv_forward.1} parent=87 // pred_region
        %s803 = smul.u32 32, %s35
        %p804 = scmp.lt.s32.totalorder %s803, 63
        %s805 = scalar_select %p804, %s803, 63
        %s806 = smul.addr %s805, 8
        %s807 = scalar_lea.vmem %s6, %s806
        %s808 = smul.u32 32, %s35
      $region116: #{set_conv_forward.1} parent=87 // pred_fallthru
        _
      // Predicated region
      $region117: #{set_conv_forward.1} parent=87 // pred_check
        %p809 = pneg %p237
      $region118: #{set_conv_forward.1} parent=87 // pred_check_branch
        %811 = sbr.rel (%p809) target = $region120
      $region119: #{set_conv_forward.1} parent=87 // pred_region
        %s812 = smul.u32 32, %s35
        %p813 = scmp.lt.s32.totalorder %s812, 63
        %s814 = scalar_select %p813, %s812, 63
        %s815 = smul.addr %s814, 8
        %s816 = scalar_lea.vmem %s7, %s815
        %s817 = smul.u32 32, %s35
      $region120: #{set_conv_forward.1} parent=87 // pred_fallthru
        _
      // Predicated region
      $region121: #{set_conv_forward.1} parent=87 // pred_check
        %p818 = pneg %p263
      $region122: #{set_conv_forward.1} parent=87 // pred_check_branch
        %820 = sbr.rel (%p818) target = $region124
      $region123: #{set_conv_forward.1} parent=87 // pred_region
        %s821 = smul.u32 4, %s35
        %p822 = scmp.lt.s32.totalorder %s821, 7
        %s823 = scalar_select %p822, %s821, 7
        %s824 = smul.addr %s823, 8
        %s825 = scalar_lea.vmem %s8, %s824
        %s826 = smul.u32 4, %s35
      $region124: #{set_conv_forward.1} parent=87 // pred_fallthru
        _
    $region88: #{set_conv_forward.1} parent=5 // pred_fallthru
      _
    %p827 = scmp.le.s32.totalorder 1, %s35
    %p828 = scmp.lt.s32.totalorder %s35, 3
    %p829 = pnand %p827, %p828
    %p830 = pneg %p829
    // Predicated region
    $region125: #{set_conv_forward.1} parent=5 // pred_check
      _
    $region126: #{set_conv_forward.1} parent=5 // pred_check_branch
      %832 = sbr.rel (%p829) target = $region128
    $region127: #{set_conv_forward.1} parent=5 // pred_region
      %s833 = ssub.s32 %s35, 1
      %s834 = smul.u32 32, %s40
      %p835 = scmp.lt.s32.totalorder %s834, 63
      %s836 = scalar_select %p835, %s834, 63
      %s837 = smul.addr %s836, 8
      %s838 = scalar_lea.vmem %s0, %s837
      %p839 = pneg %p61
      %p840 = pneg %p58
      %s841 = smul.u32 32, %s40
      %p842 = scmp.lt.s32.totalorder %s841, 63
      %s843 = scalar_select %p842, %s841, 63
      %s844 = smul.addr %s843, 8
      %s845 = scalar_lea.vmem %s1, %s844
      %p846 = pneg %p87
      %p847 = pneg %p84
      %s848 = smul.u32 4, %s40
      %p849 = scmp.lt.s32.totalorder %s848, 7
      %s850 = scalar_select %p849, %s848, 7
      %s851 = smul.addr %s850, 8
      %s852 = scalar_lea.vmem %s2, %s851
      %p853 = pneg %p113
      %p854 = pneg %p110
      %s855 = smul.u32 64, %s40
      %p856 = scmp.lt.s32.totalorder %s855, 127
      %s857 = scalar_select %p856, %s855, 127
      %s858 = smul.addr %s857, 8
      %s859 = scalar_lea.vmem %s3, %s858
      %p860 = pneg %p139
      %p861 = pneg %p136
      %s862 = smul.u32 64, %s40
      %p863 = scmp.lt.s32.totalorder %s862, 127
      %s864 = scalar_select %p863, %s862, 127
      %s865 = smul.addr %s864, 8
      %s866 = scalar_lea.vmem %s4, %s865
      %p867 = pneg %p165
      %p868 = pneg %p162
      %s869 = smul.u32 4, %s40
      %p870 = scmp.lt.s32.totalorder %s869, 7
      %s871 = scalar_select %p870, %s869, 7
      %s872 = smul.addr %s871, 8
      %s873 = scalar_lea.vmem %s5, %s872
      %p874 = pneg %p191
      %p875 = pneg %p188
      %s876 = smul.u32 32, %s40
      %p877 = scmp.lt.s32.totalorder %s876, 63
      %s878 = scalar_select %p877, %s876, 63
      %s879 = smul.addr %s878, 8
      %s880 = scalar_lea.vmem %s6, %s879
      %p881 = pneg %p217
      %p882 = pneg %p214
      %s883 = smul.u32 32, %s40
      %p884 = scmp.lt.s32.totalorder %s883, 63
      %s885 = scalar_select %p884, %s883, 63
      %s886 = smul.addr %s885, 8
      %s887 = scalar_lea.vmem %s7, %s886
      %p888 = pneg %p243
      %p889 = pneg %p240
      %s890 = smul.u32 4, %s40
      %p891 = scmp.lt.s32.totalorder %s890, 7
      %s892 = scalar_select %p891, %s890, 7
      %s893 = smul.addr %s892, 8
      %s894 = scalar_lea.vmem %s8, %s893
      %p895 = pneg %p269
      %p896 = pneg %p266
      %p897 = pneg %p290
      %p898 = pneg %p287
      %p899 = pneg %p311
      %p900 = pneg %p308
      %p901 = pneg %p332
      %p902 = pneg %p329
      %p903 = pneg %p353
      %p904 = pneg %p350
      %p905 = pneg %p374
      %p906 = pneg %p371
      %p907 = pneg %p395
      %p908 = pneg %p392
      %p909 = pneg %p416
      %p910 = pneg %p413
      %p911 = pneg %p437
      %p912 = pneg %p434
      %p913 = pneg %p458
      %p914 = pneg %p455
      %p915 = pneg %p479
      %p916 = pneg %p476
      %p917 = pneg %p500
      %p918 = pneg %p497
      %p919 = pneg %p521
      %p920 = pneg %p518
      %p921 = pneg %p542
      %p922 = pneg %p539
      %p923 = pneg %p563
      %p924 = pneg %p560
      %p925 = pneg %p584
      %p926 = pneg %p581
      %p927 = pneg %p605
      %p928 = pneg %p602
      %p929 = pneg %p626
      %p930 = pneg %p623
      %p931 = pneg %p647
      %p932 = pneg %p644
      %p933 = pneg %p673
      %p934 = pneg %p670
      %s935 = smul.u32 4, %s40
      %p936 = scmp.lt.s32.totalorder %s935, 7
      %s937 = scalar_select %p936, %s935, 7
      %s938 = smul.addr %s937, 8
      %s939 = scalar_lea.vmem %s27, %s938
      %s940 = smul.u32 32, %s40
      %p941 = scmp.lt.s32.totalorder %s940, 63
      %s942 = scalar_select %p941, %s940, 63
      %s943 = smul.addr %s942, 8
      %s944 = scalar_lea.vmem %s0, %s943
      %s945 = smul.u32 32, %s40
      %s946 = smul.u32 32, %s40
      %p947 = scmp.lt.s32.totalorder %s946, 63
      %s948 = scalar_select %p947, %s946, 63
      %s949 = smul.addr %s948, 8
      %s950 = scalar_lea.vmem %s1, %s949
      %s951 = smul.u32 32, %s40
      %s952 = smul.u32 4, %s40
      %p953 = scmp.lt.s32.totalorder %s952, 7
      %s954 = scalar_select %p953, %s952, 7
      %s955 = smul.addr %s954, 8
      %s956 = scalar_lea.vmem %s2, %s955
      %s957 = smul.u32 4, %s40
      %s958 = smul.u32 64, %s40
      %p959 = scmp.lt.s32.totalorder %s958, 127
      %s960 = scalar_select %p959, %s958, 127
      %s961 = smul.addr %s960, 8
      %s962 = scalar_lea.vmem %s3, %s961
      %s963 = smul.u32 64, %s40
      %s964 = smul.u32 64, %s40
      %p965 = scmp.lt.s32.totalorder %s964, 127
      %s966 = scalar_select %p965, %s964, 127
      %s967 = smul.addr %s966, 8
      %s968 = scalar_lea.vmem %s4, %s967
      %s969 = smul.u32 64, %s40
      %s970 = smul.u32 4, %s40
      %p971 = scmp.lt.s32.totalorder %s970, 7
      %s972 = scalar_select %p971, %s970, 7
      %s973 = smul.addr %s972, 8
      %s974 = scalar_lea.vmem %s5, %s973
      %s975 = smul.u32 4, %s40
      %s976 = smul.u32 32, %s40
      %p977 = scmp.lt.s32.totalorder %s976, 63
      %s978 = scalar_select %p977, %s976, 63
      %s979 = smul.addr %s978, 8
      %s980 = scalar_lea.vmem %s6, %s979
      %s981 = smul.u32 32, %s40
      %s982 = smul.u32 32, %s40
      %p983 = scmp.lt.s32.totalorder %s982, 63
      %s984 = scalar_select %p983, %s982, 63
      %s985 = smul.addr %s984, 8
      %s986 = scalar_lea.vmem %s7, %s985
      %s987 = smul.u32 32, %s40
      %s988 = smul.u32 4, %s40
      %p989 = scmp.lt.s32.totalorder %s988, 7
      %s990 = scalar_select %p989, %s988, 7
      %s991 = smul.addr %s990, 8
      %s992 = scalar_lea.vmem %s8, %s991
      %s993 = smul.u32 4, %s40
      %s994 = smul.u32 4, %s40
      %p995 = scmp.lt.s32.totalorder %s994, 7
      %s996 = scalar_select %p995, %s994, 7
      %s997 = smul.addr %s996, 8
      %s998 = scalar_lea.vmem %s27, %s997
      %s999 = smul.u32 4, %s40
      %v1000 = vld [vmem:[%s944] sm:$0xff]
      %v1001 = vld [vmem:[%s944 + $0x8] sm:$0xff]
      %v1002 = vld [vmem:[%s944 + $0x10] sm:$0xff]
      %v1003 = vld [vmem:[%s944 + $0x18] sm:$0xff]
      %v1004 = vld [vmem:[%s944 + $0x20] sm:$0xff]
      %v1005 = vld [vmem:[%s944 + $0x28] sm:$0xff]
      %v1006 = vld [vmem:[%s944 + $0x30] sm:$0xff]
      %v1007 = vld [vmem:[%s944 + $0x38] sm:$0xff]
      %v1008 = vld [vmem:[%s944 + $0x40] sm:$0xff]
      %v1009 = vld [vmem:[%s944 + $0x48] sm:$0xff]
      %v1010 = vld [vmem:[%s944 + $0x50] sm:$0xff]
      %v1011 = vld [vmem:[%s944 + $0x58] sm:$0xff]
      %v1012 = vld [vmem:[%s944 + $0x60] sm:$0xff]
      %v1013 = vld [vmem:[%s944 + $0x68] sm:$0xff]
      %v1014 = vld [vmem:[%s944 + $0x70] sm:$0xff]
      %v1015 = vld [vmem:[%s944 + $0x78] sm:$0xff]
      %v1016 = vld [vmem:[%s944 + $0x80] sm:$0xff]
      %v1017 = vld [vmem:[%s944 + $0x88] sm:$0xff]
      %v1018 = vld [vmem:[%s944 + $0x90] sm:$0xff]
      %v1019 = vld [vmem:[%s944 + $0x98] sm:$0xff]
      %v1020 = vld [vmem:[%s944 + $0xa0] sm:$0xff]
      %v1021 = vld [vmem:[%s944 + $0xa8] sm:$0xff]
      %v1022 = vld [vmem:[%s944 + $0xb0] sm:$0xff]
      %v1023 = vld [vmem:[%s944 + $0xb8] sm:$0xff]
      %v1024 = vld [vmem:[%s944 + $0xc0] sm:$0xff]
      %v1025 = vld [vmem:[%s944 + $0xc8] sm:$0xff]
      %v1026 = vld [vmem:[%s944 + $0xd0] sm:$0xff]
      %v1027 = vld [vmem:[%s944 + $0xd8] sm:$0xff]
      %v1028 = vld [vmem:[%s944 + $0xe0] sm:$0xff]
      %v1029 = vld [vmem:[%s944 + $0xe8] sm:$0xff]
      %v1030 = vld [vmem:[%s944 + $0xf0] sm:$0xff]
      %v1031 = vld [vmem:[%s944 + $0xf8] sm:$0xff]
      %v1032 = vld [vmem:[%s950] sm:$0xff]
      %v1033 = vld [vmem:[%s950 + $0x8] sm:$0xff]
      %v1034 = vld [vmem:[%s950 + $0x10] sm:$0xff]
      %v1035 = vld [vmem:[%s950 + $0x18] sm:$0xff]
      %v1036 = vld [vmem:[%s950 + $0x20] sm:$0xff]
      %v1037 = vld [vmem:[%s950 + $0x28] sm:$0xff]
      %v1038 = vld [vmem:[%s950 + $0x30] sm:$0xff]
      %v1039 = vld [vmem:[%s950 + $0x38] sm:$0xff]
      %v1040 = vld [vmem:[%s950 + $0x40] sm:$0xff]
      %v1041 = vld [vmem:[%s950 + $0x48] sm:$0xff]
      %v1042 = vld [vmem:[%s950 + $0x50] sm:$0xff]
      %v1043 = vld [vmem:[%s950 + $0x58] sm:$0xff]
      %v1044 = vld [vmem:[%s950 + $0x60] sm:$0xff]
      %v1045 = vld [vmem:[%s950 + $0x68] sm:$0xff]
      %v1046 = vld [vmem:[%s950 + $0x70] sm:$0xff]
      %v1047 = vld [vmem:[%s950 + $0x78] sm:$0xff]
      %v1048 = vld [vmem:[%s950 + $0x80] sm:$0xff]
      %v1049 = vld [vmem:[%s950 + $0x88] sm:$0xff]
      %v1050 = vld [vmem:[%s950 + $0x90] sm:$0xff]
      %v1051 = vld [vmem:[%s950 + $0x98] sm:$0xff]
      %v1052 = vld [vmem:[%s950 + $0xa0] sm:$0xff]
      %v1053 = vld [vmem:[%s950 + $0xa8] sm:$0xff]
      %v1054 = vld [vmem:[%s950 + $0xb0] sm:$0xff]
      %v1055 = vld [vmem:[%s950 + $0xb8] sm:$0xff]
      %v1056 = vld [vmem:[%s950 + $0xc0] sm:$0xff]
      %v1057 = vld [vmem:[%s950 + $0xc8] sm:$0xff]
      %v1058 = vld [vmem:[%s950 + $0xd0] sm:$0xff]
      %v1059 = vld [vmem:[%s950 + $0xd8] sm:$0xff]
      %v1060 = vld [vmem:[%s950 + $0xe0] sm:$0xff]
      %v1061 = vld [vmem:[%s950 + $0xe8] sm:$0xff]
      %v1062 = vld [vmem:[%s950 + $0xf0] sm:$0xff]
      %v1063 = vld [vmem:[%s950 + $0xf8] sm:$0xff]
      %v1064 = vld [vmem:[%s956] sm:$0xff]
      %v1065 = vld [vmem:[%s956 + $0x8] sm:$0xff]
      %v1066 = vld [vmem:[%s956 + $0x10] sm:$0xff]
      %v1067 = vld [vmem:[%s956 + $0x18] sm:$0xff]
      %v1068 = vld [vmem:[%s9] sm:$0xff]
      %v1069 = vld [vmem:[%s9 + $0x8] sm:$0xff]
      %v1070 = vld [vmem:[%s10] sm:$0x1]
      %v1072 = vperm.slane %v1070, 0
      %vm1074 = vcmask 130048
      %v1076 = vsel %vm1074, %v1000, 0
      %v1079 = vsel %vm1074, %v1001, 0
      %v1082 = vsel %vm1074, %v1002, 0
      %v1085 = vsel %vm1074, %v1003, 0
      %v1088 = vsel %vm1074, %v1004, 0
      %v1091 = vsel %vm1074, %v1005, 0
      %v1094 = vsel %vm1074, %v1006, 0
      %v1097 = vsel %vm1074, %v1007, 0
      %v1100 = vsel %vm1074, %v1008, 0
      %v1103 = vsel %vm1074, %v1009, 0
      %v1106 = vsel %vm1074, %v1010, 0
      %v1109 = vsel %vm1074, %v1011, 0
      %v1112 = vsel %vm1074, %v1012, 0
      %v1115 = vsel %vm1074, %v1013, 0
      %v1118 = vsel %vm1074, %v1014, 0
      %v1121 = vsel %vm1074, %v1015, 0
      %v1124 = vsel %vm1074, %v1016, 0
      %v1127 = vsel %vm1074, %v1017, 0
      %v1130 = vsel %vm1074, %v1018, 0
      %v1133 = vsel %vm1074, %v1019, 0
      %v1136 = vsel %vm1074, %v1020, 0
      %v1139 = vsel %vm1074, %v1021, 0
      %v1142 = vsel %vm1074, %v1022, 0
      %v1145 = vsel %vm1074, %v1023, 0
      %v1148 = vsel %vm1074, %v1024, 0
      %v1151 = vsel %vm1074, %v1025, 0
      %v1154 = vsel %vm1074, %v1026, 0
      %v1157 = vsel %vm1074, %v1027, 0
      %v1160 = vsel %vm1074, %v1028, 0
      %v1163 = vsel %vm1074, %v1029, 0
      %v1166 = vsel %vm1074, %v1030, 0
      %v1169 = vsel %vm1074, %v1031, 0
      %1171 = vmatpush.msra.mxu0 0.0
      %1172 = vmatpush.msra.mxu0 0.0
      %1173 = vmatpush.msra.mxu0 0.0
      %1174 = vmatpush.msra.mxu0 0.0
      %1175 = vmatpush.msra.mxu0 0.0
      %1176 = vmatpush.msra.mxu0 0.0
      %1177 = vmatpush.msra.mxu0 0.0
      %1178 = vmatpush.msra.mxu0 0.0
      %1179 = vmatpush.msra.mxu0 0.0
      %1180 = vmatpush.msra.mxu0 0.0
      %1181 = vmatpush.msra.mxu0 0.0
      %1182 = vmatpush.msra.mxu0 0.0
      %1183 = vmatpush.msra.mxu0 0.0
      %1184 = vmatpush.msra.mxu0 0.0
      %1185 = vmatpush.msra.mxu0 %v1069
      %1186 = vmatpush.msra.mxu0 %v1068
      %1187 = vmatmul.f32.gmra.mxu0 %v1076
      %v1188 = vpop.f32.mrf.mxu0
      %v1189 = vadd.f32 %v1072, %v1188
      %1190 = vmatmul.f32.gmra.mxu0 %v1079
      %v1191 = vpop.f32.mrf.mxu0
      %v1192 = vadd.f32 %v1072, %v1191
      %1193 = vmatmul.f32.gmra.mxu0 %v1082
      %v1194 = vpop.f32.mrf.mxu0
      %v1195 = vadd.f32 %v1072, %v1194
      %1196 = vmatmul.f32.gmra.mxu0 %v1085
      %v1197 = vpop.f32.mrf.mxu0
      %v1198 = vadd.f32 %v1072, %v1197
      %1199 = vmatmul.f32.gmra.mxu0 %v1088
      %v1200 = vpop.f32.mrf.mxu0
      %v1201 = vadd.f32 %v1072, %v1200
      %1202 = vmatmul.f32.gmra.mxu0 %v1091
      %v1203 = vpop.f32.mrf.mxu0
      %v1204 = vadd.f32 %v1072, %v1203
      %1205 = vmatmul.f32.gmra.mxu0 %v1094
      %v1206 = vpop.f32.mrf.mxu0
      %v1207 = vadd.f32 %v1072, %v1206
      %1208 = vmatmul.f32.gmra.mxu0 %v1097
      %v1209 = vpop.f32.mrf.mxu0
      %v1210 = vadd.f32 %v1072, %v1209
      %1211 = vmatmul.f32.gmra.mxu0 %v1100
      %v1212 = vpop.f32.mrf.mxu0
      %v1213 = vadd.f32 %v1072, %v1212
      %1214 = vmatmul.f32.gmra.mxu0 %v1103
      %v1215 = vpop.f32.mrf.mxu0
      %v1216 = vadd.f32 %v1072, %v1215
      %1217 = vmatmul.f32.gmra.mxu0 %v1106
      %v1218 = vpop.f32.mrf.mxu0
      %v1219 = vadd.f32 %v1072, %v1218
      %1220 = vmatmul.f32.gmra.mxu0 %v1109
      %v1221 = vpop.f32.mrf.mxu0
      %v1222 = vadd.f32 %v1072, %v1221
      %1223 = vmatmul.f32.gmra.mxu0 %v1112
      %v1224 = vpop.f32.mrf.mxu0
      %v1225 = vadd.f32 %v1072, %v1224
      %1226 = vmatmul.f32.gmra.mxu0 %v1115
      %v1227 = vpop.f32.mrf.mxu0
      %v1228 = vadd.f32 %v1072, %v1227
      %1229 = vmatmul.f32.gmra.mxu0 %v1118
      %v1230 = vpop.f32.mrf.mxu0
      %v1231 = vadd.f32 %v1072, %v1230
      %1232 = vmatmul.f32.gmra.mxu0 %v1121
      %v1233 = vpop.f32.mrf.mxu0
      %v1234 = vadd.f32 %v1072, %v1233
      %1235 = vmatmul.f32.gmra.mxu0 %v1124
      %v1236 = vpop.f32.mrf.mxu0
      %v1237 = vadd.f32 %v1072, %v1236
      %1238 = vmatmul.f32.gmra.mxu0 %v1127
      %v1239 = vpop.f32.mrf.mxu0
      %v1240 = vadd.f32 %v1072, %v1239
      %1241 = vmatmul.f32.gmra.mxu0 %v1130
      %v1242 = vpop.f32.mrf.mxu0
      %v1243 = vadd.f32 %v1072, %v1242
      %1244 = vmatmul.f32.gmra.mxu0 %v1133
      %v1245 = vpop.f32.mrf.mxu0
      %v1246 = vadd.f32 %v1072, %v1245
      %1247 = vmatmul.f32.gmra.mxu0 %v1136
      %v1248 = vpop.f32.mrf.mxu0
      %v1249 = vadd.f32 %v1072, %v1248
      %1250 = vmatmul.f32.gmra.mxu0 %v1139
      %v1251 = vpop.f32.mrf.mxu0
      %v1252 = vadd.f32 %v1072, %v1251
      %1253 = vmatmul.f32.gmra.mxu0 %v1142
      %v1254 = vpop.f32.mrf.mxu0
      %v1255 = vadd.f32 %v1072, %v1254
      %1256 = vmatmul.f32.gmra.mxu0 %v1145
      %v1257 = vpop.f32.mrf.mxu0
      %v1258 = vadd.f32 %v1072, %v1257
      %1259 = vmatmul.f32.gmra.mxu0 %v1148
      %v1260 = vpop.f32.mrf.mxu0
      %v1261 = vadd.f32 %v1072, %v1260
      %1262 = vmatmul.f32.gmra.mxu0 %v1151
      %v1263 = vpop.f32.mrf.mxu0
      %v1264 = vadd.f32 %v1072, %v1263
      %1265 = vmatmul.f32.gmra.mxu0 %v1154
      %v1266 = vpop.f32.mrf.mxu0
      %v1267 = vadd.f32 %v1072, %v1266
      %1268 = vmatmul.f32.gmra.mxu0 %v1157
      %v1269 = vpop.f32.mrf.mxu0
      %v1270 = vadd.f32 %v1072, %v1269
      %1271 = vmatmul.f32.gmra.mxu0 %v1160
      %v1272 = vpop.f32.mrf.mxu0
      %v1273 = vadd.f32 %v1072, %v1272
      %1274 = vmatmul.f32.gmra.mxu0 %v1163
      %v1275 = vpop.f32.mrf.mxu0
      %v1276 = vadd.f32 %v1072, %v1275
      %1277 = vmatmul.f32.gmra.mxu0 %v1166
      %v1278 = vpop.f32.mrf.mxu0
      %v1279 = vadd.f32 %v1072, %v1278
      %1280 = vmatmul.f32.gmra.mxu0 %v1169
      %v1281 = vpop.f32.mrf.mxu0
      %v1282 = vadd.f32 %v1072, %v1281
      %1283 = vdwg.mxu0
      %v1284 = vmax.f32 %v1189, 0.0
      %v1285 = vmax.f32 %v1192, 0.0
      %v1286 = vmax.f32 %v1195, 0.0
      %v1287 = vmax.f32 %v1198, 0.0
      %v1288 = vmax.f32 %v1201, 0.0
      %v1289 = vmax.f32 %v1204, 0.0
      %v1290 = vmax.f32 %v1207, 0.0
      %v1291 = vmax.f32 %v1210, 0.0
      %v1292 = vmax.f32 %v1213, 0.0
      %v1293 = vmax.f32 %v1216, 0.0
      %v1294 = vmax.f32 %v1219, 0.0
      %v1295 = vmax.f32 %v1222, 0.0
      %v1296 = vmax.f32 %v1225, 0.0
      %v1297 = vmax.f32 %v1228, 0.0
      %v1298 = vmax.f32 %v1231, 0.0
      %v1299 = vmax.f32 %v1234, 0.0
      %v1300 = vmax.f32 %v1237, 0.0
      %v1301 = vmax.f32 %v1240, 0.0
      %v1302 = vmax.f32 %v1243, 0.0
      %v1303 = vmax.f32 %v1246, 0.0
      %v1304 = vmax.f32 %v1249, 0.0
      %v1305 = vmax.f32 %v1252, 0.0
      %v1306 = vmax.f32 %v1255, 0.0
      %v1307 = vmax.f32 %v1258, 0.0
      %v1308 = vmax.f32 %v1261, 0.0
      %v1309 = vmax.f32 %v1264, 0.0
      %v1310 = vmax.f32 %v1267, 0.0
      %v1311 = vmax.f32 %v1270, 0.0
      %v1312 = vmax.f32 %v1273, 0.0
      %v1313 = vmax.f32 %v1276, 0.0
      %v1314 = vmax.f32 %v1279, 0.0
      %v1315 = vmax.f32 %v1282, 0.0
      %v1316 = vld [vmem:[%s11] sm:$0xff]
      %v1317 = vld [vmem:[%s11 + $0x8] sm:$0xff]
      %v1318 = vld [vmem:[%s11 + $0x10] sm:$0xff]
      %v1319 = vld [vmem:[%s11 + $0x18] sm:$0xff]
      %v1320 = vld [vmem:[%s12] sm:$0x1]
      %v1322 = vperm.slane %v1320, 0
      %vm1324 = vcmask 261120
      %v1326 = vsel %vm1324, %v1284, 0
      %v1329 = vsel %vm1324, %v1285, 0
      %v1332 = vsel %vm1324, %v1286, 0
      %v1335 = vsel %vm1324, %v1287, 0
      %v1338 = vsel %vm1324, %v1288, 0
      %v1341 = vsel %vm1324, %v1289, 0
      %v1344 = vsel %vm1324, %v1290, 0
      %v1347 = vsel %vm1324, %v1291, 0
      %v1350 = vsel %vm1324, %v1292, 0
      %v1353 = vsel %vm1324, %v1293, 0
      %v1356 = vsel %vm1324, %v1294, 0
      %v1359 = vsel %vm1324, %v1295, 0
      %v1362 = vsel %vm1324, %v1296, 0
      %v1365 = vsel %vm1324, %v1297, 0
      %v1368 = vsel %vm1324, %v1298, 0
      %v1371 = vsel %vm1324, %v1299, 0
      %v1374 = vsel %vm1324, %v1300, 0
      %v1377 = vsel %vm1324, %v1301, 0
      %v1380 = vsel %vm1324, %v1302, 0
      %v1383 = vsel %vm1324, %v1303, 0
      %v1386 = vsel %vm1324, %v1304, 0
      %v1389 = vsel %vm1324, %v1305, 0
      %v1392 = vsel %vm1324, %v1306, 0
      %v1395 = vsel %vm1324, %v1307, 0
      %v1398 = vsel %vm1324, %v1308, 0
      %v1401 = vsel %vm1324, %v1309, 0
      %v1404 = vsel %vm1324, %v1310, 0
      %v1407 = vsel %vm1324, %v1311, 0
      %v1410 = vsel %vm1324, %v1312, 0
      %v1413 = vsel %vm1324, %v1313, 0
      %v1416 = vsel %vm1324, %v1314, 0
      %v1419 = vsel %vm1324, %v1315, 0
      %1421 = vmatpush.msra.mxu0 0.0
      %1422 = vmatpush.msra.mxu0 0.0
      %1423 = vmatpush.msra.mxu0 0.0
      %1424 = vmatpush.msra.mxu0 0.0
      %1425 = vmatpush.msra.mxu0 0.0
      %1426 = vmatpush.msra.mxu0 0.0
      %1427 = vmatpush.msra.mxu0 0.0
      %1428 = vmatpush.msra.mxu0 0.0
      %1429 = vmatpush.msra.mxu0 0.0
      %1430 = vmatpush.msra.mxu0 0.0
      %1431 = vmatpush.msra.mxu0 0.0
      %1432 = vmatpush.msra.mxu0 0.0
      %1433 = vmatpush.msra.mxu0 %v1319
      %1434 = vmatpush.msra.mxu0 %v1318
      %1435 = vmatpush.msra.mxu0 %v1317
      %1436 = vmatpush.msra.mxu0 %v1316
      %1437 = vmatmul.f32.gmra.mxu0 %v1326
      %v1438 = vpop.f32.mrf.mxu0
      %v1439 = vadd.f32 %v1322, %v1438
      %1440 = vmatmul.f32.gmra.mxu0 %v1329
      %v1441 = vpop.f32.mrf.mxu0
      %v1442 = vadd.f32 %v1322, %v1441
      %1443 = vmatmul.f32.gmra.mxu0 %v1332
      %v1444 = vpop.f32.mrf.mxu0
      %v1445 = vadd.f32 %v1322, %v1444
      %1446 = vmatmul.f32.gmra.mxu0 %v1335
      %v1447 = vpop.f32.mrf.mxu0
      %v1448 = vadd.f32 %v1322, %v1447
      %1449 = vmatmul.f32.gmra.mxu0 %v1338
      %v1450 = vpop.f32.mrf.mxu0
      %v1451 = vadd.f32 %v1322, %v1450
      %1452 = vmatmul.f32.gmra.mxu0 %v1341
      %v1453 = vpop.f32.mrf.mxu0
      %v1454 = vadd.f32 %v1322, %v1453
      %1455 = vmatmul.f32.gmra.mxu0 %v1344
      %v1456 = vpop.f32.mrf.mxu0
      %v1457 = vadd.f32 %v1322, %v1456
      %1458 = vmatmul.f32.gmra.mxu0 %v1347
      %v1459 = vpop.f32.mrf.mxu0
      %v1460 = vadd.f32 %v1322, %v1459
      %1461 = vmatmul.f32.gmra.mxu0 %v1350
      %v1462 = vpop.f32.mrf.mxu0
      %v1463 = vadd.f32 %v1322, %v1462
      %1464 = vmatmul.f32.gmra.mxu0 %v1353
      %v1465 = vpop.f32.mrf.mxu0
      %v1466 = vadd.f32 %v1322, %v1465
      %1467 = vmatmul.f32.gmra.mxu0 %v1356
      %v1468 = vpop.f32.mrf.mxu0
      %v1469 = vadd.f32 %v1322, %v1468
      %1470 = vmatmul.f32.gmra.mxu0 %v1359
      %v1471 = vpop.f32.mrf.mxu0
      %v1472 = vadd.f32 %v1322, %v1471
      %1473 = vmatmul.f32.gmra.mxu0 %v1362
      %v1474 = vpop.f32.mrf.mxu0
      %v1475 = vadd.f32 %v1322, %v1474
      %1476 = vmatmul.f32.gmra.mxu0 %v1365
      %v1477 = vpop.f32.mrf.mxu0
      %v1478 = vadd.f32 %v1322, %v1477
      %1479 = vmatmul.f32.gmra.mxu0 %v1368
      %v1480 = vpop.f32.mrf.mxu0
      %v1481 = vadd.f32 %v1322, %v1480
      %1482 = vmatmul.f32.gmra.mxu0 %v1371
      %v1483 = vpop.f32.mrf.mxu0
      %v1484 = vadd.f32 %v1322, %v1483
      %1485 = vmatmul.f32.gmra.mxu0 %v1374
      %v1486 = vpop.f32.mrf.mxu0
      %v1487 = vadd.f32 %v1322, %v1486
      %1488 = vmatmul.f32.gmra.mxu0 %v1377
      %v1489 = vpop.f32.mrf.mxu0
      %v1490 = vadd.f32 %v1322, %v1489
      %1491 = vmatmul.f32.gmra.mxu0 %v1380
      %v1492 = vpop.f32.mrf.mxu0
      %v1493 = vadd.f32 %v1322, %v1492
      %1494 = vmatmul.f32.gmra.mxu0 %v1383
      %v1495 = vpop.f32.mrf.mxu0
      %v1496 = vadd.f32 %v1322, %v1495
      %1497 = vmatmul.f32.gmra.mxu0 %v1386
      %v1498 = vpop.f32.mrf.mxu0
      %v1499 = vadd.f32 %v1322, %v1498
      %1500 = vmatmul.f32.gmra.mxu0 %v1389
      %v1501 = vpop.f32.mrf.mxu0
      %v1502 = vadd.f32 %v1322, %v1501
      %1503 = vmatmul.f32.gmra.mxu0 %v1392
      %v1504 = vpop.f32.mrf.mxu0
      %v1505 = vadd.f32 %v1322, %v1504
      %1506 = vmatmul.f32.gmra.mxu0 %v1395
      %v1507 = vpop.f32.mrf.mxu0
      %v1508 = vadd.f32 %v1322, %v1507
      %1509 = vmatmul.f32.gmra.mxu0 %v1398
      %v1510 = vpop.f32.mrf.mxu0
      %v1511 = vadd.f32 %v1322, %v1510
      %1512 = vmatmul.f32.gmra.mxu0 %v1401
      %v1513 = vpop.f32.mrf.mxu0
      %v1514 = vadd.f32 %v1322, %v1513
      %1515 = vmatmul.f32.gmra.mxu0 %v1404
      %v1516 = vpop.f32.mrf.mxu0
      %v1517 = vadd.f32 %v1322, %v1516
      %1518 = vmatmul.f32.gmra.mxu0 %v1407
      %v1519 = vpop.f32.mrf.mxu0
      %v1520 = vadd.f32 %v1322, %v1519
      %1521 = vmatmul.f32.gmra.mxu0 %v1410
      %v1522 = vpop.f32.mrf.mxu0
      %v1523 = vadd.f32 %v1322, %v1522
      %1524 = vmatmul.f32.gmra.mxu0 %v1413
      %v1525 = vpop.f32.mrf.mxu0
      %v1526 = vadd.f32 %v1322, %v1525
      %1527 = vmatmul.f32.gmra.mxu0 %v1416
      %v1528 = vpop.f32.mrf.mxu0
      %v1529 = vadd.f32 %v1322, %v1528
      %1530 = vmatmul.f32.gmra.mxu0 %v1419
      %v1531 = vpop.f32.mrf.mxu0
      %v1532 = vadd.f32 %v1322, %v1531
      %1533 = vdwg.mxu0
      %v1534 = vmax.f32 %v1439, 0.0
      %v1535 = vmax.f32 %v1442, 0.0
      %v1536 = vmax.f32 %v1445, 0.0
      %v1537 = vmax.f32 %v1448, 0.0
      %v1538 = vmax.f32 %v1451, 0.0
      %v1539 = vmax.f32 %v1454, 0.0
      %v1540 = vmax.f32 %v1457, 0.0
      %v1541 = vmax.f32 %v1460, 0.0
      %v1542 = vmax.f32 %v1463, 0.0
      %v1543 = vmax.f32 %v1466, 0.0
      %v1544 = vmax.f32 %v1469, 0.0
      %v1545 = vmax.f32 %v1472, 0.0
      %v1546 = vmax.f32 %v1475, 0.0
      %v1547 = vmax.f32 %v1478, 0.0
      %v1548 = vmax.f32 %v1481, 0.0
      %v1549 = vmax.f32 %v1484, 0.0
      %v1550 = vmax.f32 %v1487, 0.0
      %v1551 = vmax.f32 %v1490, 0.0
      %v1552 = vmax.f32 %v1493, 0.0
      %v1553 = vmax.f32 %v1496, 0.0
      %v1554 = vmax.f32 %v1499, 0.0
      %v1555 = vmax.f32 %v1502, 0.0
      %v1556 = vmax.f32 %v1505, 0.0
      %v1557 = vmax.f32 %v1508, 0.0
      %v1558 = vmax.f32 %v1511, 0.0
      %v1559 = vmax.f32 %v1514, 0.0
      %v1560 = vmax.f32 %v1517, 0.0
      %v1561 = vmax.f32 %v1520, 0.0
      %v1562 = vmax.f32 %v1523, 0.0
      %v1563 = vmax.f32 %v1526, 0.0
      %v1564 = vmax.f32 %v1529, 0.0
      %v1565 = vmax.f32 %v1532, 0.0
      %1567 = vset.pattern.permute.xlu0 0
      %1568 = vperm.xlu0 %1567, %v1032
      %v1569 = vpop.permute.xlu0 %1568
      %1572 = vset.pattern.permute.xlu0 0
      %1573 = vperm.xlu0 %1572, %v1033
      %v1574 = vpop.permute.xlu0 %1573
      %1577 = vset.pattern.permute.xlu0 0
      %1578 = vperm.xlu0 %1577, %v1034
      %v1579 = vpop.permute.xlu0 %1578
      %1582 = vset.pattern.permute.xlu0 0
      %1583 = vperm.xlu0 %1582, %v1035
      %v1584 = vpop.permute.xlu0 %1583
      %1587 = vset.pattern.permute.xlu0 0
      %1588 = vperm.xlu0 %1587, %v1036
      %v1589 = vpop.permute.xlu0 %1588
      %1592 = vset.pattern.permute.xlu0 0
      %1593 = vperm.xlu0 %1592, %v1037
      %v1594 = vpop.permute.xlu0 %1593
      %1597 = vset.pattern.permute.xlu0 0
      %1598 = vperm.xlu0 %1597, %v1038
      %v1599 = vpop.permute.xlu0 %1598
      %1602 = vset.pattern.permute.xlu0 0
      %1603 = vperm.xlu0 %1602, %v1039
      %v1604 = vpop.permute.xlu0 %1603
      %1607 = vset.pattern.permute.xlu0 0
      %1608 = vperm.xlu0 %1607, %v1040
      %v1609 = vpop.permute.xlu0 %1608
      %1612 = vset.pattern.permute.xlu0 0
      %1613 = vperm.xlu0 %1612, %v1041
      %v1614 = vpop.permute.xlu0 %1613
      %1617 = vset.pattern.permute.xlu0 0
      %1618 = vperm.xlu0 %1617, %v1042
      %v1619 = vpop.permute.xlu0 %1618
      %1622 = vset.pattern.permute.xlu0 0
      %1623 = vperm.xlu0 %1622, %v1043
      %v1624 = vpop.permute.xlu0 %1623
      %1627 = vset.pattern.permute.xlu0 0
      %1628 = vperm.xlu0 %1627, %v1044
      %v1629 = vpop.permute.xlu0 %1628
      %1632 = vset.pattern.permute.xlu0 0
      %1633 = vperm.xlu0 %1632, %v1045
      %v1634 = vpop.permute.xlu0 %1633
      %1637 = vset.pattern.permute.xlu0 0
      %1638 = vperm.xlu0 %1637, %v1046
      %v1639 = vpop.permute.xlu0 %1638
      %1642 = vset.pattern.permute.xlu0 0
      %1643 = vperm.xlu0 %1642, %v1047
      %v1644 = vpop.permute.xlu0 %1643
      %1647 = vset.pattern.permute.xlu0 0
      %1648 = vperm.xlu0 %1647, %v1048
      %v1649 = vpop.permute.xlu0 %1648
      %1652 = vset.pattern.permute.xlu0 0
      %1653 = vperm.xlu0 %1652, %v1049
      %v1654 = vpop.permute.xlu0 %1653
      %1657 = vset.pattern.permute.xlu0 0
      %1658 = vperm.xlu0 %1657, %v1050
      %v1659 = vpop.permute.xlu0 %1658
      %1662 = vset.pattern.permute.xlu0 0
      %1663 = vperm.xlu0 %1662, %v1051
      %v1664 = vpop.permute.xlu0 %1663
      %1667 = vset.pattern.permute.xlu0 0
      %1668 = vperm.xlu0 %1667, %v1052
      %v1669 = vpop.permute.xlu0 %1668
      %1672 = vset.pattern.permute.xlu0 0
      %1673 = vperm.xlu0 %1672, %v1053
      %v1674 = vpop.permute.xlu0 %1673
      %1677 = vset.pattern.permute.xlu0 0
      %1678 = vperm.xlu0 %1677, %v1054
      %v1679 = vpop.permute.xlu0 %1678
      %1682 = vset.pattern.permute.xlu0 0
      %1683 = vperm.xlu0 %1682, %v1055
      %v1684 = vpop.permute.xlu0 %1683
      %1687 = vset.pattern.permute.xlu0 0
      %1688 = vperm.xlu0 %1687, %v1056
      %v1689 = vpop.permute.xlu0 %1688
      %1692 = vset.pattern.permute.xlu0 0
      %1693 = vperm.xlu0 %1692, %v1057
      %v1694 = vpop.permute.xlu0 %1693
      %1697 = vset.pattern.permute.xlu0 0
      %1698 = vperm.xlu0 %1697, %v1058
      %v1699 = vpop.permute.xlu0 %1698
      %1702 = vset.pattern.permute.xlu0 0
      %1703 = vperm.xlu0 %1702, %v1059
      %v1704 = vpop.permute.xlu0 %1703
      %1707 = vset.pattern.permute.xlu0 0
      %1708 = vperm.xlu0 %1707, %v1060
      %v1709 = vpop.permute.xlu0 %1708
      %1712 = vset.pattern.permute.xlu0 0
      %1713 = vperm.xlu0 %1712, %v1061
      %v1714 = vpop.permute.xlu0 %1713
      %1717 = vset.pattern.permute.xlu0 0
      %1718 = vperm.xlu0 %1717, %v1062
      %v1719 = vpop.permute.xlu0 %1718
      %1722 = vset.pattern.permute.xlu0 0
      %1723 = vperm.xlu0 %1722, %v1063
      %v1724 = vpop.permute.xlu0 %1723
      %v1726 = vmul.f32 %v1534, %v1569
      %v1727 = vmul.f32 %v1535, %v1574
      %v1728 = vmul.f32 %v1536, %v1579
      %v1729 = vmul.f32 %v1537, %v1584
      %v1730 = vmul.f32 %v1538, %v1589
      %v1731 = vmul.f32 %v1539, %v1594
      %v1732 = vmul.f32 %v1540, %v1599
      %v1733 = vmul.f32 %v1541, %v1604
      %v1734 = vmul.f32 %v1542, %v1609
      %v1735 = vmul.f32 %v1543, %v1614
      %v1736 = vmul.f32 %v1544, %v1619
      %v1737 = vmul.f32 %v1545, %v1624
      %v1738 = vmul.f32 %v1546, %v1629
      %v1739 = vmul.f32 %v1547, %v1634
      %v1740 = vmul.f32 %v1548, %v1639
      %v1741 = vmul.f32 %v1549, %v1644
      %v1742 = vmul.f32 %v1550, %v1649
      %v1743 = vmul.f32 %v1551, %v1654
      %v1744 = vmul.f32 %v1552, %v1659
      %v1745 = vmul.f32 %v1553, %v1664
      %v1746 = vmul.f32 %v1554, %v1669
      %v1747 = vmul.f32 %v1555, %v1674
      %v1748 = vmul.f32 %v1556, %v1679
      %v1749 = vmul.f32 %v1557, %v1684
      %v1750 = vmul.f32 %v1558, %v1689
      %v1751 = vmul.f32 %v1559, %v1694
      %v1752 = vmul.f32 %v1560, %v1699
      %v1753 = vmul.f32 %v1561, %v1704
      %v1754 = vmul.f32 %v1562, %v1709
      %v1755 = vmul.f32 %v1563, %v1714
      %v1756 = vmul.f32 %v1564, %v1719
      %v1757 = vmul.f32 %v1565, %v1724
      %v1758 = vsel %vm1324, %v1726, 0.0
      %v1759 = vrot.slane %v1758, 4
      %v1760 = vadd.f32 %v1758, %v1759
      %v1761 = vrot.slane %v1760, 2
      %v1762 = vadd.f32 %v1760, %v1761
      %v1763 = vrot.slane %v1762, 1
      %v1764 = vadd.f32 %v1762, %v1763
      %v1765 = vsel %vm1324, %v1727, 0.0
      %v1766 = vrot.slane %v1765, 4
      %v1767 = vadd.f32 %v1765, %v1766
      %v1768 = vrot.slane %v1767, 2
      %v1769 = vadd.f32 %v1767, %v1768
      %v1770 = vrot.slane %v1769, 1
      %v1771 = vadd.f32 %v1769, %v1770
      %v1772 = vsel %vm1324, %v1728, 0.0
      %v1773 = vrot.slane %v1772, 4
      %v1774 = vadd.f32 %v1772, %v1773
      %v1775 = vrot.slane %v1774, 2
      %v1776 = vadd.f32 %v1774, %v1775
      %v1777 = vrot.slane %v1776, 1
      %v1778 = vadd.f32 %v1776, %v1777
      %v1779 = vsel %vm1324, %v1729, 0.0
      %v1780 = vrot.slane %v1779, 4
      %v1781 = vadd.f32 %v1779, %v1780
      %v1782 = vrot.slane %v1781, 2
      %v1783 = vadd.f32 %v1781, %v1782
      %v1784 = vrot.slane %v1783, 1
      %v1785 = vadd.f32 %v1783, %v1784
      %v1786 = vsel %vm1324, %v1730, 0.0
      %v1787 = vrot.slane %v1786, 4
      %v1788 = vadd.f32 %v1786, %v1787
      %v1789 = vrot.slane %v1788, 2
      %v1790 = vadd.f32 %v1788, %v1789
      %v1791 = vrot.slane %v1790, 1
      %v1792 = vadd.f32 %v1790, %v1791
      %v1793 = vsel %vm1324, %v1731, 0.0
      %v1794 = vrot.slane %v1793, 4
      %v1795 = vadd.f32 %v1793, %v1794
      %v1796 = vrot.slane %v1795, 2
      %v1797 = vadd.f32 %v1795, %v1796
      %v1798 = vrot.slane %v1797, 1
      %v1799 = vadd.f32 %v1797, %v1798
      %v1800 = vsel %vm1324, %v1732, 0.0
      %v1801 = vrot.slane %v1800, 4
      %v1802 = vadd.f32 %v1800, %v1801
      %v1803 = vrot.slane %v1802, 2
      %v1804 = vadd.f32 %v1802, %v1803
      %v1805 = vrot.slane %v1804, 1
      %v1806 = vadd.f32 %v1804, %v1805
      %v1807 = vsel %vm1324, %v1733, 0.0
      %v1808 = vrot.slane %v1807, 4
      %v1809 = vadd.f32 %v1807, %v1808
      %v1810 = vrot.slane %v1809, 2
      %v1811 = vadd.f32 %v1809, %v1810
      %v1812 = vrot.slane %v1811, 1
      %v1813 = vadd.f32 %v1811, %v1812
      %v1814 = vsel %vm1324, %v1734, 0.0
      %v1815 = vrot.slane %v1814, 4
      %v1816 = vadd.f32 %v1814, %v1815
      %v1817 = vrot.slane %v1816, 2
      %v1818 = vadd.f32 %v1816, %v1817
      %v1819 = vrot.slane %v1818, 1
      %v1820 = vadd.f32 %v1818, %v1819
      %v1821 = vsel %vm1324, %v1735, 0.0
      %v1822 = vrot.slane %v1821, 4
      %v1823 = vadd.f32 %v1821, %v1822
      %v1824 = vrot.slane %v1823, 2
      %v1825 = vadd.f32 %v1823, %v1824
      %v1826 = vrot.slane %v1825, 1
      %v1827 = vadd.f32 %v1825, %v1826
      %v1828 = vsel %vm1324, %v1736, 0.0
      %v1829 = vrot.slane %v1828, 4
      %v1830 = vadd.f32 %v1828, %v1829
      %v1831 = vrot.slane %v1830, 2
      %v1832 = vadd.f32 %v1830, %v1831
      %v1833 = vrot.slane %v1832, 1
      %v1834 = vadd.f32 %v1832, %v1833
      %v1835 = vsel %vm1324, %v1737, 0.0
      %v1836 = vrot.slane %v1835, 4
      %v1837 = vadd.f32 %v1835, %v1836
      %v1838 = vrot.slane %v1837, 2
      %v1839 = vadd.f32 %v1837, %v1838
      %v1840 = vrot.slane %v1839, 1
      %v1841 = vadd.f32 %v1839, %v1840
      %v1842 = vsel %vm1324, %v1738, 0.0
      %v1843 = vrot.slane %v1842, 4
      %v1844 = vadd.f32 %v1842, %v1843
      %v1845 = vrot.slane %v1844, 2
      %v1846 = vadd.f32 %v1844, %v1845
      %v1847 = vrot.slane %v1846, 1
      %v1848 = vadd.f32 %v1846, %v1847
      %v1849 = vsel %vm1324, %v1739, 0.0
      %v1850 = vrot.slane %v1849, 4
      %v1851 = vadd.f32 %v1849, %v1850
      %v1852 = vrot.slane %v1851, 2
      %v1853 = vadd.f32 %v1851, %v1852
      %v1854 = vrot.slane %v1853, 1
      %v1855 = vadd.f32 %v1853, %v1854
      %v1856 = vsel %vm1324, %v1740, 0.0
      %v1857 = vrot.slane %v1856, 4
      %v1858 = vadd.f32 %v1856, %v1857
      %v1859 = vrot.slane %v1858, 2
      %v1860 = vadd.f32 %v1858, %v1859
      %v1861 = vrot.slane %v1860, 1
      %v1862 = vadd.f32 %v1860, %v1861
      %v1863 = vsel %vm1324, %v1741, 0.0
      %v1864 = vrot.slane %v1863, 4
      %v1865 = vadd.f32 %v1863, %v1864
      %v1866 = vrot.slane %v1865, 2
      %v1867 = vadd.f32 %v1865, %v1866
      %v1868 = vrot.slane %v1867, 1
      %v1869 = vadd.f32 %v1867, %v1868
      %v1870 = vsel %vm1324, %v1742, 0.0
      %v1871 = vrot.slane %v1870, 4
      %v1872 = vadd.f32 %v1870, %v1871
      %v1873 = vrot.slane %v1872, 2
      %v1874 = vadd.f32 %v1872, %v1873
      %v1875 = vrot.slane %v1874, 1
      %v1876 = vadd.f32 %v1874, %v1875
      %v1877 = vsel %vm1324, %v1743, 0.0
      %v1878 = vrot.slane %v1877, 4
      %v1879 = vadd.f32 %v1877, %v1878
      %v1880 = vrot.slane %v1879, 2
      %v1881 = vadd.f32 %v1879, %v1880
      %v1882 = vrot.slane %v1881, 1
      %v1883 = vadd.f32 %v1881, %v1882
      %v1884 = vsel %vm1324, %v1744, 0.0
      %v1885 = vrot.slane %v1884, 4
      %v1886 = vadd.f32 %v1884, %v1885
      %v1887 = vrot.slane %v1886, 2
      %v1888 = vadd.f32 %v1886, %v1887
      %v1889 = vrot.slane %v1888, 1
      %v1890 = vadd.f32 %v1888, %v1889
      %v1891 = vsel %vm1324, %v1745, 0.0
      %v1892 = vrot.slane %v1891, 4
      %v1893 = vadd.f32 %v1891, %v1892
      %v1894 = vrot.slane %v1893, 2
      %v1895 = vadd.f32 %v1893, %v1894
      %v1896 = vrot.slane %v1895, 1
      %v1897 = vadd.f32 %v1895, %v1896
      %v1898 = vsel %vm1324, %v1746, 0.0
      %v1899 = vrot.slane %v1898, 4
      %v1900 = vadd.f32 %v1898, %v1899
      %v1901 = vrot.slane %v1900, 2
      %v1902 = vadd.f32 %v1900, %v1901
      %v1903 = vrot.slane %v1902, 1
      %v1904 = vadd.f32 %v1902, %v1903
      %v1905 = vsel %vm1324, %v1747, 0.0
      %v1906 = vrot.slane %v1905, 4
      %v1907 = vadd.f32 %v1905, %v1906
      %v1908 = vrot.slane %v1907, 2
      %v1909 = vadd.f32 %v1907, %v1908
      %v1910 = vrot.slane %v1909, 1
      %v1911 = vadd.f32 %v1909, %v1910
      %v1912 = vsel %vm1324, %v1748, 0.0
      %v1913 = vrot.slane %v1912, 4
      %v1914 = vadd.f32 %v1912, %v1913
      %v1915 = vrot.slane %v1914, 2
      %v1916 = vadd.f32 %v1914, %v1915
      %v1917 = vrot.slane %v1916, 1
      %v1918 = vadd.f32 %v1916, %v1917
      %v1919 = vsel %vm1324, %v1749, 0.0
      %v1920 = vrot.slane %v1919, 4
      %v1921 = vadd.f32 %v1919, %v1920
      %v1922 = vrot.slane %v1921, 2
      %v1923 = vadd.f32 %v1921, %v1922
      %v1924 = vrot.slane %v1923, 1
      %v1925 = vadd.f32 %v1923, %v1924
      %v1926 = vsel %vm1324, %v1750, 0.0
      %v1927 = vrot.slane %v1926, 4
      %v1928 = vadd.f32 %v1926, %v1927
      %v1929 = vrot.slane %v1928, 2
      %v1930 = vadd.f32 %v1928, %v1929
      %v1931 = vrot.slane %v1930, 1
      %v1932 = vadd.f32 %v1930, %v1931
      %v1933 = vsel %vm1324, %v1751, 0.0
      %v1934 = vrot.slane %v1933, 4
      %v1935 = vadd.f32 %v1933, %v1934
      %v1936 = vrot.slane %v1935, 2
      %v1937 = vadd.f32 %v1935, %v1936
      %v1938 = vrot.slane %v1937, 1
      %v1939 = vadd.f32 %v1937, %v1938
      %v1940 = vsel %vm1324, %v1752, 0.0
      %v1941 = vrot.slane %v1940, 4
      %v1942 = vadd.f32 %v1940, %v1941
      %v1943 = vrot.slane %v1942, 2
      %v1944 = vadd.f32 %v1942, %v1943
      %v1945 = vrot.slane %v1944, 1
      %v1946 = vadd.f32 %v1944, %v1945
      %v1947 = vsel %vm1324, %v1753, 0.0
      %v1948 = vrot.slane %v1947, 4
      %v1949 = vadd.f32 %v1947, %v1948
      %v1950 = vrot.slane %v1949, 2
      %v1951 = vadd.f32 %v1949, %v1950
      %v1952 = vrot.slane %v1951, 1
      %v1953 = vadd.f32 %v1951, %v1952
      %v1954 = vsel %vm1324, %v1754, 0.0
      %v1955 = vrot.slane %v1954, 4
      %v1956 = vadd.f32 %v1954, %v1955
      %v1957 = vrot.slane %v1956, 2
      %v1958 = vadd.f32 %v1956, %v1957
      %v1959 = vrot.slane %v1958, 1
      %v1960 = vadd.f32 %v1958, %v1959
      %v1961 = vsel %vm1324, %v1755, 0.0
      %v1962 = vrot.slane %v1961, 4
      %v1963 = vadd.f32 %v1961, %v1962
      %v1964 = vrot.slane %v1963, 2
      %v1965 = vadd.f32 %v1963, %v1964
      %v1966 = vrot.slane %v1965, 1
      %v1967 = vadd.f32 %v1965, %v1966
      %v1968 = vsel %vm1324, %v1756, 0.0
      %v1969 = vrot.slane %v1968, 4
      %v1970 = vadd.f32 %v1968, %v1969
      %v1971 = vrot.slane %v1970, 2
      %v1972 = vadd.f32 %v1970, %v1971
      %v1973 = vrot.slane %v1972, 1
      %v1974 = vadd.f32 %v1972, %v1973
      %v1975 = vsel %vm1324, %v1757, 0.0
      %v1976 = vrot.slane %v1975, 4
      %v1977 = vadd.f32 %v1975, %v1976
      %v1978 = vrot.slane %v1977, 2
      %v1979 = vadd.f32 %v1977, %v1978
      %v1980 = vrot.slane %v1979, 1
      %v1981 = vadd.f32 %v1979, %v1980
      %v1982 = vrcp.pop %v1064
      %v1983 = vrcp.pop %v1065
      %v1984 = vrcp.pop %v1066
      %v1985 = vrcp.pop %v1067
      %1987 = vset.pattern.permute.xlu0 0
      %1988 = vperm.xlu0 %1987, %v1982
      %v1989 = vpop.permute.xlu0 %1988
      %1991 = vset.pattern.permute.xlu0 0
      %1992 = vperm.xlu0 %1991, %v1983
      %v1993 = vpop.permute.xlu0 %1992
      %1995 = vset.pattern.permute.xlu0 0
      %1996 = vperm.xlu0 %1995, %v1984
      %v1997 = vpop.permute.xlu0 %1996
      %1999 = vset.pattern.permute.xlu0 0
      %2000 = vperm.xlu0 %1999, %v1985
      %v2001 = vpop.permute.xlu0 %2000
      %v2002 = vrot.slane %v1989, 1
      %v2003 = vrot.slane %v1989, 2
      %v2004 = vrot.slane %v1989, 3
      %v2005 = vrot.slane %v1989, 4
      %v2006 = vrot.slane %v1989, 5
      %v2007 = vrot.slane %v1989, 6
      %v2008 = vrot.slane %v1989, 7
      %v2009 = vrot.slane %v1993, 1
      %v2010 = vrot.slane %v1993, 2
      %v2011 = vrot.slane %v1993, 3
      %v2012 = vrot.slane %v1993, 4
      %v2013 = vrot.slane %v1993, 5
      %v2014 = vrot.slane %v1993, 6
      %v2015 = vrot.slane %v1993, 7
      %v2016 = vrot.slane %v1997, 1
      %v2017 = vrot.slane %v1997, 2
      %v2018 = vrot.slane %v1997, 3
      %v2019 = vrot.slane %v1997, 4
      %v2020 = vrot.slane %v1997, 5
      %v2021 = vrot.slane %v1997, 6
      %v2022 = vrot.slane %v1997, 7
      %v2023 = vrot.slane %v2001, 1
      %v2024 = vrot.slane %v2001, 2
      %v2025 = vrot.slane %v2001, 3
      %v2026 = vrot.slane %v2001, 4
      %v2027 = vrot.slane %v2001, 5
      %v2028 = vrot.slane %v2001, 6
      %v2029 = vrot.slane %v2001, 7
      %v2062 = vmul.f32 %v1764, %v1989
      %v2063 = vmul.f32 %v1771, %v2002
      %v2064 = vmul.f32 %v1778, %v2003
      %v2065 = vmul.f32 %v1785, %v2004
      %v2066 = vmul.f32 %v1792, %v2005
      %v2067 = vmul.f32 %v1799, %v2006
      %v2068 = vmul.f32 %v1806, %v2007
      %v2069 = vmul.f32 %v1813, %v2008
      %v2070 = vmul.f32 %v1820, %v1993
      %v2071 = vmul.f32 %v1827, %v2009
      %v2072 = vmul.f32 %v1834, %v2010
      %v2073 = vmul.f32 %v1841, %v2011
      %v2074 = vmul.f32 %v1848, %v2012
      %v2075 = vmul.f32 %v1855, %v2013
      %v2076 = vmul.f32 %v1862, %v2014
      %v2077 = vmul.f32 %v1869, %v2015
      %v2078 = vmul.f32 %v1876, %v1997
      %v2079 = vmul.f32 %v1883, %v2016
      %v2080 = vmul.f32 %v1890, %v2017
      %v2081 = vmul.f32 %v1897, %v2018
      %v2082 = vmul.f32 %v1904, %v2019
      %v2083 = vmul.f32 %v1911, %v2020
      %v2084 = vmul.f32 %v1918, %v2021
      %v2085 = vmul.f32 %v1925, %v2022
      %v2086 = vmul.f32 %v1932, %v2001
      %v2087 = vmul.f32 %v1939, %v2023
      %v2088 = vmul.f32 %v1946, %v2024
      %v2089 = vmul.f32 %v1953, %v2025
      %v2090 = vmul.f32 %v1960, %v2026
      %v2091 = vmul.f32 %v1967, %v2027
      %v2092 = vmul.f32 %v1974, %v2028
      %v2093 = vmul.f32 %v1981, %v2029
      %v2094 = vld [vmem:[%s962] sm:$0xff]
      %v2095 = vld [vmem:[%s962 + $0x8] sm:$0xff]
      %v2096 = vld [vmem:[%s962 + $0x10] sm:$0xff]
      %v2097 = vld [vmem:[%s962 + $0x18] sm:$0xff]
      %v2098 = vld [vmem:[%s962 + $0x20] sm:$0xff]
      %v2099 = vld [vmem:[%s962 + $0x28] sm:$0xff]
      %v2100 = vld [vmem:[%s962 + $0x30] sm:$0xff]
      %v2101 = vld [vmem:[%s962 + $0x38] sm:$0xff]
      %v2102 = vld [vmem:[%s962 + $0x40] sm:$0xff]
      %v2103 = vld [vmem:[%s962 + $0x48] sm:$0xff]
      %v2104 = vld [vmem:[%s962 + $0x50] sm:$0xff]
      %v2105 = vld [vmem:[%s962 + $0x58] sm:$0xff]
      %v2106 = vld [vmem:[%s962 + $0x60] sm:$0xff]
      %v2107 = vld [vmem:[%s962 + $0x68] sm:$0xff]
      %v2108 = vld [vmem:[%s962 + $0x70] sm:$0xff]
      %v2109 = vld [vmem:[%s962 + $0x78] sm:$0xff]
      %v2110 = vld [vmem:[%s962 + $0x80] sm:$0xff]
      %v2111 = vld [vmem:[%s962 + $0x88] sm:$0xff]
      %v2112 = vld [vmem:[%s962 + $0x90] sm:$0xff]
      %v2113 = vld [vmem:[%s962 + $0x98] sm:$0xff]
      %v2114 = vld [vmem:[%s962 + $0xa0] sm:$0xff]
      %v2115 = vld [vmem:[%s962 + $0xa8] sm:$0xff]
      %v2116 = vld [vmem:[%s962 + $0xb0] sm:$0xff]
      %v2117 = vld [vmem:[%s962 + $0xb8] sm:$0xff]
      %v2118 = vld [vmem:[%s962 + $0xc0] sm:$0xff]
      %v2119 = vld [vmem:[%s962 + $0xc8] sm:$0xff]
      %v2120 = vld [vmem:[%s962 + $0xd0] sm:$0xff]
      %v2121 = vld [vmem:[%s962 + $0xd8] sm:$0xff]
      %v2122 = vld [vmem:[%s962 + $0xe0] sm:$0xff]
      %v2123 = vld [vmem:[%s962 + $0xe8] sm:$0xff]
      %v2124 = vld [vmem:[%s962 + $0xf0] sm:$0xff]
      %v2125 = vld [vmem:[%s962 + $0xf8] sm:$0xff]
      %v2126 = vld [vmem:[%s962 + $0x100] sm:$0xff]
      %v2127 = vld [vmem:[%s962 + $0x108] sm:$0xff]
      %v2128 = vld [vmem:[%s962 + $0x110] sm:$0xff]
      %v2129 = vld [vmem:[%s962 + $0x118] sm:$0xff]
      %v2130 = vld [vmem:[%s962 + $0x120] sm:$0xff]
      %v2131 = vld [vmem:[%s962 + $0x128] sm:$0xff]
      %v2132 = vld [vmem:[%s962 + $0x130] sm:$0xff]
      %v2133 = vld [vmem:[%s962 + $0x138] sm:$0xff]
      %v2134 = vld [vmem:[%s962 + $0x140] sm:$0xff]
      %v2135 = vld [vmem:[%s962 + $0x148] sm:$0xff]
      %v2136 = vld [vmem:[%s962 + $0x150] sm:$0xff]
      %v2137 = vld [vmem:[%s962 + $0x158] sm:$0xff]
      %v2138 = vld [vmem:[%s962 + $0x160] sm:$0xff]
      %v2139 = vld [vmem:[%s962 + $0x168] sm:$0xff]
      %v2140 = vld [vmem:[%s962 + $0x170] sm:$0xff]
      %v2141 = vld [vmem:[%s962 + $0x178] sm:$0xff]
      %v2142 = vld [vmem:[%s962 + $0x180] sm:$0xff]
      %v2143 = vld [vmem:[%s962 + $0x188] sm:$0xff]
      %v2144 = vld [vmem:[%s962 + $0x190] sm:$0xff]
      %v2145 = vld [vmem:[%s962 + $0x198] sm:$0xff]
      %v2146 = vld [vmem:[%s962 + $0x1a0] sm:$0xff]
      %v2147 = vld [vmem:[%s962 + $0x1a8] sm:$0xff]
      %v2148 = vld [vmem:[%s962 + $0x1b0] sm:$0xff]
      %v2149 = vld [vmem:[%s962 + $0x1b8] sm:$0xff]
      %v2150 = vld [vmem:[%s962 + $0x1c0] sm:$0xff]
      %v2151 = vld [vmem:[%s962 + $0x1c8] sm:$0xff]
      %v2152 = vld [vmem:[%s962 + $0x1d0] sm:$0xff]
      %v2153 = vld [vmem:[%s962 + $0x1d8] sm:$0xff]
      %v2154 = vld [vmem:[%s962 + $0x1e0] sm:$0xff]
      %v2155 = vld [vmem:[%s962 + $0x1e8] sm:$0xff]
      %v2156 = vld [vmem:[%s962 + $0x1f0] sm:$0xff]
      %v2157 = vld [vmem:[%s962 + $0x1f8] sm:$0xff]
      %v2158 = vld [vmem:[%s968] sm:$0xff]
      %v2159 = vld [vmem:[%s968 + $0x8] sm:$0xff]
      %v2160 = vld [vmem:[%s968 + $0x10] sm:$0xff]
      %v2161 = vld [vmem:[%s968 + $0x18] sm:$0xff]
      %v2162 = vld [vmem:[%s968 + $0x20] sm:$0xff]
      %v2163 = vld [vmem:[%s968 + $0x28] sm:$0xff]
      %v2164 = vld [vmem:[%s968 + $0x30] sm:$0xff]
      %v2165 = vld [vmem:[%s968 + $0x38] sm:$0xff]
      %v2166 = vld [vmem:[%s968 + $0x40] sm:$0xff]
      %v2167 = vld [vmem:[%s968 + $0x48] sm:$0xff]
      %v2168 = vld [vmem:[%s968 + $0x50] sm:$0xff]
      %v2169 = vld [vmem:[%s968 + $0x58] sm:$0xff]
      %v2170 = vld [vmem:[%s968 + $0x60] sm:$0xff]
      %v2171 = vld [vmem:[%s968 + $0x68] sm:$0xff]
      %v2172 = vld [vmem:[%s968 + $0x70] sm:$0xff]
      %v2173 = vld [vmem:[%s968 + $0x78] sm:$0xff]
      %v2174 = vld [vmem:[%s968 + $0x80] sm:$0xff]
      %v2175 = vld [vmem:[%s968 + $0x88] sm:$0xff]
      %v2176 = vld [vmem:[%s968 + $0x90] sm:$0xff]
      %v2177 = vld [vmem:[%s968 + $0x98] sm:$0xff]
      %v2178 = vld [vmem:[%s968 + $0xa0] sm:$0xff]
      %v2179 = vld [vmem:[%s968 + $0xa8] sm:$0xff]
      %v2180 = vld [vmem:[%s968 + $0xb0] sm:$0xff]
      %v2181 = vld [vmem:[%s968 + $0xb8] sm:$0xff]
      %v2182 = vld [vmem:[%s968 + $0xc0] sm:$0xff]
      %v2183 = vld [vmem:[%s968 + $0xc8] sm:$0xff]
      %v2184 = vld [vmem:[%s968 + $0xd0] sm:$0xff]
      %v2185 = vld [vmem:[%s968 + $0xd8] sm:$0xff]
      %v2186 = vld [vmem:[%s968 + $0xe0] sm:$0xff]
      %v2187 = vld [vmem:[%s968 + $0xe8] sm:$0xff]
      %v2188 = vld [vmem:[%s968 + $0xf0] sm:$0xff]
      %v2189 = vld [vmem:[%s968 + $0xf8] sm:$0xff]
      %v2190 = vld [vmem:[%s968 + $0x100] sm:$0xff]
      %v2191 = vld [vmem:[%s968 + $0x108] sm:$0xff]
      %v2192 = vld [vmem:[%s968 + $0x110] sm:$0xff]
      %v2193 = vld [vmem:[%s968 + $0x118] sm:$0xff]
      %v2194 = vld [vmem:[%s968 + $0x120] sm:$0xff]
      %v2195 = vld [vmem:[%s968 + $0x128] sm:$0xff]
      %v2196 = vld [vmem:[%s968 + $0x130] sm:$0xff]
      %v2197 = vld [vmem:[%s968 + $0x138] sm:$0xff]
      %v2198 = vld [vmem:[%s968 + $0x140] sm:$0xff]
      %v2199 = vld [vmem:[%s968 + $0x148] sm:$0xff]
      %v2200 = vld [vmem:[%s968 + $0x150] sm:$0xff]
      %v2201 = vld [vmem:[%s968 + $0x158] sm:$0xff]
      %v2202 = vld [vmem:[%s968 + $0x160] sm:$0xff]
      %v2203 = vld [vmem:[%s968 + $0x168] sm:$0xff]
      %v2204 = vld [vmem:[%s968 + $0x170] sm:$0xff]
      %v2205 = vld [vmem:[%s968 + $0x178] sm:$0xff]
      %v2206 = vld [vmem:[%s968 + $0x180] sm:$0xff]
      %v2207 = vld [vmem:[%s968 + $0x188] sm:$0xff]
      %v2208 = vld [vmem:[%s968 + $0x190] sm:$0xff]
      %v2209 = vld [vmem:[%s968 + $0x198] sm:$0xff]
      %v2210 = vld [vmem:[%s968 + $0x1a0] sm:$0xff]
      %v2211 = vld [vmem:[%s968 + $0x1a8] sm:$0xff]
      %v2212 = vld [vmem:[%s968 + $0x1b0] sm:$0xff]
      %v2213 = vld [vmem:[%s968 + $0x1b8] sm:$0xff]
      %v2214 = vld [vmem:[%s968 + $0x1c0] sm:$0xff]
      %v2215 = vld [vmem:[%s968 + $0x1c8] sm:$0xff]
      %v2216 = vld [vmem:[%s968 + $0x1d0] sm:$0xff]
      %v2217 = vld [vmem:[%s968 + $0x1d8] sm:$0xff]
      %v2218 = vld [vmem:[%s968 + $0x1e0] sm:$0xff]
      %v2219 = vld [vmem:[%s968 + $0x1e8] sm:$0xff]
      %v2220 = vld [vmem:[%s968 + $0x1f0] sm:$0xff]
      %v2221 = vld [vmem:[%s968 + $0x1f8] sm:$0xff]
      %v2222 = vld [vmem:[%s974] sm:$0xff]
      %v2223 = vld [vmem:[%s974 + $0x8] sm:$0xff]
      %v2224 = vld [vmem:[%s974 + $0x10] sm:$0xff]
      %v2225 = vld [vmem:[%s974 + $0x18] sm:$0xff]
      %v2226 = vld [vmem:[%s13] sm:$0xff]
      %v2227 = vld [vmem:[%s13 + $0x8] sm:$0xf]
      %v2228 = vld [vmem:[%s14] sm:$0x1]
      %v2230 = vperm.slane %v2228, 0
      %vm2232 = vcmask 97280
      %v2234 = vsel %vm2232, %v2094, 0
      %v2237 = vsel %vm2232, %v2095, 0
      %v2240 = vsel %vm2232, %v2096, 0
      %v2243 = vsel %vm2232, %v2097, 0
      %v2246 = vsel %vm2232, %v2098, 0
      %v2249 = vsel %vm2232, %v2099, 0
      %v2252 = vsel %vm2232, %v2100, 0
      %v2255 = vsel %vm2232, %v2101, 0
      %v2258 = vsel %vm2232, %v2102, 0
      %v2261 = vsel %vm2232, %v2103, 0
      %v2264 = vsel %vm2232, %v2104, 0
      %v2267 = vsel %vm2232, %v2105, 0
      %v2270 = vsel %vm2232, %v2106, 0
      %v2273 = vsel %vm2232, %v2107, 0
      %v2276 = vsel %vm2232, %v2108, 0
      %v2279 = vsel %vm2232, %v2109, 0
      %v2282 = vsel %vm2232, %v2110, 0
      %v2285 = vsel %vm2232, %v2111, 0
      %v2288 = vsel %vm2232, %v2112, 0
      %v2291 = vsel %vm2232, %v2113, 0
      %v2294 = vsel %vm2232, %v2114, 0
      %v2297 = vsel %vm2232, %v2115, 0
      %v2300 = vsel %vm2232, %v2116, 0
      %v2303 = vsel %vm2232, %v2117, 0
      %v2306 = vsel %vm2232, %v2118, 0
      %v2309 = vsel %vm2232, %v2119, 0
      %v2312 = vsel %vm2232, %v2120, 0
      %v2315 = vsel %vm2232, %v2121, 0
      %v2318 = vsel %vm2232, %v2122, 0
      %v2321 = vsel %vm2232, %v2123, 0
      %v2324 = vsel %vm2232, %v2124, 0
      %v2327 = vsel %vm2232, %v2125, 0
      %v2330 = vsel %vm2232, %v2126, 0
      %v2333 = vsel %vm2232, %v2127, 0
      %v2336 = vsel %vm2232, %v2128, 0
      %v2339 = vsel %vm2232, %v2129, 0
      %v2342 = vsel %vm2232, %v2130, 0
      %v2345 = vsel %vm2232, %v2131, 0
      %v2348 = vsel %vm2232, %v2132, 0
      %v2351 = vsel %vm2232, %v2133, 0
      %v2354 = vsel %vm2232, %v2134, 0
      %v2357 = vsel %vm2232, %v2135, 0
      %v2360 = vsel %vm2232, %v2136, 0
      %v2363 = vsel %vm2232, %v2137, 0
      %v2366 = vsel %vm2232, %v2138, 0
      %v2369 = vsel %vm2232, %v2139, 0
      %v2372 = vsel %vm2232, %v2140, 0
      %v2375 = vsel %vm2232, %v2141, 0
      %v2378 = vsel %vm2232, %v2142, 0
      %v2381 = vsel %vm2232, %v2143, 0
      %v2384 = vsel %vm2232, %v2144, 0
      %v2387 = vsel %vm2232, %v2145, 0
      %v2390 = vsel %vm2232, %v2146, 0
      %v2393 = vsel %vm2232, %v2147, 0
      %v2396 = vsel %vm2232, %v2148, 0
      %v2399 = vsel %vm2232, %v2149, 0
      %v2402 = vsel %vm2232, %v2150, 0
      %v2405 = vsel %vm2232, %v2151, 0
      %v2408 = vsel %vm2232, %v2152, 0
      %v2411 = vsel %vm2232, %v2153, 0
      %v2414 = vsel %vm2232, %v2154, 0
      %v2417 = vsel %vm2232, %v2155, 0
      %v2420 = vsel %vm2232, %v2156, 0
      %v2423 = vsel %vm2232, %v2157, 0
      %vm2425 = vcmask 1043456
      %v2427 = vsel %vm2425, %v2227, 0
      %2429 = vmatpush.msra.mxu0 0.0
      %2430 = vmatpush.msra.mxu0 0.0
      %2431 = vmatpush.msra.mxu0 0.0
      %2432 = vmatpush.msra.mxu0 0.0
      %2433 = vmatpush.msra.mxu0 0.0
      %2434 = vmatpush.msra.mxu0 0.0
      %2435 = vmatpush.msra.mxu0 0.0
      %2436 = vmatpush.msra.mxu0 0.0
      %2437 = vmatpush.msra.mxu0 0.0
      %2438 = vmatpush.msra.mxu0 0.0
      %2439 = vmatpush.msra.mxu0 0.0
      %2440 = vmatpush.msra.mxu0 0.0
      %2441 = vmatpush.msra.mxu0 0.0
      %2442 = vmatpush.msra.mxu0 0.0
      %2443 = vmatpush.msra.mxu0 %v2427
      %2444 = vmatpush.msra.mxu0 %v2226
      %2445 = vmatmul.f32.gmra.mxu0 %v2234
      %v2446 = vpop.f32.mrf.mxu0
      %v2447 = vadd.f32 %v2230, %v2446
      %2448 = vmatmul.f32.gmra.mxu0 %v2237
      %v2449 = vpop.f32.mrf.mxu0
      %v2450 = vadd.f32 %v2230, %v2449
      %2451 = vmatmul.f32.gmra.mxu0 %v2240
      %v2452 = vpop.f32.mrf.mxu0
      %v2453 = vadd.f32 %v2230, %v2452
      %2454 = vmatmul.f32.gmra.mxu0 %v2243
      %v2455 = vpop.f32.mrf.mxu0
      %v2456 = vadd.f32 %v2230, %v2455
      %2457 = vmatmul.f32.gmra.mxu0 %v2246
      %v2458 = vpop.f32.mrf.mxu0
      %v2459 = vadd.f32 %v2230, %v2458
      %2460 = vmatmul.f32.gmra.mxu0 %v2249
      %v2461 = vpop.f32.mrf.mxu0
      %v2462 = vadd.f32 %v2230, %v2461
      %2463 = vmatmul.f32.gmra.mxu0 %v2252
      %v2464 = vpop.f32.mrf.mxu0
      %v2465 = vadd.f32 %v2230, %v2464
      %2466 = vmatmul.f32.gmra.mxu0 %v2255
      %v2467 = vpop.f32.mrf.mxu0
      %v2468 = vadd.f32 %v2230, %v2467
      %2469 = vmatmul.f32.gmra.mxu0 %v2258
      %v2470 = vpop.f32.mrf.mxu0
      %v2471 = vadd.f32 %v2230, %v2470
      %2472 = vmatmul.f32.gmra.mxu0 %v2261
      %v2473 = vpop.f32.mrf.mxu0
      %v2474 = vadd.f32 %v2230, %v2473
      %2475 = vmatmul.f32.gmra.mxu0 %v2264
      %v2476 = vpop.f32.mrf.mxu0
      %v2477 = vadd.f32 %v2230, %v2476
      %2478 = vmatmul.f32.gmra.mxu0 %v2267
      %v2479 = vpop.f32.mrf.mxu0
      %v2480 = vadd.f32 %v2230, %v2479
      %2481 = vmatmul.f32.gmra.mxu0 %v2270
      %v2482 = vpop.f32.mrf.mxu0
      %v2483 = vadd.f32 %v2230, %v2482
      %2484 = vmatmul.f32.gmra.mxu0 %v2273
      %v2485 = vpop.f32.mrf.mxu0
      %v2486 = vadd.f32 %v2230, %v2485
      %2487 = vmatmul.f32.gmra.mxu0 %v2276
      %v2488 = vpop.f32.mrf.mxu0
      %v2489 = vadd.f32 %v2230, %v2488
      %2490 = vmatmul.f32.gmra.mxu0 %v2279
      %v2491 = vpop.f32.mrf.mxu0
      %v2492 = vadd.f32 %v2230, %v2491
      %2493 = vmatmul.f32.gmra.mxu0 %v2282
      %v2494 = vpop.f32.mrf.mxu0
      %v2495 = vadd.f32 %v2230, %v2494
      %2496 = vmatmul.f32.gmra.mxu0 %v2285
      %v2497 = vpop.f32.mrf.mxu0
      %v2498 = vadd.f32 %v2230, %v2497
      %2499 = vmatmul.f32.gmra.mxu0 %v2288
      %v2500 = vpop.f32.mrf.mxu0
      %v2501 = vadd.f32 %v2230, %v2500
      %2502 = vmatmul.f32.gmra.mxu0 %v2291
      %v2503 = vpop.f32.mrf.mxu0
      %v2504 = vadd.f32 %v2230, %v2503
      %2505 = vmatmul.f32.gmra.mxu0 %v2294
      %v2506 = vpop.f32.mrf.mxu0
      %v2507 = vadd.f32 %v2230, %v2506
      %2508 = vmatmul.f32.gmra.mxu0 %v2297
      %v2509 = vpop.f32.mrf.mxu0
      %v2510 = vadd.f32 %v2230, %v2509
      %2511 = vmatmul.f32.gmra.mxu0 %v2300
      %v2512 = vpop.f32.mrf.mxu0
      %v2513 = vadd.f32 %v2230, %v2512
      %2514 = vmatmul.f32.gmra.mxu0 %v2303
      %v2515 = vpop.f32.mrf.mxu0
      %v2516 = vadd.f32 %v2230, %v2515
      %2517 = vmatmul.f32.gmra.mxu0 %v2306
      %v2518 = vpop.f32.mrf.mxu0
      %v2519 = vadd.f32 %v2230, %v2518
      %2520 = vmatmul.f32.gmra.mxu0 %v2309
      %v2521 = vpop.f32.mrf.mxu0
      %v2522 = vadd.f32 %v2230, %v2521
      %2523 = vmatmul.f32.gmra.mxu0 %v2312
      %v2524 = vpop.f32.mrf.mxu0
      %v2525 = vadd.f32 %v2230, %v2524
      %2526 = vmatmul.f32.gmra.mxu0 %v2315
      %v2527 = vpop.f32.mrf.mxu0
      %v2528 = vadd.f32 %v2230, %v2527
      %2529 = vmatmul.f32.gmra.mxu0 %v2318
      %v2530 = vpop.f32.mrf.mxu0
      %v2531 = vadd.f32 %v2230, %v2530
      %2532 = vmatmul.f32.gmra.mxu0 %v2321
      %v2533 = vpop.f32.mrf.mxu0
      %v2534 = vadd.f32 %v2230, %v2533
      %2535 = vmatmul.f32.gmra.mxu0 %v2324
      %v2536 = vpop.f32.mrf.mxu0
      %v2537 = vadd.f32 %v2230, %v2536
      %2538 = vmatmul.f32.gmra.mxu0 %v2327
      %v2539 = vpop.f32.mrf.mxu0
      %v2540 = vadd.f32 %v2230, %v2539
      %2541 = vmatmul.f32.gmra.mxu0 %v2330
      %v2542 = vpop.f32.mrf.mxu0
      %v2543 = vadd.f32 %v2230, %v2542
      %2544 = vmatmul.f32.gmra.mxu0 %v2333
      %v2545 = vpop.f32.mrf.mxu0
      %v2546 = vadd.f32 %v2230, %v2545
      %2547 = vmatmul.f32.gmra.mxu0 %v2336
      %v2548 = vpop.f32.mrf.mxu0
      %v2549 = vadd.f32 %v2230, %v2548
      %2550 = vmatmul.f32.gmra.mxu0 %v2339
      %v2551 = vpop.f32.mrf.mxu0
      %v2552 = vadd.f32 %v2230, %v2551
      %2553 = vmatmul.f32.gmra.mxu0 %v2342
      %v2554 = vpop.f32.mrf.mxu0
      %v2555 = vadd.f32 %v2230, %v2554
      %2556 = vmatmul.f32.gmra.mxu0 %v2345
      %v2557 = vpop.f32.mrf.mxu0
      %v2558 = vadd.f32 %v2230, %v2557
      %2559 = vmatmul.f32.gmra.mxu0 %v2348
      %v2560 = vpop.f32.mrf.mxu0
      %v2561 = vadd.f32 %v2230, %v2560
      %2562 = vmatmul.f32.gmra.mxu0 %v2351
      %v2563 = vpop.f32.mrf.mxu0
      %v2564 = vadd.f32 %v2230, %v2563
      %2565 = vmatmul.f32.gmra.mxu0 %v2354
      %v2566 = vpop.f32.mrf.mxu0
      %v2567 = vadd.f32 %v2230, %v2566
      %2568 = vmatmul.f32.gmra.mxu0 %v2357
      %v2569 = vpop.f32.mrf.mxu0
      %v2570 = vadd.f32 %v2230, %v2569
      %2571 = vmatmul.f32.gmra.mxu0 %v2360
      %v2572 = vpop.f32.mrf.mxu0
      %v2573 = vadd.f32 %v2230, %v2572
      %2574 = vmatmul.f32.gmra.mxu0 %v2363
      %v2575 = vpop.f32.mrf.mxu0
      %v2576 = vadd.f32 %v2230, %v2575
      %2577 = vmatmul.f32.gmra.mxu0 %v2366
      %v2578 = vpop.f32.mrf.mxu0
      %v2579 = vadd.f32 %v2230, %v2578
      %2580 = vmatmul.f32.gmra.mxu0 %v2369
      %v2581 = vpop.f32.mrf.mxu0
      %v2582 = vadd.f32 %v2230, %v2581
      %2583 = vmatmul.f32.gmra.mxu0 %v2372
      %v2584 = vpop.f32.mrf.mxu0
      %v2585 = vadd.f32 %v2230, %v2584
      %2586 = vmatmul.f32.gmra.mxu0 %v2375
      %v2587 = vpop.f32.mrf.mxu0
      %v2588 = vadd.f32 %v2230, %v2587
      %2589 = vmatmul.f32.gmra.mxu0 %v2378
      %v2590 = vpop.f32.mrf.mxu0
      %v2591 = vadd.f32 %v2230, %v2590
      %2592 = vmatmul.f32.gmra.mxu0 %v2381
      %v2593 = vpop.f32.mrf.mxu0
      %v2594 = vadd.f32 %v2230, %v2593
      %2595 = vmatmul.f32.gmra.mxu0 %v2384
      %v2596 = vpop.f32.mrf.mxu0
      %v2597 = vadd.f32 %v2230, %v2596
      %2598 = vmatmul.f32.gmra.mxu0 %v2387
      %v2599 = vpop.f32.mrf.mxu0
      %v2600 = vadd.f32 %v2230, %v2599
      %2601 = vmatmul.f32.gmra.mxu0 %v2390
      %v2602 = vpop.f32.mrf.mxu0
      %v2603 = vadd.f32 %v2230, %v2602
      %2604 = vmatmul.f32.gmra.mxu0 %v2393
      %v2605 = vpop.f32.mrf.mxu0
      %v2606 = vadd.f32 %v2230, %v2605
      %2607 = vmatmul.f32.gmra.mxu0 %v2396
      %v2608 = vpop.f32.mrf.mxu0
      %v2609 = vadd.f32 %v2230, %v2608
      %2610 = vmatmul.f32.gmra.mxu0 %v2399
      %v2611 = vpop.f32.mrf.mxu0
      %v2612 = vadd.f32 %v2230, %v2611
      %2613 = vmatmul.f32.gmra.mxu0 %v2402
      %v2614 = vpop.f32.mrf.mxu0
      %v2615 = vadd.f32 %v2230, %v2614
      %2616 = vmatmul.f32.gmra.mxu0 %v2405
      %v2617 = vpop.f32.mrf.mxu0
      %v2618 = vadd.f32 %v2230, %v2617
      %2619 = vmatmul.f32.gmra.mxu0 %v2408
      %v2620 = vpop.f32.mrf.mxu0
      %v2621 = vadd.f32 %v2230, %v2620
      %2622 = vmatmul.f32.gmra.mxu0 %v2411
      %v2623 = vpop.f32.mrf.mxu0
      %v2624 = vadd.f32 %v2230, %v2623
      %2625 = vmatmul.f32.gmra.mxu0 %v2414
      %v2626 = vpop.f32.mrf.mxu0
      %v2627 = vadd.f32 %v2230, %v2626
      %2628 = vmatmul.f32.gmra.mxu0 %v2417
      %v2629 = vpop.f32.mrf.mxu0
      %v2630 = vadd.f32 %v2230, %v2629
      %2631 = vmatmul.f32.gmra.mxu0 %v2420
      %v2632 = vpop.f32.mrf.mxu0
      %v2633 = vadd.f32 %v2230, %v2632
      %2634 = vmatmul.f32.gmra.mxu0 %v2423
      %v2635 = vpop.f32.mrf.mxu0
      %v2636 = vadd.f32 %v2230, %v2635
      %2637 = vdwg.mxu0
      %v2638 = vmax.f32 %v2447, 0.0
      %v2639 = vmax.f32 %v2450, 0.0
      %v2640 = vmax.f32 %v2453, 0.0
      %v2641 = vmax.f32 %v2456, 0.0
      %v2642 = vmax.f32 %v2459, 0.0
      %v2643 = vmax.f32 %v2462, 0.0
      %v2644 = vmax.f32 %v2465, 0.0
      %v2645 = vmax.f32 %v2468, 0.0
      %v2646 = vmax.f32 %v2471, 0.0
      %v2647 = vmax.f32 %v2474, 0.0
      %v2648 = vmax.f32 %v2477, 0.0
      %v2649 = vmax.f32 %v2480, 0.0
      %v2650 = vmax.f32 %v2483, 0.0
      %v2651 = vmax.f32 %v2486, 0.0
      %v2652 = vmax.f32 %v2489, 0.0
      %v2653 = vmax.f32 %v2492, 0.0
      %v2654 = vmax.f32 %v2495, 0.0
      %v2655 = vmax.f32 %v2498, 0.0
      %v2656 = vmax.f32 %v2501, 0.0
      %v2657 = vmax.f32 %v2504, 0.0
      %v2658 = vmax.f32 %v2507, 0.0
      %v2659 = vmax.f32 %v2510, 0.0
      %v2660 = vmax.f32 %v2513, 0.0
      %v2661 = vmax.f32 %v2516, 0.0
      %v2662 = vmax.f32 %v2519, 0.0
      %v2663 = vmax.f32 %v2522, 0.0
      %v2664 = vmax.f32 %v2525, 0.0
      %v2665 = vmax.f32 %v2528, 0.0
      %v2666 = vmax.f32 %v2531, 0.0
      %v2667 = vmax.f32 %v2534, 0.0
      %v2668 = vmax.f32 %v2537, 0.0
      %v2669 = vmax.f32 %v2540, 0.0
      %v2670 = vmax.f32 %v2543, 0.0
      %v2671 = vmax.f32 %v2546, 0.0
      %v2672 = vmax.f32 %v2549, 0.0
      %v2673 = vmax.f32 %v2552, 0.0
      %v2674 = vmax.f32 %v2555, 0.0
      %v2675 = vmax.f32 %v2558, 0.0
      %v2676 = vmax.f32 %v2561, 0.0
      %v2677 = vmax.f32 %v2564, 0.0
      %v2678 = vmax.f32 %v2567, 0.0
      %v2679 = vmax.f32 %v2570, 0.0
      %v2680 = vmax.f32 %v2573, 0.0
      %v2681 = vmax.f32 %v2576, 0.0
      %v2682 = vmax.f32 %v2579, 0.0
      %v2683 = vmax.f32 %v2582, 0.0
      %v2684 = vmax.f32 %v2585, 0.0
      %v2685 = vmax.f32 %v2588, 0.0
      %v2686 = vmax.f32 %v2591, 0.0
      %v2687 = vmax.f32 %v2594, 0.0
      %v2688 = vmax.f32 %v2597, 0.0
      %v2689 = vmax.f32 %v2600, 0.0
      %v2690 = vmax.f32 %v2603, 0.0
      %v2691 = vmax.f32 %v2606, 0.0
      %v2692 = vmax.f32 %v2609, 0.0
      %v2693 = vmax.f32 %v2612, 0.0
      %v2694 = vmax.f32 %v2615, 0.0
      %v2695 = vmax.f32 %v2618, 0.0
      %v2696 = vmax.f32 %v2621, 0.0
      %v2697 = vmax.f32 %v2624, 0.0
      %v2698 = vmax.f32 %v2627, 0.0
      %v2699 = vmax.f32 %v2630, 0.0
      %v2700 = vmax.f32 %v2633, 0.0
      %v2701 = vmax.f32 %v2636, 0.0
      %v2702 = vld [vmem:[%s15] sm:$0xff]
      %v2703 = vld [vmem:[%s15 + $0x8] sm:$0xff]
      %v2704 = vld [vmem:[%s15 + $0x10] sm:$0xff]
      %v2705 = vld [vmem:[%s15 + $0x18] sm:$0xff]
      %v2706 = vld [vmem:[%s16] sm:$0x1]
      %v2708 = vperm.slane %v2706, 0
      %v2711 = vsel %vm1324, %v2638, 0
      %v2714 = vsel %vm1324, %v2639, 0
      %v2717 = vsel %vm1324, %v2640, 0
      %v2720 = vsel %vm1324, %v2641, 0
      %v2723 = vsel %vm1324, %v2642, 0
      %v2726 = vsel %vm1324, %v2643, 0
      %v2729 = vsel %vm1324, %v2644, 0
      %v2732 = vsel %vm1324, %v2645, 0
      %v2735 = vsel %vm1324, %v2646, 0
      %v2738 = vsel %vm1324, %v2647, 0
      %v2741 = vsel %vm1324, %v2648, 0
      %v2744 = vsel %vm1324, %v2649, 0
      %v2747 = vsel %vm1324, %v2650, 0
      %v2750 = vsel %vm1324, %v2651, 0
      %v2753 = vsel %vm1324, %v2652, 0
      %v2756 = vsel %vm1324, %v2653, 0
      %v2759 = vsel %vm1324, %v2654, 0
      %v2762 = vsel %vm1324, %v2655, 0
      %v2765 = vsel %vm1324, %v2656, 0
      %v2768 = vsel %vm1324, %v2657, 0
      %v2771 = vsel %vm1324, %v2658, 0
      %v2774 = vsel %vm1324, %v2659, 0
      %v2777 = vsel %vm1324, %v2660, 0
      %v2780 = vsel %vm1324, %v2661, 0
      %v2783 = vsel %vm1324, %v2662, 0
      %v2786 = vsel %vm1324, %v2663, 0
      %v2789 = vsel %vm1324, %v2664, 0
      %v2792 = vsel %vm1324, %v2665, 0
      %v2795 = vsel %vm1324, %v2666, 0
      %v2798 = vsel %vm1324, %v2667, 0
      %v2801 = vsel %vm1324, %v2668, 0
      %v2804 = vsel %vm1324, %v2669, 0
      %v2807 = vsel %vm1324, %v2670, 0
      %v2810 = vsel %vm1324, %v2671, 0
      %v2813 = vsel %vm1324, %v2672, 0
      %v2816 = vsel %vm1324, %v2673, 0
      %v2819 = vsel %vm1324, %v2674, 0
      %v2822 = vsel %vm1324, %v2675, 0
      %v2825 = vsel %vm1324, %v2676, 0
      %v2828 = vsel %vm1324, %v2677, 0
      %v2831 = vsel %vm1324, %v2678, 0
      %v2834 = vsel %vm1324, %v2679, 0
      %v2837 = vsel %vm1324, %v2680, 0
      %v2840 = vsel %vm1324, %v2681, 0
      %v2843 = vsel %vm1324, %v2682, 0
      %v2846 = vsel %vm1324, %v2683, 0
      %v2849 = vsel %vm1324, %v2684, 0
      %v2852 = vsel %vm1324, %v2685, 0
      %v2855 = vsel %vm1324, %v2686, 0
      %v2858 = vsel %vm1324, %v2687, 0
      %v2861 = vsel %vm1324, %v2688, 0
      %v2864 = vsel %vm1324, %v2689, 0
      %v2867 = vsel %vm1324, %v2690, 0
      %v2870 = vsel %vm1324, %v2691, 0
      %v2873 = vsel %vm1324, %v2692, 0
      %v2876 = vsel %vm1324, %v2693, 0
      %v2879 = vsel %vm1324, %v2694, 0
      %v2882 = vsel %vm1324, %v2695, 0
      %v2885 = vsel %vm1324, %v2696, 0
      %v2888 = vsel %vm1324, %v2697, 0
      %v2891 = vsel %vm1324, %v2698, 0
      %v2894 = vsel %vm1324, %v2699, 0
      %v2897 = vsel %vm1324, %v2700, 0
      %v2900 = vsel %vm1324, %v2701, 0
      %2902 = vmatpush.msra.mxu0 0.0
      %2903 = vmatpush.msra.mxu0 0.0
      %2904 = vmatpush.msra.mxu0 0.0
      %2905 = vmatpush.msra.mxu0 0.0
      %2906 = vmatpush.msra.mxu0 0.0
      %2907 = vmatpush.msra.mxu0 0.0
      %2908 = vmatpush.msra.mxu0 0.0
      %2909 = vmatpush.msra.mxu0 0.0
      %2910 = vmatpush.msra.mxu0 0.0
      %2911 = vmatpush.msra.mxu0 0.0
      %2912 = vmatpush.msra.mxu0 0.0
      %2913 = vmatpush.msra.mxu0 0.0
      %2914 = vmatpush.msra.mxu0 %v2705
      %2915 = vmatpush.msra.mxu0 %v2704
      %2916 = vmatpush.msra.mxu0 %v2703
      %2917 = vmatpush.msra.mxu0 %v2702
      %2918 = vmatmul.f32.gmra.mxu0 %v2711
      %v2919 = vpop.f32.mrf.mxu0
      %v2920 = vadd.f32 %v2708, %v2919
      %2921 = vmatmul.f32.gmra.mxu0 %v2714
      %v2922 = vpop.f32.mrf.mxu0
      %v2923 = vadd.f32 %v2708, %v2922
      %2924 = vmatmul.f32.gmra.mxu0 %v2717
      %v2925 = vpop.f32.mrf.mxu0
      %v2926 = vadd.f32 %v2708, %v2925
      %2927 = vmatmul.f32.gmra.mxu0 %v2720
      %v2928 = vpop.f32.mrf.mxu0
      %v2929 = vadd.f32 %v2708, %v2928
      %2930 = vmatmul.f32.gmra.mxu0 %v2723
      %v2931 = vpop.f32.mrf.mxu0
      %v2932 = vadd.f32 %v2708, %v2931
      %2933 = vmatmul.f32.gmra.mxu0 %v2726
      %v2934 = vpop.f32.mrf.mxu0
      %v2935 = vadd.f32 %v2708, %v2934
      %2936 = vmatmul.f32.gmra.mxu0 %v2729
      %v2937 = vpop.f32.mrf.mxu0
      %v2938 = vadd.f32 %v2708, %v2937
      %2939 = vmatmul.f32.gmra.mxu0 %v2732
      %v2940 = vpop.f32.mrf.mxu0
      %v2941 = vadd.f32 %v2708, %v2940
      %2942 = vmatmul.f32.gmra.mxu0 %v2735
      %v2943 = vpop.f32.mrf.mxu0
      %v2944 = vadd.f32 %v2708, %v2943
      %2945 = vmatmul.f32.gmra.mxu0 %v2738
      %v2946 = vpop.f32.mrf.mxu0
      %v2947 = vadd.f32 %v2708, %v2946
      %2948 = vmatmul.f32.gmra.mxu0 %v2741
      %v2949 = vpop.f32.mrf.mxu0
      %v2950 = vadd.f32 %v2708, %v2949
      %2951 = vmatmul.f32.gmra.mxu0 %v2744
      %v2952 = vpop.f32.mrf.mxu0
      %v2953 = vadd.f32 %v2708, %v2952
      %2954 = vmatmul.f32.gmra.mxu0 %v2747
      %v2955 = vpop.f32.mrf.mxu0
      %v2956 = vadd.f32 %v2708, %v2955
      %2957 = vmatmul.f32.gmra.mxu0 %v2750
      %v2958 = vpop.f32.mrf.mxu0
      %v2959 = vadd.f32 %v2708, %v2958
      %2960 = vmatmul.f32.gmra.mxu0 %v2753
      %v2961 = vpop.f32.mrf.mxu0
      %v2962 = vadd.f32 %v2708, %v2961
      %2963 = vmatmul.f32.gmra.mxu0 %v2756
      %v2964 = vpop.f32.mrf.mxu0
      %v2965 = vadd.f32 %v2708, %v2964
      %2966 = vmatmul.f32.gmra.mxu0 %v2759
      %v2967 = vpop.f32.mrf.mxu0
      %v2968 = vadd.f32 %v2708, %v2967
      %2969 = vmatmul.f32.gmra.mxu0 %v2762
      %v2970 = vpop.f32.mrf.mxu0
      %v2971 = vadd.f32 %v2708, %v2970
      %2972 = vmatmul.f32.gmra.mxu0 %v2765
      %v2973 = vpop.f32.mrf.mxu0
      %v2974 = vadd.f32 %v2708, %v2973
      %2975 = vmatmul.f32.gmra.mxu0 %v2768
      %v2976 = vpop.f32.mrf.mxu0
      %v2977 = vadd.f32 %v2708, %v2976
      %2978 = vmatmul.f32.gmra.mxu0 %v2771
      %v2979 = vpop.f32.mrf.mxu0
      %v2980 = vadd.f32 %v2708, %v2979
      %2981 = vmatmul.f32.gmra.mxu0 %v2774
      %v2982 = vpop.f32.mrf.mxu0
      %v2983 = vadd.f32 %v2708, %v2982
      %2984 = vmatmul.f32.gmra.mxu0 %v2777
      %v2985 = vpop.f32.mrf.mxu0
      %v2986 = vadd.f32 %v2708, %v2985
      %2987 = vmatmul.f32.gmra.mxu0 %v2780
      %v2988 = vpop.f32.mrf.mxu0
      %v2989 = vadd.f32 %v2708, %v2988
      %2990 = vmatmul.f32.gmra.mxu0 %v2783
      %v2991 = vpop.f32.mrf.mxu0
      %v2992 = vadd.f32 %v2708, %v2991
      %2993 = vmatmul.f32.gmra.mxu0 %v2786
      %v2994 = vpop.f32.mrf.mxu0
      %v2995 = vadd.f32 %v2708, %v2994
      %2996 = vmatmul.f32.gmra.mxu0 %v2789
      %v2997 = vpop.f32.mrf.mxu0
      %v2998 = vadd.f32 %v2708, %v2997
      %2999 = vmatmul.f32.gmra.mxu0 %v2792
      %v3000 = vpop.f32.mrf.mxu0
      %v3001 = vadd.f32 %v2708, %v3000
      %3002 = vmatmul.f32.gmra.mxu0 %v2795
      %v3003 = vpop.f32.mrf.mxu0
      %v3004 = vadd.f32 %v2708, %v3003
      %3005 = vmatmul.f32.gmra.mxu0 %v2798
      %v3006 = vpop.f32.mrf.mxu0
      %v3007 = vadd.f32 %v2708, %v3006
      %3008 = vmatmul.f32.gmra.mxu0 %v2801
      %v3009 = vpop.f32.mrf.mxu0
      %v3010 = vadd.f32 %v2708, %v3009
      %3011 = vmatmul.f32.gmra.mxu0 %v2804
      %v3012 = vpop.f32.mrf.mxu0
      %v3013 = vadd.f32 %v2708, %v3012
      %3014 = vmatmul.f32.gmra.mxu0 %v2807
      %v3015 = vpop.f32.mrf.mxu0
      %v3016 = vadd.f32 %v2708, %v3015
      %3017 = vmatmul.f32.gmra.mxu0 %v2810
      %v3018 = vpop.f32.mrf.mxu0
      %v3019 = vadd.f32 %v2708, %v3018
      %3020 = vmatmul.f32.gmra.mxu0 %v2813
      %v3021 = vpop.f32.mrf.mxu0
      %v3022 = vadd.f32 %v2708, %v3021
      %3023 = vmatmul.f32.gmra.mxu0 %v2816
      %v3024 = vpop.f32.mrf.mxu0
      %v3025 = vadd.f32 %v2708, %v3024
      %3026 = vmatmul.f32.gmra.mxu0 %v2819
      %v3027 = vpop.f32.mrf.mxu0
      %v3028 = vadd.f32 %v2708, %v3027
      %3029 = vmatmul.f32.gmra.mxu0 %v2822
      %v3030 = vpop.f32.mrf.mxu0
      %v3031 = vadd.f32 %v2708, %v3030
      %3032 = vmatmul.f32.gmra.mxu0 %v2825
      %v3033 = vpop.f32.mrf.mxu0
      %v3034 = vadd.f32 %v2708, %v3033
      %3035 = vmatmul.f32.gmra.mxu0 %v2828
      %v3036 = vpop.f32.mrf.mxu0
      %v3037 = vadd.f32 %v2708, %v3036
      %3038 = vmatmul.f32.gmra.mxu0 %v2831
      %v3039 = vpop.f32.mrf.mxu0
      %v3040 = vadd.f32 %v2708, %v3039
      %3041 = vmatmul.f32.gmra.mxu0 %v2834
      %v3042 = vpop.f32.mrf.mxu0
      %v3043 = vadd.f32 %v2708, %v3042
      %3044 = vmatmul.f32.gmra.mxu0 %v2837
      %v3045 = vpop.f32.mrf.mxu0
      %v3046 = vadd.f32 %v2708, %v3045
      %3047 = vmatmul.f32.gmra.mxu0 %v2840
      %v3048 = vpop.f32.mrf.mxu0
      %v3049 = vadd.f32 %v2708, %v3048
      %3050 = vmatmul.f32.gmra.mxu0 %v2843
      %v3051 = vpop.f32.mrf.mxu0
      %v3052 = vadd.f32 %v2708, %v3051
      %3053 = vmatmul.f32.gmra.mxu0 %v2846
      %v3054 = vpop.f32.mrf.mxu0
      %v3055 = vadd.f32 %v2708, %v3054
      %3056 = vmatmul.f32.gmra.mxu0 %v2849
      %v3057 = vpop.f32.mrf.mxu0
      %v3058 = vadd.f32 %v2708, %v3057
      %3059 = vmatmul.f32.gmra.mxu0 %v2852
      %v3060 = vpop.f32.mrf.mxu0
      %v3061 = vadd.f32 %v2708, %v3060
      %3062 = vmatmul.f32.gmra.mxu0 %v2855
      %v3063 = vpop.f32.mrf.mxu0
      %v3064 = vadd.f32 %v2708, %v3063
      %3065 = vmatmul.f32.gmra.mxu0 %v2858
      %v3066 = vpop.f32.mrf.mxu0
      %v3067 = vadd.f32 %v2708, %v3066
      %3068 = vmatmul.f32.gmra.mxu0 %v2861
      %v3069 = vpop.f32.mrf.mxu0
      %v3070 = vadd.f32 %v2708, %v3069
      %3071 = vmatmul.f32.gmra.mxu0 %v2864
      %v3072 = vpop.f32.mrf.mxu0
      %v3073 = vadd.f32 %v2708, %v3072
      %3074 = vmatmul.f32.gmra.mxu0 %v2867
      %v3075 = vpop.f32.mrf.mxu0
      %v3076 = vadd.f32 %v2708, %v3075
      %3077 = vmatmul.f32.gmra.mxu0 %v2870
      %v3078 = vpop.f32.mrf.mxu0
      %v3079 = vadd.f32 %v2708, %v3078
      %3080 = vmatmul.f32.gmra.mxu0 %v2873
      %v3081 = vpop.f32.mrf.mxu0
      %v3082 = vadd.f32 %v2708, %v3081
      %3083 = vmatmul.f32.gmra.mxu0 %v2876
      %v3084 = vpop.f32.mrf.mxu0
      %v3085 = vadd.f32 %v2708, %v3084
      %3086 = vmatmul.f32.gmra.mxu0 %v2879
      %v3087 = vpop.f32.mrf.mxu0
      %v3088 = vadd.f32 %v2708, %v3087
      %3089 = vmatmul.f32.gmra.mxu0 %v2882
      %v3090 = vpop.f32.mrf.mxu0
      %v3091 = vadd.f32 %v2708, %v3090
      %3092 = vmatmul.f32.gmra.mxu0 %v2885
      %v3093 = vpop.f32.mrf.mxu0
      %v3094 = vadd.f32 %v2708, %v3093
      %3095 = vmatmul.f32.gmra.mxu0 %v2888
      %v3096 = vpop.f32.mrf.mxu0
      %v3097 = vadd.f32 %v2708, %v3096
      %3098 = vmatmul.f32.gmra.mxu0 %v2891
      %v3099 = vpop.f32.mrf.mxu0
      %v3100 = vadd.f32 %v2708, %v3099
      %3101 = vmatmul.f32.gmra.mxu0 %v2894
      %v3102 = vpop.f32.mrf.mxu0
      %v3103 = vadd.f32 %v2708, %v3102
      %3104 = vmatmul.f32.gmra.mxu0 %v2897
      %v3105 = vpop.f32.mrf.mxu0
      %v3106 = vadd.f32 %v2708, %v3105
      %3107 = vmatmul.f32.gmra.mxu0 %v2900
      %v3108 = vpop.f32.mrf.mxu0
      %v3109 = vadd.f32 %v2708, %v3108
      %3110 = vdwg.mxu0
      %v3111 = vmax.f32 %v2920, 0.0
      %v3112 = vmax.f32 %v2923, 0.0
      %v3113 = vmax.f32 %v2926, 0.0
      %v3114 = vmax.f32 %v2929, 0.0
      %v3115 = vmax.f32 %v2932, 0.0
      %v3116 = vmax.f32 %v2935, 0.0
      %v3117 = vmax.f32 %v2938, 0.0
      %v3118 = vmax.f32 %v2941, 0.0
      %v3119 = vmax.f32 %v2944, 0.0
      %v3120 = vmax.f32 %v2947, 0.0
      %v3121 = vmax.f32 %v2950, 0.0
      %v3122 = vmax.f32 %v2953, 0.0
      %v3123 = vmax.f32 %v2956, 0.0
      %v3124 = vmax.f32 %v2959, 0.0
      %v3125 = vmax.f32 %v2962, 0.0
      %v3126 = vmax.f32 %v2965, 0.0
      %v3127 = vmax.f32 %v2968, 0.0
      %v3128 = vmax.f32 %v2971, 0.0
      %v3129 = vmax.f32 %v2974, 0.0
      %v3130 = vmax.f32 %v2977, 0.0
      %v3131 = vmax.f32 %v2980, 0.0
      %v3132 = vmax.f32 %v2983, 0.0
      %v3133 = vmax.f32 %v2986, 0.0
      %v3134 = vmax.f32 %v2989, 0.0
      %v3135 = vmax.f32 %v2992, 0.0
      %v3136 = vmax.f32 %v2995, 0.0
      %v3137 = vmax.f32 %v2998, 0.0
      %v3138 = vmax.f32 %v3001, 0.0
      %v3139 = vmax.f32 %v3004, 0.0
      %v3140 = vmax.f32 %v3007, 0.0
      %v3141 = vmax.f32 %v3010, 0.0
      %v3142 = vmax.f32 %v3013, 0.0
      %v3143 = vmax.f32 %v3016, 0.0
      %v3144 = vmax.f32 %v3019, 0.0
      %v3145 = vmax.f32 %v3022, 0.0
      %v3146 = vmax.f32 %v3025, 0.0
      %v3147 = vmax.f32 %v3028, 0.0
      %v3148 = vmax.f32 %v3031, 0.0
      %v3149 = vmax.f32 %v3034, 0.0
      %v3150 = vmax.f32 %v3037, 0.0
      %v3151 = vmax.f32 %v3040, 0.0
      %v3152 = vmax.f32 %v3043, 0.0
      %v3153 = vmax.f32 %v3046, 0.0
      %v3154 = vmax.f32 %v3049, 0.0
      %v3155 = vmax.f32 %v3052, 0.0
      %v3156 = vmax.f32 %v3055, 0.0
      %v3157 = vmax.f32 %v3058, 0.0
      %v3158 = vmax.f32 %v3061, 0.0
      %v3159 = vmax.f32 %v3064, 0.0
      %v3160 = vmax.f32 %v3067, 0.0
      %v3161 = vmax.f32 %v3070, 0.0
      %v3162 = vmax.f32 %v3073, 0.0
      %v3163 = vmax.f32 %v3076, 0.0
      %v3164 = vmax.f32 %v3079, 0.0
      %v3165 = vmax.f32 %v3082, 0.0
      %v3166 = vmax.f32 %v3085, 0.0
      %v3167 = vmax.f32 %v3088, 0.0
      %v3168 = vmax.f32 %v3091, 0.0
      %v3169 = vmax.f32 %v3094, 0.0
      %v3170 = vmax.f32 %v3097, 0.0
      %v3171 = vmax.f32 %v3100, 0.0
      %v3172 = vmax.f32 %v3103, 0.0
      %v3173 = vmax.f32 %v3106, 0.0
      %v3174 = vmax.f32 %v3109, 0.0
      %3176 = vset.pattern.permute.xlu0 0
      %3177 = vperm.xlu0 %3176, %v2158
      %v3178 = vpop.permute.xlu0 %3177
      %3181 = vset.pattern.permute.xlu0 0
      %3182 = vperm.xlu0 %3181, %v2159
      %v3183 = vpop.permute.xlu0 %3182
      %3186 = vset.pattern.permute.xlu0 0
      %3187 = vperm.xlu0 %3186, %v2160
      %v3188 = vpop.permute.xlu0 %3187
      %3191 = vset.pattern.permute.xlu0 0
      %3192 = vperm.xlu0 %3191, %v2161
      %v3193 = vpop.permute.xlu0 %3192
      %3196 = vset.pattern.permute.xlu0 0
      %3197 = vperm.xlu0 %3196, %v2162
      %v3198 = vpop.permute.xlu0 %3197
      %3201 = vset.pattern.permute.xlu0 0
      %3202 = vperm.xlu0 %3201, %v2163
      %v3203 = vpop.permute.xlu0 %3202
      %3206 = vset.pattern.permute.xlu0 0
      %3207 = vperm.xlu0 %3206, %v2164
      %v3208 = vpop.permute.xlu0 %3207
      %3211 = vset.pattern.permute.xlu0 0
      %3212 = vperm.xlu0 %3211, %v2165
      %v3213 = vpop.permute.xlu0 %3212
      %3216 = vset.pattern.permute.xlu0 0
      %3217 = vperm.xlu0 %3216, %v2166
      %v3218 = vpop.permute.xlu0 %3217
      %3221 = vset.pattern.permute.xlu0 0
      %3222 = vperm.xlu0 %3221, %v2167
      %v3223 = vpop.permute.xlu0 %3222
      %3226 = vset.pattern.permute.xlu0 0
      %3227 = vperm.xlu0 %3226, %v2168
      %v3228 = vpop.permute.xlu0 %3227
      %3231 = vset.pattern.permute.xlu0 0
      %3232 = vperm.xlu0 %3231, %v2169
      %v3233 = vpop.permute.xlu0 %3232
      %3236 = vset.pattern.permute.xlu0 0
      %3237 = vperm.xlu0 %3236, %v2170
      %v3238 = vpop.permute.xlu0 %3237
      %3241 = vset.pattern.permute.xlu0 0
      %3242 = vperm.xlu0 %3241, %v2171
      %v3243 = vpop.permute.xlu0 %3242
      %3246 = vset.pattern.permute.xlu0 0
      %3247 = vperm.xlu0 %3246, %v2172
      %v3248 = vpop.permute.xlu0 %3247
      %3251 = vset.pattern.permute.xlu0 0
      %3252 = vperm.xlu0 %3251, %v2173
      %v3253 = vpop.permute.xlu0 %3252
      %3256 = vset.pattern.permute.xlu0 0
      %3257 = vperm.xlu0 %3256, %v2174
      %v3258 = vpop.permute.xlu0 %3257
      %3261 = vset.pattern.permute.xlu0 0
      %3262 = vperm.xlu0 %3261, %v2175
      %v3263 = vpop.permute.xlu0 %3262
      %3266 = vset.pattern.permute.xlu0 0
      %3267 = vperm.xlu0 %3266, %v2176
      %v3268 = vpop.permute.xlu0 %3267
      %3271 = vset.pattern.permute.xlu0 0
      %3272 = vperm.xlu0 %3271, %v2177
      %v3273 = vpop.permute.xlu0 %3272
      %3276 = vset.pattern.permute.xlu0 0
      %3277 = vperm.xlu0 %3276, %v2178
      %v3278 = vpop.permute.xlu0 %3277
      %3281 = vset.pattern.permute.xlu0 0
      %3282 = vperm.xlu0 %3281, %v2179
      %v3283 = vpop.permute.xlu0 %3282
      %3286 = vset.pattern.permute.xlu0 0
      %3287 = vperm.xlu0 %3286, %v2180
      %v3288 = vpop.permute.xlu0 %3287
      %3291 = vset.pattern.permute.xlu0 0
      %3292 = vperm.xlu0 %3291, %v2181
      %v3293 = vpop.permute.xlu0 %3292
      %3296 = vset.pattern.permute.xlu0 0
      %3297 = vperm.xlu0 %3296, %v2182
      %v3298 = vpop.permute.xlu0 %3297
      %3301 = vset.pattern.permute.xlu0 0
      %3302 = vperm.xlu0 %3301, %v2183
      %v3303 = vpop.permute.xlu0 %3302
      %3306 = vset.pattern.permute.xlu0 0
      %3307 = vperm.xlu0 %3306, %v2184
      %v3308 = vpop.permute.xlu0 %3307
      %3311 = vset.pattern.permute.xlu0 0
      %3312 = vperm.xlu0 %3311, %v2185
      %v3313 = vpop.permute.xlu0 %3312
      %3316 = vset.pattern.permute.xlu0 0
      %3317 = vperm.xlu0 %3316, %v2186
      %v3318 = vpop.permute.xlu0 %3317
      %3321 = vset.pattern.permute.xlu0 0
      %3322 = vperm.xlu0 %3321, %v2187
      %v3323 = vpop.permute.xlu0 %3322
      %3326 = vset.pattern.permute.xlu0 0
      %3327 = vperm.xlu0 %3326, %v2188
      %v3328 = vpop.permute.xlu0 %3327
      %3331 = vset.pattern.permute.xlu0 0
      %3332 = vperm.xlu0 %3331, %v2189
      %v3333 = vpop.permute.xlu0 %3332
      %3336 = vset.pattern.permute.xlu0 0
      %3337 = vperm.xlu0 %3336, %v2190
      %v3338 = vpop.permute.xlu0 %3337
      %3341 = vset.pattern.permute.xlu0 0
      %3342 = vperm.xlu0 %3341, %v2191
      %v3343 = vpop.permute.xlu0 %3342
      %3346 = vset.pattern.permute.xlu0 0
      %3347 = vperm.xlu0 %3346, %v2192
      %v3348 = vpop.permute.xlu0 %3347
      %3351 = vset.pattern.permute.xlu0 0
      %3352 = vperm.xlu0 %3351, %v2193
      %v3353 = vpop.permute.xlu0 %3352
      %3356 = vset.pattern.permute.xlu0 0
      %3357 = vperm.xlu0 %3356, %v2194
      %v3358 = vpop.permute.xlu0 %3357
      %3361 = vset.pattern.permute.xlu0 0
      %3362 = vperm.xlu0 %3361, %v2195
      %v3363 = vpop.permute.xlu0 %3362
      %3366 = vset.pattern.permute.xlu0 0
      %3367 = vperm.xlu0 %3366, %v2196
      %v3368 = vpop.permute.xlu0 %3367
      %3371 = vset.pattern.permute.xlu0 0
      %3372 = vperm.xlu0 %3371, %v2197
      %v3373 = vpop.permute.xlu0 %3372
      %3376 = vset.pattern.permute.xlu0 0
      %3377 = vperm.xlu0 %3376, %v2198
      %v3378 = vpop.permute.xlu0 %3377
      %3381 = vset.pattern.permute.xlu0 0
      %3382 = vperm.xlu0 %3381, %v2199
      %v3383 = vpop.permute.xlu0 %3382
      %3386 = vset.pattern.permute.xlu0 0
      %3387 = vperm.xlu0 %3386, %v2200
      %v3388 = vpop.permute.xlu0 %3387
      %3391 = vset.pattern.permute.xlu0 0
      %3392 = vperm.xlu0 %3391, %v2201
      %v3393 = vpop.permute.xlu0 %3392
      %3396 = vset.pattern.permute.xlu0 0
      %3397 = vperm.xlu0 %3396, %v2202
      %v3398 = vpop.permute.xlu0 %3397
      %3401 = vset.pattern.permute.xlu0 0
      %3402 = vperm.xlu0 %3401, %v2203
      %v3403 = vpop.permute.xlu0 %3402
      %3406 = vset.pattern.permute.xlu0 0
      %3407 = vperm.xlu0 %3406, %v2204
      %v3408 = vpop.permute.xlu0 %3407
      %3411 = vset.pattern.permute.xlu0 0
      %3412 = vperm.xlu0 %3411, %v2205
      %v3413 = vpop.permute.xlu0 %3412
      %3416 = vset.pattern.permute.xlu0 0
      %3417 = vperm.xlu0 %3416, %v2206
      %v3418 = vpop.permute.xlu0 %3417
      %3421 = vset.pattern.permute.xlu0 0
      %3422 = vperm.xlu0 %3421, %v2207
      %v3423 = vpop.permute.xlu0 %3422
      %3426 = vset.pattern.permute.xlu0 0
      %3427 = vperm.xlu0 %3426, %v2208
      %v3428 = vpop.permute.xlu0 %3427
      %3431 = vset.pattern.permute.xlu0 0
      %3432 = vperm.xlu0 %3431, %v2209
      %v3433 = vpop.permute.xlu0 %3432
      %3436 = vset.pattern.permute.xlu0 0
      %3437 = vperm.xlu0 %3436, %v2210
      %v3438 = vpop.permute.xlu0 %3437
      %3441 = vset.pattern.permute.xlu0 0
      %3442 = vperm.xlu0 %3441, %v2211
      %v3443 = vpop.permute.xlu0 %3442
      %3446 = vset.pattern.permute.xlu0 0
      %3447 = vperm.xlu0 %3446, %v2212
      %v3448 = vpop.permute.xlu0 %3447
      %3451 = vset.pattern.permute.xlu0 0
      %3452 = vperm.xlu0 %3451, %v2213
      %v3453 = vpop.permute.xlu0 %3452
      %3456 = vset.pattern.permute.xlu0 0
      %3457 = vperm.xlu0 %3456, %v2214
      %v3458 = vpop.permute.xlu0 %3457
      %3461 = vset.pattern.permute.xlu0 0
      %3462 = vperm.xlu0 %3461, %v2215
      %v3463 = vpop.permute.xlu0 %3462
      %3466 = vset.pattern.permute.xlu0 0
      %3467 = vperm.xlu0 %3466, %v2216
      %v3468 = vpop.permute.xlu0 %3467
      %3471 = vset.pattern.permute.xlu0 0
      %3472 = vperm.xlu0 %3471, %v2217
      %v3473 = vpop.permute.xlu0 %3472
      %3476 = vset.pattern.permute.xlu0 0
      %3477 = vperm.xlu0 %3476, %v2218
      %v3478 = vpop.permute.xlu0 %3477
      %3481 = vset.pattern.permute.xlu0 0
      %3482 = vperm.xlu0 %3481, %v2219
      %v3483 = vpop.permute.xlu0 %3482
      %3486 = vset.pattern.permute.xlu0 0
      %3487 = vperm.xlu0 %3486, %v2220
      %v3488 = vpop.permute.xlu0 %3487
      %3491 = vset.pattern.permute.xlu0 0
      %3492 = vperm.xlu0 %3491, %v2221
      %v3493 = vpop.permute.xlu0 %3492
      %v3495 = vmul.f32 %v3111, %v3178
      %v3496 = vmul.f32 %v3112, %v3183
      %v3497 = vmul.f32 %v3113, %v3188
      %v3498 = vmul.f32 %v3114, %v3193
      %v3499 = vmul.f32 %v3115, %v3198
      %v3500 = vmul.f32 %v3116, %v3203
      %v3501 = vmul.f32 %v3117, %v3208
      %v3502 = vmul.f32 %v3118, %v3213
      %v3503 = vmul.f32 %v3119, %v3218
      %v3504 = vmul.f32 %v3120, %v3223
      %v3505 = vmul.f32 %v3121, %v3228
      %v3506 = vmul.f32 %v3122, %v3233
      %v3507 = vmul.f32 %v3123, %v3238
      %v3508 = vmul.f32 %v3124, %v3243
      %v3509 = vmul.f32 %v3125, %v3248
      %v3510 = vmul.f32 %v3126, %v3253
      %v3511 = vmul.f32 %v3127, %v3258
      %v3512 = vmul.f32 %v3128, %v3263
      %v3513 = vmul.f32 %v3129, %v3268
      %v3514 = vmul.f32 %v3130, %v3273
      %v3515 = vmul.f32 %v3131, %v3278
      %v3516 = vmul.f32 %v3132, %v3283
      %v3517 = vmul.f32 %v3133, %v3288
      %v3518 = vmul.f32 %v3134, %v3293
      %v3519 = vmul.f32 %v3135, %v3298
      %v3520 = vmul.f32 %v3136, %v3303
      %v3521 = vmul.f32 %v3137, %v3308
      %v3522 = vmul.f32 %v3138, %v3313
      %v3523 = vmul.f32 %v3139, %v3318
      %v3524 = vmul.f32 %v3140, %v3323
      %v3525 = vmul.f32 %v3141, %v3328
      %v3526 = vmul.f32 %v3142, %v3333
      %v3527 = vmul.f32 %v3143, %v3338
      %v3528 = vmul.f32 %v3144, %v3343
      %v3529 = vmul.f32 %v3145, %v3348
      %v3530 = vmul.f32 %v3146, %v3353
      %v3531 = vmul.f32 %v3147, %v3358
      %v3532 = vmul.f32 %v3148, %v3363
      %v3533 = vmul.f32 %v3149, %v3368
      %v3534 = vmul.f32 %v3150, %v3373
      %v3535 = vmul.f32 %v3151, %v3378
      %v3536 = vmul.f32 %v3152, %v3383
      %v3537 = vmul.f32 %v3153, %v3388
      %v3538 = vmul.f32 %v3154, %v3393
      %v3539 = vmul.f32 %v3155, %v3398
      %v3540 = vmul.f32 %v3156, %v3403
      %v3541 = vmul.f32 %v3157, %v3408
      %v3542 = vmul.f32 %v3158, %v3413
      %v3543 = vmul.f32 %v3159, %v3418
      %v3544 = vmul.f32 %v3160, %v3423
      %v3545 = vmul.f32 %v3161, %v3428
      %v3546 = vmul.f32 %v3162, %v3433
      %v3547 = vmul.f32 %v3163, %v3438
      %v3548 = vmul.f32 %v3164, %v3443
      %v3549 = vmul.f32 %v3165, %v3448
      %v3550 = vmul.f32 %v3166, %v3453
      %v3551 = vmul.f32 %v3167, %v3458
      %v3552 = vmul.f32 %v3168, %v3463
      %v3553 = vmul.f32 %v3169, %v3468
      %v3554 = vmul.f32 %v3170, %v3473
      %v3555 = vmul.f32 %v3171, %v3478
      %v3556 = vmul.f32 %v3172, %v3483
      %v3557 = vmul.f32 %v3173, %v3488
      %v3558 = vmul.f32 %v3174, %v3493
      %v3559 = vsel %vm1324, %v3495, 0.0
      %v3560 = vsel %vm1324, %v3496, 0.0
      %v3561 = vadd.f32 %v3559, %v3560
      %v3562 = vrot.slane %v3561, 4
      %v3563 = vadd.f32 %v3561, %v3562
      %v3564 = vrot.slane %v3563, 2
      %v3565 = vadd.f32 %v3563, %v3564
      %v3566 = vrot.slane %v3565, 1
      %v3567 = vadd.f32 %v3565, %v3566
      %v3568 = vsel %vm1324, %v3497, 0.0
      %v3569 = vsel %vm1324, %v3498, 0.0
      %v3570 = vadd.f32 %v3568, %v3569
      %v3571 = vrot.slane %v3570, 4
      %v3572 = vadd.f32 %v3570, %v3571
      %v3573 = vrot.slane %v3572, 2
      %v3574 = vadd.f32 %v3572, %v3573
      %v3575 = vrot.slane %v3574, 1
      %v3576 = vadd.f32 %v3574, %v3575
      %v3577 = vsel %vm1324, %v3499, 0.0
      %v3578 = vsel %vm1324, %v3500, 0.0
      %v3579 = vadd.f32 %v3577, %v3578
      %v3580 = vrot.slane %v3579, 4
      %v3581 = vadd.f32 %v3579, %v3580
      %v3582 = vrot.slane %v3581, 2
      %v3583 = vadd.f32 %v3581, %v3582
      %v3584 = vrot.slane %v3583, 1
      %v3585 = vadd.f32 %v3583, %v3584
      %v3586 = vsel %vm1324, %v3501, 0.0
      %v3587 = vsel %vm1324, %v3502, 0.0
      %v3588 = vadd.f32 %v3586, %v3587
      %v3589 = vrot.slane %v3588, 4
      %v3590 = vadd.f32 %v3588, %v3589
      %v3591 = vrot.slane %v3590, 2
      %v3592 = vadd.f32 %v3590, %v3591
      %v3593 = vrot.slane %v3592, 1
      %v3594 = vadd.f32 %v3592, %v3593
      %v3595 = vsel %vm1324, %v3503, 0.0
      %v3596 = vsel %vm1324, %v3504, 0.0
      %v3597 = vadd.f32 %v3595, %v3596
      %v3598 = vrot.slane %v3597, 4
      %v3599 = vadd.f32 %v3597, %v3598
      %v3600 = vrot.slane %v3599, 2
      %v3601 = vadd.f32 %v3599, %v3600
      %v3602 = vrot.slane %v3601, 1
      %v3603 = vadd.f32 %v3601, %v3602
      %v3604 = vsel %vm1324, %v3505, 0.0
      %v3605 = vsel %vm1324, %v3506, 0.0
      %v3606 = vadd.f32 %v3604, %v3605
      %v3607 = vrot.slane %v3606, 4
      %v3608 = vadd.f32 %v3606, %v3607
      %v3609 = vrot.slane %v3608, 2
      %v3610 = vadd.f32 %v3608, %v3609
      %v3611 = vrot.slane %v3610, 1
      %v3612 = vadd.f32 %v3610, %v3611
      %v3613 = vsel %vm1324, %v3507, 0.0
      %v3614 = vsel %vm1324, %v3508, 0.0
      %v3615 = vadd.f32 %v3613, %v3614
      %v3616 = vrot.slane %v3615, 4
      %v3617 = vadd.f32 %v3615, %v3616
      %v3618 = vrot.slane %v3617, 2
      %v3619 = vadd.f32 %v3617, %v3618
      %v3620 = vrot.slane %v3619, 1
      %v3621 = vadd.f32 %v3619, %v3620
      %v3622 = vsel %vm1324, %v3509, 0.0
      %v3623 = vsel %vm1324, %v3510, 0.0
      %v3624 = vadd.f32 %v3622, %v3623
      %v3625 = vrot.slane %v3624, 4
      %v3626 = vadd.f32 %v3624, %v3625
      %v3627 = vrot.slane %v3626, 2
      %v3628 = vadd.f32 %v3626, %v3627
      %v3629 = vrot.slane %v3628, 1
      %v3630 = vadd.f32 %v3628, %v3629
      %v3631 = vsel %vm1324, %v3511, 0.0
      %v3632 = vsel %vm1324, %v3512, 0.0
      %v3633 = vadd.f32 %v3631, %v3632
      %v3634 = vrot.slane %v3633, 4
      %v3635 = vadd.f32 %v3633, %v3634
      %v3636 = vrot.slane %v3635, 2
      %v3637 = vadd.f32 %v3635, %v3636
      %v3638 = vrot.slane %v3637, 1
      %v3639 = vadd.f32 %v3637, %v3638
      %v3640 = vsel %vm1324, %v3513, 0.0
      %v3641 = vsel %vm1324, %v3514, 0.0
      %v3642 = vadd.f32 %v3640, %v3641
      %v3643 = vrot.slane %v3642, 4
      %v3644 = vadd.f32 %v3642, %v3643
      %v3645 = vrot.slane %v3644, 2
      %v3646 = vadd.f32 %v3644, %v3645
      %v3647 = vrot.slane %v3646, 1
      %v3648 = vadd.f32 %v3646, %v3647
      %v3649 = vsel %vm1324, %v3515, 0.0
      %v3650 = vsel %vm1324, %v3516, 0.0
      %v3651 = vadd.f32 %v3649, %v3650
      %v3652 = vrot.slane %v3651, 4
      %v3653 = vadd.f32 %v3651, %v3652
      %v3654 = vrot.slane %v3653, 2
      %v3655 = vadd.f32 %v3653, %v3654
      %v3656 = vrot.slane %v3655, 1
      %v3657 = vadd.f32 %v3655, %v3656
      %v3658 = vsel %vm1324, %v3517, 0.0
      %v3659 = vsel %vm1324, %v3518, 0.0
      %v3660 = vadd.f32 %v3658, %v3659
      %v3661 = vrot.slane %v3660, 4
      %v3662 = vadd.f32 %v3660, %v3661
      %v3663 = vrot.slane %v3662, 2
      %v3664 = vadd.f32 %v3662, %v3663
      %v3665 = vrot.slane %v3664, 1
      %v3666 = vadd.f32 %v3664, %v3665
      %v3667 = vsel %vm1324, %v3519, 0.0
      %v3668 = vsel %vm1324, %v3520, 0.0
      %v3669 = vadd.f32 %v3667, %v3668
      %v3670 = vrot.slane %v3669, 4
      %v3671 = vadd.f32 %v3669, %v3670
      %v3672 = vrot.slane %v3671, 2
      %v3673 = vadd.f32 %v3671, %v3672
      %v3674 = vrot.slane %v3673, 1
      %v3675 = vadd.f32 %v3673, %v3674
      %v3676 = vsel %vm1324, %v3521, 0.0
      %v3677 = vsel %vm1324, %v3522, 0.0
      %v3678 = vadd.f32 %v3676, %v3677
      %v3679 = vrot.slane %v3678, 4
      %v3680 = vadd.f32 %v3678, %v3679
      %v3681 = vrot.slane %v3680, 2
      %v3682 = vadd.f32 %v3680, %v3681
      %v3683 = vrot.slane %v3682, 1
      %v3684 = vadd.f32 %v3682, %v3683
      %v3685 = vsel %vm1324, %v3523, 0.0
      %v3686 = vsel %vm1324, %v3524, 0.0
      %v3687 = vadd.f32 %v3685, %v3686
      %v3688 = vrot.slane %v3687, 4
      %v3689 = vadd.f32 %v3687, %v3688
      %v3690 = vrot.slane %v3689, 2
      %v3691 = vadd.f32 %v3689, %v3690
      %v3692 = vrot.slane %v3691, 1
      %v3693 = vadd.f32 %v3691, %v3692
      %v3694 = vsel %vm1324, %v3525, 0.0
      %v3695 = vsel %vm1324, %v3526, 0.0
      %v3696 = vadd.f32 %v3694, %v3695
      %v3697 = vrot.slane %v3696, 4
      %v3698 = vadd.f32 %v3696, %v3697
      %v3699 = vrot.slane %v3698, 2
      %v3700 = vadd.f32 %v3698, %v3699
      %v3701 = vrot.slane %v3700, 1
      %v3702 = vadd.f32 %v3700, %v3701
      %v3703 = vsel %vm1324, %v3527, 0.0
      %v3704 = vsel %vm1324, %v3528, 0.0
      %v3705 = vadd.f32 %v3703, %v3704
      %v3706 = vrot.slane %v3705, 4
      %v3707 = vadd.f32 %v3705, %v3706
      %v3708 = vrot.slane %v3707, 2
      %v3709 = vadd.f32 %v3707, %v3708
      %v3710 = vrot.slane %v3709, 1
      %v3711 = vadd.f32 %v3709, %v3710
      %v3712 = vsel %vm1324, %v3529, 0.0
      %v3713 = vsel %vm1324, %v3530, 0.0
      %v3714 = vadd.f32 %v3712, %v3713
      %v3715 = vrot.slane %v3714, 4
      %v3716 = vadd.f32 %v3714, %v3715
      %v3717 = vrot.slane %v3716, 2
      %v3718 = vadd.f32 %v3716, %v3717
      %v3719 = vrot.slane %v3718, 1
      %v3720 = vadd.f32 %v3718, %v3719
      %v3721 = vsel %vm1324, %v3531, 0.0
      %v3722 = vsel %vm1324, %v3532, 0.0
      %v3723 = vadd.f32 %v3721, %v3722
      %v3724 = vrot.slane %v3723, 4
      %v3725 = vadd.f32 %v3723, %v3724
      %v3726 = vrot.slane %v3725, 2
      %v3727 = vadd.f32 %v3725, %v3726
      %v3728 = vrot.slane %v3727, 1
      %v3729 = vadd.f32 %v3727, %v3728
      %v3730 = vsel %vm1324, %v3533, 0.0
      %v3731 = vsel %vm1324, %v3534, 0.0
      %v3732 = vadd.f32 %v3730, %v3731
      %v3733 = vrot.slane %v3732, 4
      %v3734 = vadd.f32 %v3732, %v3733
      %v3735 = vrot.slane %v3734, 2
      %v3736 = vadd.f32 %v3734, %v3735
      %v3737 = vrot.slane %v3736, 1
      %v3738 = vadd.f32 %v3736, %v3737
      %v3739 = vsel %vm1324, %v3535, 0.0
      %v3740 = vsel %vm1324, %v3536, 0.0
      %v3741 = vadd.f32 %v3739, %v3740
      %v3742 = vrot.slane %v3741, 4
      %v3743 = vadd.f32 %v3741, %v3742
      %v3744 = vrot.slane %v3743, 2
      %v3745 = vadd.f32 %v3743, %v3744
      %v3746 = vrot.slane %v3745, 1
      %v3747 = vadd.f32 %v3745, %v3746
      %v3748 = vsel %vm1324, %v3537, 0.0
      %v3749 = vsel %vm1324, %v3538, 0.0
      %v3750 = vadd.f32 %v3748, %v3749
      %v3751 = vrot.slane %v3750, 4
      %v3752 = vadd.f32 %v3750, %v3751
      %v3753 = vrot.slane %v3752, 2
      %v3754 = vadd.f32 %v3752, %v3753
      %v3755 = vrot.slane %v3754, 1
      %v3756 = vadd.f32 %v3754, %v3755
      %v3757 = vsel %vm1324, %v3539, 0.0
      %v3758 = vsel %vm1324, %v3540, 0.0
      %v3759 = vadd.f32 %v3757, %v3758
      %v3760 = vrot.slane %v3759, 4
      %v3761 = vadd.f32 %v3759, %v3760
      %v3762 = vrot.slane %v3761, 2
      %v3763 = vadd.f32 %v3761, %v3762
      %v3764 = vrot.slane %v3763, 1
      %v3765 = vadd.f32 %v3763, %v3764
      %v3766 = vsel %vm1324, %v3541, 0.0
      %v3767 = vsel %vm1324, %v3542, 0.0
      %v3768 = vadd.f32 %v3766, %v3767
      %v3769 = vrot.slane %v3768, 4
      %v3770 = vadd.f32 %v3768, %v3769
      %v3771 = vrot.slane %v3770, 2
      %v3772 = vadd.f32 %v3770, %v3771
      %v3773 = vrot.slane %v3772, 1
      %v3774 = vadd.f32 %v3772, %v3773
      %v3775 = vsel %vm1324, %v3543, 0.0
      %v3776 = vsel %vm1324, %v3544, 0.0
      %v3777 = vadd.f32 %v3775, %v3776
      %v3778 = vrot.slane %v3777, 4
      %v3779 = vadd.f32 %v3777, %v3778
      %v3780 = vrot.slane %v3779, 2
      %v3781 = vadd.f32 %v3779, %v3780
      %v3782 = vrot.slane %v3781, 1
      %v3783 = vadd.f32 %v3781, %v3782
      %v3784 = vsel %vm1324, %v3545, 0.0
      %v3785 = vsel %vm1324, %v3546, 0.0
      %v3786 = vadd.f32 %v3784, %v3785
      %v3787 = vrot.slane %v3786, 4
      %v3788 = vadd.f32 %v3786, %v3787
      %v3789 = vrot.slane %v3788, 2
      %v3790 = vadd.f32 %v3788, %v3789
      %v3791 = vrot.slane %v3790, 1
      %v3792 = vadd.f32 %v3790, %v3791
      %v3793 = vsel %vm1324, %v3547, 0.0
      %v3794 = vsel %vm1324, %v3548, 0.0
      %v3795 = vadd.f32 %v3793, %v3794
      %v3796 = vrot.slane %v3795, 4
      %v3797 = vadd.f32 %v3795, %v3796
      %v3798 = vrot.slane %v3797, 2
      %v3799 = vadd.f32 %v3797, %v3798
      %v3800 = vrot.slane %v3799, 1
      %v3801 = vadd.f32 %v3799, %v3800
      %v3802 = vsel %vm1324, %v3549, 0.0
      %v3803 = vsel %vm1324, %v3550, 0.0
      %v3804 = vadd.f32 %v3802, %v3803
      %v3805 = vrot.slane %v3804, 4
      %v3806 = vadd.f32 %v3804, %v3805
      %v3807 = vrot.slane %v3806, 2
      %v3808 = vadd.f32 %v3806, %v3807
      %v3809 = vrot.slane %v3808, 1
      %v3810 = vadd.f32 %v3808, %v3809
      %v3811 = vsel %vm1324, %v3551, 0.0
      %v3812 = vsel %vm1324, %v3552, 0.0
      %v3813 = vadd.f32 %v3811, %v3812
      %v3814 = vrot.slane %v3813, 4
      %v3815 = vadd.f32 %v3813, %v3814
      %v3816 = vrot.slane %v3815, 2
      %v3817 = vadd.f32 %v3815, %v3816
      %v3818 = vrot.slane %v3817, 1
      %v3819 = vadd.f32 %v3817, %v3818
      %v3820 = vsel %vm1324, %v3553, 0.0
      %v3821 = vsel %vm1324, %v3554, 0.0
      %v3822 = vadd.f32 %v3820, %v3821
      %v3823 = vrot.slane %v3822, 4
      %v3824 = vadd.f32 %v3822, %v3823
      %v3825 = vrot.slane %v3824, 2
      %v3826 = vadd.f32 %v3824, %v3825
      %v3827 = vrot.slane %v3826, 1
      %v3828 = vadd.f32 %v3826, %v3827
      %v3829 = vsel %vm1324, %v3555, 0.0
      %v3830 = vsel %vm1324, %v3556, 0.0
      %v3831 = vadd.f32 %v3829, %v3830
      %v3832 = vrot.slane %v3831, 4
      %v3833 = vadd.f32 %v3831, %v3832
      %v3834 = vrot.slane %v3833, 2
      %v3835 = vadd.f32 %v3833, %v3834
      %v3836 = vrot.slane %v3835, 1
      %v3837 = vadd.f32 %v3835, %v3836
      %v3838 = vsel %vm1324, %v3557, 0.0
      %v3839 = vsel %vm1324, %v3558, 0.0
      %v3840 = vadd.f32 %v3838, %v3839
      %v3841 = vrot.slane %v3840, 4
      %v3842 = vadd.f32 %v3840, %v3841
      %v3843 = vrot.slane %v3842, 2
      %v3844 = vadd.f32 %v3842, %v3843
      %v3845 = vrot.slane %v3844, 1
      %v3846 = vadd.f32 %v3844, %v3845
      %v3847 = vrcp.pop %v2222
      %v3848 = vrcp.pop %v2223
      %v3849 = vrcp.pop %v2224
      %v3850 = vrcp.pop %v2225
      %3852 = vset.pattern.permute.xlu0 0
      %3853 = vperm.xlu0 %3852, %v3847
      %v3854 = vpop.permute.xlu0 %3853
      %3856 = vset.pattern.permute.xlu0 0
      %3857 = vperm.xlu0 %3856, %v3848
      %v3858 = vpop.permute.xlu0 %3857
      %3860 = vset.pattern.permute.xlu0 0
      %3861 = vperm.xlu0 %3860, %v3849
      %v3862 = vpop.permute.xlu0 %3861
      %3864 = vset.pattern.permute.xlu0 0
      %3865 = vperm.xlu0 %3864, %v3850
      %v3866 = vpop.permute.xlu0 %3865
      %v3867 = vrot.slane %v3854, 1
      %v3868 = vrot.slane %v3854, 2
      %v3869 = vrot.slane %v3854, 3
      %v3870 = vrot.slane %v3854, 4
      %v3871 = vrot.slane %v3854, 5
      %v3872 = vrot.slane %v3854, 6
      %v3873 = vrot.slane %v3854, 7
      %v3874 = vrot.slane %v3858, 1
      %v3875 = vrot.slane %v3858, 2
      %v3876 = vrot.slane %v3858, 3
      %v3877 = vrot.slane %v3858, 4
      %v3878 = vrot.slane %v3858, 5
      %v3879 = vrot.slane %v3858, 6
      %v3880 = vrot.slane %v3858, 7
      %v3881 = vrot.slane %v3862, 1
      %v3882 = vrot.slane %v3862, 2
      %v3883 = vrot.slane %v3862, 3
      %v3884 = vrot.slane %v3862, 4
      %v3885 = vrot.slane %v3862, 5
      %v3886 = vrot.slane %v3862, 6
      %v3887 = vrot.slane %v3862, 7
      %v3888 = vrot.slane %v3866, 1
      %v3889 = vrot.slane %v3866, 2
      %v3890 = vrot.slane %v3866, 3
      %v3891 = vrot.slane %v3866, 4
      %v3892 = vrot.slane %v3866, 5
      %v3893 = vrot.slane %v3866, 6
      %v3894 = vrot.slane %v3866, 7
      %v3927 = vmul.f32 %v3567, %v3854
      %v3928 = vmul.f32 %v3576, %v3867
      %v3929 = vmul.f32 %v3585, %v3868
      %v3930 = vmul.f32 %v3594, %v3869
      %v3931 = vmul.f32 %v3603, %v3870
      %v3932 = vmul.f32 %v3612, %v3871
      %v3933 = vmul.f32 %v3621, %v3872
      %v3934 = vmul.f32 %v3630, %v3873
      %v3935 = vmul.f32 %v3639, %v3858
      %v3936 = vmul.f32 %v3648, %v3874
      %v3937 = vmul.f32 %v3657, %v3875
      %v3938 = vmul.f32 %v3666, %v3876
      %v3939 = vmul.f32 %v3675, %v3877
      %v3940 = vmul.f32 %v3684, %v3878
      %v3941 = vmul.f32 %v3693, %v3879
      %v3942 = vmul.f32 %v3702, %v3880
      %v3943 = vmul.f32 %v3711, %v3862
      %v3944 = vmul.f32 %v3720, %v3881
      %v3945 = vmul.f32 %v3729, %v3882
      %v3946 = vmul.f32 %v3738, %v3883
      %v3947 = vmul.f32 %v3747, %v3884
      %v3948 = vmul.f32 %v3756, %v3885
      %v3949 = vmul.f32 %v3765, %v3886
      %v3950 = vmul.f32 %v3774, %v3887
      %v3951 = vmul.f32 %v3783, %v3866
      %v3952 = vmul.f32 %v3792, %v3888
      %v3953 = vmul.f32 %v3801, %v3889
      %v3954 = vmul.f32 %v3810, %v3890
      %v3955 = vmul.f32 %v3819, %v3891
      %v3956 = vmul.f32 %v3828, %v3892
      %v3957 = vmul.f32 %v3837, %v3893
      %v3958 = vmul.f32 %v3846, %v3894
      %v3959 = vld [vmem:[%s980] sm:$0xff]
      %v3960 = vld [vmem:[%s980 + $0x8] sm:$0xff]
      %v3961 = vld [vmem:[%s980 + $0x10] sm:$0xff]
      %v3962 = vld [vmem:[%s980 + $0x18] sm:$0xff]
      %v3963 = vld [vmem:[%s980 + $0x20] sm:$0xff]
      %v3964 = vld [vmem:[%s980 + $0x28] sm:$0xff]
      %v3965 = vld [vmem:[%s980 + $0x30] sm:$0xff]
      %v3966 = vld [vmem:[%s980 + $0x38] sm:$0xff]
      %v3967 = vld [vmem:[%s980 + $0x40] sm:$0xff]
      %v3968 = vld [vmem:[%s980 + $0x48] sm:$0xff]
      %v3969 = vld [vmem:[%s980 + $0x50] sm:$0xff]
      %v3970 = vld [vmem:[%s980 + $0x58] sm:$0xff]
      %v3971 = vld [vmem:[%s980 + $0x60] sm:$0xff]
      %v3972 = vld [vmem:[%s980 + $0x68] sm:$0xff]
      %v3973 = vld [vmem:[%s980 + $0x70] sm:$0xff]
      %v3974 = vld [vmem:[%s980 + $0x78] sm:$0xff]
      %v3975 = vld [vmem:[%s980 + $0x80] sm:$0xff]
      %v3976 = vld [vmem:[%s980 + $0x88] sm:$0xff]
      %v3977 = vld [vmem:[%s980 + $0x90] sm:$0xff]
      %v3978 = vld [vmem:[%s980 + $0x98] sm:$0xff]
      %v3979 = vld [vmem:[%s980 + $0xa0] sm:$0xff]
      %v3980 = vld [vmem:[%s980 + $0xa8] sm:$0xff]
      %v3981 = vld [vmem:[%s980 + $0xb0] sm:$0xff]
      %v3982 = vld [vmem:[%s980 + $0xb8] sm:$0xff]
      %v3983 = vld [vmem:[%s980 + $0xc0] sm:$0xff]
      %v3984 = vld [vmem:[%s980 + $0xc8] sm:$0xff]
      %v3985 = vld [vmem:[%s980 + $0xd0] sm:$0xff]
      %v3986 = vld [vmem:[%s980 + $0xd8] sm:$0xff]
      %v3987 = vld [vmem:[%s980 + $0xe0] sm:$0xff]
      %v3988 = vld [vmem:[%s980 + $0xe8] sm:$0xff]
      %v3989 = vld [vmem:[%s980 + $0xf0] sm:$0xff]
      %v3990 = vld [vmem:[%s980 + $0xf8] sm:$0xff]
      %v3991 = vld [vmem:[%s986] sm:$0xff]
      %v3992 = vld [vmem:[%s986 + $0x8] sm:$0xff]
      %v3993 = vld [vmem:[%s986 + $0x10] sm:$0xff]
      %v3994 = vld [vmem:[%s986 + $0x18] sm:$0xff]
      %v3995 = vld [vmem:[%s986 + $0x20] sm:$0xff]
      %v3996 = vld [vmem:[%s986 + $0x28] sm:$0xff]
      %v3997 = vld [vmem:[%s986 + $0x30] sm:$0xff]
      %v3998 = vld [vmem:[%s986 + $0x38] sm:$0xff]
      %v3999 = vld [vmem:[%s986 + $0x40] sm:$0xff]
      %v4000 = vld [vmem:[%s986 + $0x48] sm:$0xff]
      %v4001 = vld [vmem:[%s986 + $0x50] sm:$0xff]
      %v4002 = vld [vmem:[%s986 + $0x58] sm:$0xff]
      %v4003 = vld [vmem:[%s986 + $0x60] sm:$0xff]
      %v4004 = vld [vmem:[%s986 + $0x68] sm:$0xff]
      %v4005 = vld [vmem:[%s986 + $0x70] sm:$0xff]
      %v4006 = vld [vmem:[%s986 + $0x78] sm:$0xff]
      %v4007 = vld [vmem:[%s986 + $0x80] sm:$0xff]
      %v4008 = vld [vmem:[%s986 + $0x88] sm:$0xff]
      %v4009 = vld [vmem:[%s986 + $0x90] sm:$0xff]
      %v4010 = vld [vmem:[%s986 + $0x98] sm:$0xff]
      %v4011 = vld [vmem:[%s986 + $0xa0] sm:$0xff]
      %v4012 = vld [vmem:[%s986 + $0xa8] sm:$0xff]
      %v4013 = vld [vmem:[%s986 + $0xb0] sm:$0xff]
      %v4014 = vld [vmem:[%s986 + $0xb8] sm:$0xff]
      %v4015 = vld [vmem:[%s986 + $0xc0] sm:$0xff]
      %v4016 = vld [vmem:[%s986 + $0xc8] sm:$0xff]
      %v4017 = vld [vmem:[%s986 + $0xd0] sm:$0xff]
      %v4018 = vld [vmem:[%s986 + $0xd8] sm:$0xff]
      %v4019 = vld [vmem:[%s986 + $0xe0] sm:$0xff]
      %v4020 = vld [vmem:[%s986 + $0xe8] sm:$0xff]
      %v4021 = vld [vmem:[%s986 + $0xf0] sm:$0xff]
      %v4022 = vld [vmem:[%s986 + $0xf8] sm:$0xff]
      %v4023 = vld [vmem:[%s992] sm:$0xff]
      %v4024 = vld [vmem:[%s992 + $0x8] sm:$0xff]
      %v4025 = vld [vmem:[%s992 + $0x10] sm:$0xff]
      %v4026 = vld [vmem:[%s992 + $0x18] sm:$0xff]
      %v4027 = vld [vmem:[%s17] sm:$0xff]
      %v4028 = vld [vmem:[%s18] sm:$0x1]
      %v4030 = vperm.slane %v4028, 0
      %vm4032 = vcmask 64512
      %v4034 = vsel %vm4032, %v3959, 0
      %v4037 = vsel %vm4032, %v3960, 0
      %v4040 = vsel %vm4032, %v3961, 0
      %v4043 = vsel %vm4032, %v3962, 0
      %v4046 = vsel %vm4032, %v3963, 0
      %v4049 = vsel %vm4032, %v3964, 0
      %v4052 = vsel %vm4032, %v3965, 0
      %v4055 = vsel %vm4032, %v3966, 0
      %v4058 = vsel %vm4032, %v3967, 0
      %v4061 = vsel %vm4032, %v3968, 0
      %v4064 = vsel %vm4032, %v3969, 0
      %v4067 = vsel %vm4032, %v3970, 0
      %v4070 = vsel %vm4032, %v3971, 0
      %v4073 = vsel %vm4032, %v3972, 0
      %v4076 = vsel %vm4032, %v3973, 0
      %v4079 = vsel %vm4032, %v3974, 0
      %v4082 = vsel %vm4032, %v3975, 0
      %v4085 = vsel %vm4032, %v3976, 0
      %v4088 = vsel %vm4032, %v3977, 0
      %v4091 = vsel %vm4032, %v3978, 0
      %v4094 = vsel %vm4032, %v3979, 0
      %v4097 = vsel %vm4032, %v3980, 0
      %v4100 = vsel %vm4032, %v3981, 0
      %v4103 = vsel %vm4032, %v3982, 0
      %v4106 = vsel %vm4032, %v3983, 0
      %v4109 = vsel %vm4032, %v3984, 0
      %v4112 = vsel %vm4032, %v3985, 0
      %v4115 = vsel %vm4032, %v3986, 0
      %v4118 = vsel %vm4032, %v3987, 0
      %v4121 = vsel %vm4032, %v3988, 0
      %v4124 = vsel %vm4032, %v3989, 0
      %v4127 = vsel %vm4032, %v3990, 0
      %4129 = vmatpush.msra.mxu0 0.0
      %4130 = vmatpush.msra.mxu0 0.0
      %4131 = vmatpush.msra.mxu0 0.0
      %4132 = vmatpush.msra.mxu0 0.0
      %4133 = vmatpush.msra.mxu0 0.0
      %4134 = vmatpush.msra.mxu0 0.0
      %4135 = vmatpush.msra.mxu0 0.0
      %4136 = vmatpush.msra.mxu0 0.0
      %4137 = vmatpush.msra.mxu0 0.0
      %4138 = vmatpush.msra.mxu0 0.0
      %4139 = vmatpush.msra.mxu0 0.0
      %4140 = vmatpush.msra.mxu0 0.0
      %4141 = vmatpush.msra.mxu0 0.0
      %4142 = vmatpush.msra.mxu0 0.0
      %4143 = vmatpush.msra.mxu0 0.0
      %4144 = vmatpush.msra.mxu0 %v4027
      %4145 = vmatmul.f32.gmra.mxu0 %v4034
      %v4146 = vpop.f32.mrf.mxu0
      %v4147 = vadd.f32 %v4030, %v4146
      %4148 = vmatmul.f32.gmra.mxu0 %v4037
      %v4149 = vpop.f32.mrf.mxu0
      %v4150 = vadd.f32 %v4030, %v4149
      %4151 = vmatmul.f32.gmra.mxu0 %v4040
      %v4152 = vpop.f32.mrf.mxu0
      %v4153 = vadd.f32 %v4030, %v4152
      %4154 = vmatmul.f32.gmra.mxu0 %v4043
      %v4155 = vpop.f32.mrf.mxu0
      %v4156 = vadd.f32 %v4030, %v4155
      %4157 = vmatmul.f32.gmra.mxu0 %v4046
      %v4158 = vpop.f32.mrf.mxu0
      %v4159 = vadd.f32 %v4030, %v4158
      %4160 = vmatmul.f32.gmra.mxu0 %v4049
      %v4161 = vpop.f32.mrf.mxu0
      %v4162 = vadd.f32 %v4030, %v4161
      %4163 = vmatmul.f32.gmra.mxu0 %v4052
      %v4164 = vpop.f32.mrf.mxu0
      %v4165 = vadd.f32 %v4030, %v4164
      %4166 = vmatmul.f32.gmra.mxu0 %v4055
      %v4167 = vpop.f32.mrf.mxu0
      %v4168 = vadd.f32 %v4030, %v4167
      %4169 = vmatmul.f32.gmra.mxu0 %v4058
      %v4170 = vpop.f32.mrf.mxu0
      %v4171 = vadd.f32 %v4030, %v4170
      %4172 = vmatmul.f32.gmra.mxu0 %v4061
      %v4173 = vpop.f32.mrf.mxu0
      %v4174 = vadd.f32 %v4030, %v4173
      %4175 = vmatmul.f32.gmra.mxu0 %v4064
      %v4176 = vpop.f32.mrf.mxu0
      %v4177 = vadd.f32 %v4030, %v4176
      %4178 = vmatmul.f32.gmra.mxu0 %v4067
      %v4179 = vpop.f32.mrf.mxu0
      %v4180 = vadd.f32 %v4030, %v4179
      %4181 = vmatmul.f32.gmra.mxu0 %v4070
      %v4182 = vpop.f32.mrf.mxu0
      %v4183 = vadd.f32 %v4030, %v4182
      %4184 = vmatmul.f32.gmra.mxu0 %v4073
      %v4185 = vpop.f32.mrf.mxu0
      %v4186 = vadd.f32 %v4030, %v4185
      %4187 = vmatmul.f32.gmra.mxu0 %v4076
      %v4188 = vpop.f32.mrf.mxu0
      %v4189 = vadd.f32 %v4030, %v4188
      %4190 = vmatmul.f32.gmra.mxu0 %v4079
      %v4191 = vpop.f32.mrf.mxu0
      %v4192 = vadd.f32 %v4030, %v4191
      %4193 = vmatmul.f32.gmra.mxu0 %v4082
      %v4194 = vpop.f32.mrf.mxu0
      %v4195 = vadd.f32 %v4030, %v4194
      %4196 = vmatmul.f32.gmra.mxu0 %v4085
      %v4197 = vpop.f32.mrf.mxu0
      %v4198 = vadd.f32 %v4030, %v4197
      %4199 = vmatmul.f32.gmra.mxu0 %v4088
      %v4200 = vpop.f32.mrf.mxu0
      %v4201 = vadd.f32 %v4030, %v4200
      %4202 = vmatmul.f32.gmra.mxu0 %v4091
      %v4203 = vpop.f32.mrf.mxu0
      %v4204 = vadd.f32 %v4030, %v4203
      %4205 = vmatmul.f32.gmra.mxu0 %v4094
      %v4206 = vpop.f32.mrf.mxu0
      %v4207 = vadd.f32 %v4030, %v4206
      %4208 = vmatmul.f32.gmra.mxu0 %v4097
      %v4209 = vpop.f32.mrf.mxu0
      %v4210 = vadd.f32 %v4030, %v4209
      %4211 = vmatmul.f32.gmra.mxu0 %v4100
      %v4212 = vpop.f32.mrf.mxu0
      %v4213 = vadd.f32 %v4030, %v4212
      %4214 = vmatmul.f32.gmra.mxu0 %v4103
      %v4215 = vpop.f32.mrf.mxu0
      %v4216 = vadd.f32 %v4030, %v4215
      %4217 = vmatmul.f32.gmra.mxu0 %v4106
      %v4218 = vpop.f32.mrf.mxu0
      %v4219 = vadd.f32 %v4030, %v4218
      %4220 = vmatmul.f32.gmra.mxu0 %v4109
      %v4221 = vpop.f32.mrf.mxu0
      %v4222 = vadd.f32 %v4030, %v4221
      %4223 = vmatmul.f32.gmra.mxu0 %v4112
      %v4224 = vpop.f32.mrf.mxu0
      %v4225 = vadd.f32 %v4030, %v4224
      %4226 = vmatmul.f32.gmra.mxu0 %v4115
      %v4227 = vpop.f32.mrf.mxu0
      %v4228 = vadd.f32 %v4030, %v4227
      %4229 = vmatmul.f32.gmra.mxu0 %v4118
      %v4230 = vpop.f32.mrf.mxu0
      %v4231 = vadd.f32 %v4030, %v4230
      %4232 = vmatmul.f32.gmra.mxu0 %v4121
      %v4233 = vpop.f32.mrf.mxu0
      %v4234 = vadd.f32 %v4030, %v4233
      %4235 = vmatmul.f32.gmra.mxu0 %v4124
      %v4236 = vpop.f32.mrf.mxu0
      %v4237 = vadd.f32 %v4030, %v4236
      %4238 = vmatmul.f32.gmra.mxu0 %v4127
      %v4239 = vpop.f32.mrf.mxu0
      %v4240 = vadd.f32 %v4030, %v4239
      %4241 = vdwg.mxu0
      %v4242 = vmax.f32 %v4147, 0.0
      %v4243 = vmax.f32 %v4150, 0.0
      %v4244 = vmax.f32 %v4153, 0.0
      %v4245 = vmax.f32 %v4156, 0.0
      %v4246 = vmax.f32 %v4159, 0.0
      %v4247 = vmax.f32 %v4162, 0.0
      %v4248 = vmax.f32 %v4165, 0.0
      %v4249 = vmax.f32 %v4168, 0.0
      %v4250 = vmax.f32 %v4171, 0.0
      %v4251 = vmax.f32 %v4174, 0.0
      %v4252 = vmax.f32 %v4177, 0.0
      %v4253 = vmax.f32 %v4180, 0.0
      %v4254 = vmax.f32 %v4183, 0.0
      %v4255 = vmax.f32 %v4186, 0.0
      %v4256 = vmax.f32 %v4189, 0.0
      %v4257 = vmax.f32 %v4192, 0.0
      %v4258 = vmax.f32 %v4195, 0.0
      %v4259 = vmax.f32 %v4198, 0.0
      %v4260 = vmax.f32 %v4201, 0.0
      %v4261 = vmax.f32 %v4204, 0.0
      %v4262 = vmax.f32 %v4207, 0.0
      %v4263 = vmax.f32 %v4210, 0.0
      %v4264 = vmax.f32 %v4213, 0.0
      %v4265 = vmax.f32 %v4216, 0.0
      %v4266 = vmax.f32 %v4219, 0.0
      %v4267 = vmax.f32 %v4222, 0.0
      %v4268 = vmax.f32 %v4225, 0.0
      %v4269 = vmax.f32 %v4228, 0.0
      %v4270 = vmax.f32 %v4231, 0.0
      %v4271 = vmax.f32 %v4234, 0.0
      %v4272 = vmax.f32 %v4237, 0.0
      %v4273 = vmax.f32 %v4240, 0.0
      %v4274 = vld [vmem:[%s19] sm:$0xff]
      %v4275 = vld [vmem:[%s19 + $0x8] sm:$0xff]
      %v4276 = vld [vmem:[%s19 + $0x10] sm:$0xff]
      %v4277 = vld [vmem:[%s19 + $0x18] sm:$0xff]
      %v4278 = vld [vmem:[%s20] sm:$0x1]
      %v4280 = vperm.slane %v4278, 0
      %v4283 = vsel %vm1324, %v4242, 0
      %v4286 = vsel %vm1324, %v4243, 0
      %v4289 = vsel %vm1324, %v4244, 0
      %v4292 = vsel %vm1324, %v4245, 0
      %v4295 = vsel %vm1324, %v4246, 0
      %v4298 = vsel %vm1324, %v4247, 0
      %v4301 = vsel %vm1324, %v4248, 0
      %v4304 = vsel %vm1324, %v4249, 0
      %v4307 = vsel %vm1324, %v4250, 0
      %v4310 = vsel %vm1324, %v4251, 0
      %v4313 = vsel %vm1324, %v4252, 0
      %v4316 = vsel %vm1324, %v4253, 0
      %v4319 = vsel %vm1324, %v4254, 0
      %v4322 = vsel %vm1324, %v4255, 0
      %v4325 = vsel %vm1324, %v4256, 0
      %v4328 = vsel %vm1324, %v4257, 0
      %v4331 = vsel %vm1324, %v4258, 0
      %v4334 = vsel %vm1324, %v4259, 0
      %v4337 = vsel %vm1324, %v4260, 0
      %v4340 = vsel %vm1324, %v4261, 0
      %v4343 = vsel %vm1324, %v4262, 0
      %v4346 = vsel %vm1324, %v4263, 0
      %v4349 = vsel %vm1324, %v4264, 0
      %v4352 = vsel %vm1324, %v4265, 0
      %v4355 = vsel %vm1324, %v4266, 0
      %v4358 = vsel %vm1324, %v4267, 0
      %v4361 = vsel %vm1324, %v4268, 0
      %v4364 = vsel %vm1324, %v4269, 0
      %v4367 = vsel %vm1324, %v4270, 0
      %v4370 = vsel %vm1324, %v4271, 0
      %v4373 = vsel %vm1324, %v4272, 0
      %v4376 = vsel %vm1324, %v4273, 0
      %4378 = vmatpush.msra.mxu0 0.0
      %4379 = vmatpush.msra.mxu0 0.0
      %4380 = vmatpush.msra.mxu0 0.0
      %4381 = vmatpush.msra.mxu0 0.0
      %4382 = vmatpush.msra.mxu0 0.0
      %4383 = vmatpush.msra.mxu0 0.0
      %4384 = vmatpush.msra.mxu0 0.0
      %4385 = vmatpush.msra.mxu0 0.0
      %4386 = vmatpush.msra.mxu0 0.0
      %4387 = vmatpush.msra.mxu0 0.0
      %4388 = vmatpush.msra.mxu0 0.0
      %4389 = vmatpush.msra.mxu0 0.0
      %4390 = vmatpush.msra.mxu0 %v4277
      %4391 = vmatpush.msra.mxu0 %v4276
      %4392 = vmatpush.msra.mxu0 %v4275
      %4393 = vmatpush.msra.mxu0 %v4274
      %4394 = vmatmul.f32.gmra.mxu0 %v4283
      %v4395 = vpop.f32.mrf.mxu0
      %v4396 = vadd.f32 %v4280, %v4395
      %4397 = vmatmul.f32.gmra.mxu0 %v4286
      %v4398 = vpop.f32.mrf.mxu0
      %v4399 = vadd.f32 %v4280, %v4398
      %4400 = vmatmul.f32.gmra.mxu0 %v4289
      %v4401 = vpop.f32.mrf.mxu0
      %v4402 = vadd.f32 %v4280, %v4401
      %4403 = vmatmul.f32.gmra.mxu0 %v4292
      %v4404 = vpop.f32.mrf.mxu0
      %v4405 = vadd.f32 %v4280, %v4404
      %4406 = vmatmul.f32.gmra.mxu0 %v4295
      %v4407 = vpop.f32.mrf.mxu0
      %v4408 = vadd.f32 %v4280, %v4407
      %4409 = vmatmul.f32.gmra.mxu0 %v4298
      %v4410 = vpop.f32.mrf.mxu0
      %v4411 = vadd.f32 %v4280, %v4410
      %4412 = vmatmul.f32.gmra.mxu0 %v4301
      %v4413 = vpop.f32.mrf.mxu0
      %v4414 = vadd.f32 %v4280, %v4413
      %4415 = vmatmul.f32.gmra.mxu0 %v4304
      %v4416 = vpop.f32.mrf.mxu0
      %v4417 = vadd.f32 %v4280, %v4416
      %4418 = vmatmul.f32.gmra.mxu0 %v4307
      %v4419 = vpop.f32.mrf.mxu0
      %v4420 = vadd.f32 %v4280, %v4419
      %4421 = vmatmul.f32.gmra.mxu0 %v4310
      %v4422 = vpop.f32.mrf.mxu0
      %v4423 = vadd.f32 %v4280, %v4422
      %4424 = vmatmul.f32.gmra.mxu0 %v4313
      %v4425 = vpop.f32.mrf.mxu0
      %v4426 = vadd.f32 %v4280, %v4425
      %4427 = vmatmul.f32.gmra.mxu0 %v4316
      %v4428 = vpop.f32.mrf.mxu0
      %v4429 = vadd.f32 %v4280, %v4428
      %4430 = vmatmul.f32.gmra.mxu0 %v4319
      %v4431 = vpop.f32.mrf.mxu0
      %v4432 = vadd.f32 %v4280, %v4431
      %4433 = vmatmul.f32.gmra.mxu0 %v4322
      %v4434 = vpop.f32.mrf.mxu0
      %v4435 = vadd.f32 %v4280, %v4434
      %4436 = vmatmul.f32.gmra.mxu0 %v4325
      %v4437 = vpop.f32.mrf.mxu0
      %v4438 = vadd.f32 %v4280, %v4437
      %4439 = vmatmul.f32.gmra.mxu0 %v4328
      %v4440 = vpop.f32.mrf.mxu0
      %v4441 = vadd.f32 %v4280, %v4440
      %4442 = vmatmul.f32.gmra.mxu0 %v4331
      %v4443 = vpop.f32.mrf.mxu0
      %v4444 = vadd.f32 %v4280, %v4443
      %4445 = vmatmul.f32.gmra.mxu0 %v4334
      %v4446 = vpop.f32.mrf.mxu0
      %v4447 = vadd.f32 %v4280, %v4446
      %4448 = vmatmul.f32.gmra.mxu0 %v4337
      %v4449 = vpop.f32.mrf.mxu0
      %v4450 = vadd.f32 %v4280, %v4449
      %4451 = vmatmul.f32.gmra.mxu0 %v4340
      %v4452 = vpop.f32.mrf.mxu0
      %v4453 = vadd.f32 %v4280, %v4452
      %4454 = vmatmul.f32.gmra.mxu0 %v4343
      %v4455 = vpop.f32.mrf.mxu0
      %v4456 = vadd.f32 %v4280, %v4455
      %4457 = vmatmul.f32.gmra.mxu0 %v4346
      %v4458 = vpop.f32.mrf.mxu0
      %v4459 = vadd.f32 %v4280, %v4458
      %4460 = vmatmul.f32.gmra.mxu0 %v4349
      %v4461 = vpop.f32.mrf.mxu0
      %v4462 = vadd.f32 %v4280, %v4461
      %4463 = vmatmul.f32.gmra.mxu0 %v4352
      %v4464 = vpop.f32.mrf.mxu0
      %v4465 = vadd.f32 %v4280, %v4464
      %4466 = vmatmul.f32.gmra.mxu0 %v4355
      %v4467 = vpop.f32.mrf.mxu0
      %v4468 = vadd.f32 %v4280, %v4467
      %4469 = vmatmul.f32.gmra.mxu0 %v4358
      %v4470 = vpop.f32.mrf.mxu0
      %v4471 = vadd.f32 %v4280, %v4470
      %4472 = vmatmul.f32.gmra.mxu0 %v4361
      %v4473 = vpop.f32.mrf.mxu0
      %v4474 = vadd.f32 %v4280, %v4473
      %4475 = vmatmul.f32.gmra.mxu0 %v4364
      %v4476 = vpop.f32.mrf.mxu0
      %v4477 = vadd.f32 %v4280, %v4476
      %4478 = vmatmul.f32.gmra.mxu0 %v4367
      %v4479 = vpop.f32.mrf.mxu0
      %v4480 = vadd.f32 %v4280, %v4479
      %4481 = vmatmul.f32.gmra.mxu0 %v4370
      %v4482 = vpop.f32.mrf.mxu0
      %v4483 = vadd.f32 %v4280, %v4482
      %4484 = vmatmul.f32.gmra.mxu0 %v4373
      %v4485 = vpop.f32.mrf.mxu0
      %v4486 = vadd.f32 %v4280, %v4485
      %4487 = vmatmul.f32.gmra.mxu0 %v4376
      %v4488 = vpop.f32.mrf.mxu0
      %v4489 = vadd.f32 %v4280, %v4488
      %4490 = vdwg.mxu0
      %v4491 = vmax.f32 %v4396, 0.0
      %v4492 = vmax.f32 %v4399, 0.0
      %v4493 = vmax.f32 %v4402, 0.0
      %v4494 = vmax.f32 %v4405, 0.0
      %v4495 = vmax.f32 %v4408, 0.0
      %v4496 = vmax.f32 %v4411, 0.0
      %v4497 = vmax.f32 %v4414, 0.0
      %v4498 = vmax.f32 %v4417, 0.0
      %v4499 = vmax.f32 %v4420, 0.0
      %v4500 = vmax.f32 %v4423, 0.0
      %v4501 = vmax.f32 %v4426, 0.0
      %v4502 = vmax.f32 %v4429, 0.0
      %v4503 = vmax.f32 %v4432, 0.0
      %v4504 = vmax.f32 %v4435, 0.0
      %v4505 = vmax.f32 %v4438, 0.0
      %v4506 = vmax.f32 %v4441, 0.0
      %v4507 = vmax.f32 %v4444, 0.0
      %v4508 = vmax.f32 %v4447, 0.0
      %v4509 = vmax.f32 %v4450, 0.0
      %v4510 = vmax.f32 %v4453, 0.0
      %v4511 = vmax.f32 %v4456, 0.0
      %v4512 = vmax.f32 %v4459, 0.0
      %v4513 = vmax.f32 %v4462, 0.0
      %v4514 = vmax.f32 %v4465, 0.0
      %v4515 = vmax.f32 %v4468, 0.0
      %v4516 = vmax.f32 %v4471, 0.0
      %v4517 = vmax.f32 %v4474, 0.0
      %v4518 = vmax.f32 %v4477, 0.0
      %v4519 = vmax.f32 %v4480, 0.0
      %v4520 = vmax.f32 %v4483, 0.0
      %v4521 = vmax.f32 %v4486, 0.0
      %v4522 = vmax.f32 %v4489, 0.0
      %4524 = vset.pattern.permute.xlu0 0
      %4525 = vperm.xlu0 %4524, %v3991
      %v4526 = vpop.permute.xlu0 %4525
      %4529 = vset.pattern.permute.xlu0 0
      %4530 = vperm.xlu0 %4529, %v3992
      %v4531 = vpop.permute.xlu0 %4530
      %4534 = vset.pattern.permute.xlu0 0
      %4535 = vperm.xlu0 %4534, %v3993
      %v4536 = vpop.permute.xlu0 %4535
      %4539 = vset.pattern.permute.xlu0 0
      %4540 = vperm.xlu0 %4539, %v3994
      %v4541 = vpop.permute.xlu0 %4540
      %4544 = vset.pattern.permute.xlu0 0
      %4545 = vperm.xlu0 %4544, %v3995
      %v4546 = vpop.permute.xlu0 %4545
      %4549 = vset.pattern.permute.xlu0 0
      %4550 = vperm.xlu0 %4549, %v3996
      %v4551 = vpop.permute.xlu0 %4550
      %4554 = vset.pattern.permute.xlu0 0
      %4555 = vperm.xlu0 %4554, %v3997
      %v4556 = vpop.permute.xlu0 %4555
      %4559 = vset.pattern.permute.xlu0 0
      %4560 = vperm.xlu0 %4559, %v3998
      %v4561 = vpop.permute.xlu0 %4560
      %4564 = vset.pattern.permute.xlu0 0
      %4565 = vperm.xlu0 %4564, %v3999
      %v4566 = vpop.permute.xlu0 %4565
      %4569 = vset.pattern.permute.xlu0 0
      %4570 = vperm.xlu0 %4569, %v4000
      %v4571 = vpop.permute.xlu0 %4570
      %4574 = vset.pattern.permute.xlu0 0
      %4575 = vperm.xlu0 %4574, %v4001
      %v4576 = vpop.permute.xlu0 %4575
      %4579 = vset.pattern.permute.xlu0 0
      %4580 = vperm.xlu0 %4579, %v4002
      %v4581 = vpop.permute.xlu0 %4580
      %4584 = vset.pattern.permute.xlu0 0
      %4585 = vperm.xlu0 %4584, %v4003
      %v4586 = vpop.permute.xlu0 %4585
      %4589 = vset.pattern.permute.xlu0 0
      %4590 = vperm.xlu0 %4589, %v4004
      %v4591 = vpop.permute.xlu0 %4590
      %4594 = vset.pattern.permute.xlu0 0
      %4595 = vperm.xlu0 %4594, %v4005
      %v4596 = vpop.permute.xlu0 %4595
      %4599 = vset.pattern.permute.xlu0 0
      %4600 = vperm.xlu0 %4599, %v4006
      %v4601 = vpop.permute.xlu0 %4600
      %4604 = vset.pattern.permute.xlu0 0
      %4605 = vperm.xlu0 %4604, %v4007
      %v4606 = vpop.permute.xlu0 %4605
      %4609 = vset.pattern.permute.xlu0 0
      %4610 = vperm.xlu0 %4609, %v4008
      %v4611 = vpop.permute.xlu0 %4610
      %4614 = vset.pattern.permute.xlu0 0
      %4615 = vperm.xlu0 %4614, %v4009
      %v4616 = vpop.permute.xlu0 %4615
      %4619 = vset.pattern.permute.xlu0 0
      %4620 = vperm.xlu0 %4619, %v4010
      %v4621 = vpop.permute.xlu0 %4620
      %4624 = vset.pattern.permute.xlu0 0
      %4625 = vperm.xlu0 %4624, %v4011
      %v4626 = vpop.permute.xlu0 %4625
      %4629 = vset.pattern.permute.xlu0 0
      %4630 = vperm.xlu0 %4629, %v4012
      %v4631 = vpop.permute.xlu0 %4630
      %4634 = vset.pattern.permute.xlu0 0
      %4635 = vperm.xlu0 %4634, %v4013
      %v4636 = vpop.permute.xlu0 %4635
      %4639 = vset.pattern.permute.xlu0 0
      %4640 = vperm.xlu0 %4639, %v4014
      %v4641 = vpop.permute.xlu0 %4640
      %4644 = vset.pattern.permute.xlu0 0
      %4645 = vperm.xlu0 %4644, %v4015
      %v4646 = vpop.permute.xlu0 %4645
      %4649 = vset.pattern.permute.xlu0 0
      %4650 = vperm.xlu0 %4649, %v4016
      %v4651 = vpop.permute.xlu0 %4650
      %4654 = vset.pattern.permute.xlu0 0
      %4655 = vperm.xlu0 %4654, %v4017
      %v4656 = vpop.permute.xlu0 %4655
      %4659 = vset.pattern.permute.xlu0 0
      %4660 = vperm.xlu0 %4659, %v4018
      %v4661 = vpop.permute.xlu0 %4660
      %4664 = vset.pattern.permute.xlu0 0
      %4665 = vperm.xlu0 %4664, %v4019
      %v4666 = vpop.permute.xlu0 %4665
      %4669 = vset.pattern.permute.xlu0 0
      %4670 = vperm.xlu0 %4669, %v4020
      %v4671 = vpop.permute.xlu0 %4670
      %4674 = vset.pattern.permute.xlu0 0
      %4675 = vperm.xlu0 %4674, %v4021
      %v4676 = vpop.permute.xlu0 %4675
      %4679 = vset.pattern.permute.xlu0 0
      %4680 = vperm.xlu0 %4679, %v4022
      %v4681 = vpop.permute.xlu0 %4680
      %v4683 = vmul.f32 %v4491, %v4526
      %v4684 = vmul.f32 %v4492, %v4531
      %v4685 = vmul.f32 %v4493, %v4536
      %v4686 = vmul.f32 %v4494, %v4541
      %v4687 = vmul.f32 %v4495, %v4546
      %v4688 = vmul.f32 %v4496, %v4551
      %v4689 = vmul.f32 %v4497, %v4556
      %v4690 = vmul.f32 %v4498, %v4561
      %v4691 = vmul.f32 %v4499, %v4566
      %v4692 = vmul.f32 %v4500, %v4571
      %v4693 = vmul.f32 %v4501, %v4576
      %v4694 = vmul.f32 %v4502, %v4581
      %v4695 = vmul.f32 %v4503, %v4586
      %v4696 = vmul.f32 %v4504, %v4591
      %v4697 = vmul.f32 %v4505, %v4596
      %v4698 = vmul.f32 %v4506, %v4601
      %v4699 = vmul.f32 %v4507, %v4606
      %v4700 = vmul.f32 %v4508, %v4611
      %v4701 = vmul.f32 %v4509, %v4616
      %v4702 = vmul.f32 %v4510, %v4621
      %v4703 = vmul.f32 %v4511, %v4626
      %v4704 = vmul.f32 %v4512, %v4631
      %v4705 = vmul.f32 %v4513, %v4636
      %v4706 = vmul.f32 %v4514, %v4641
      %v4707 = vmul.f32 %v4515, %v4646
      %v4708 = vmul.f32 %v4516, %v4651
      %v4709 = vmul.f32 %v4517, %v4656
      %v4710 = vmul.f32 %v4518, %v4661
      %v4711 = vmul.f32 %v4519, %v4666
      %v4712 = vmul.f32 %v4520, %v4671
      %v4713 = vmul.f32 %v4521, %v4676
      %v4714 = vmul.f32 %v4522, %v4681
      %v4715 = vsel %vm1324, %v4683, 0.0
      %v4716 = vrot.slane %v4715, 4
      %v4717 = vadd.f32 %v4715, %v4716
      %v4718 = vrot.slane %v4717, 2
      %v4719 = vadd.f32 %v4717, %v4718
      %v4720 = vrot.slane %v4719, 1
      %v4721 = vadd.f32 %v4719, %v4720
      %v4722 = vsel %vm1324, %v4684, 0.0
      %v4723 = vrot.slane %v4722, 4
      %v4724 = vadd.f32 %v4722, %v4723
      %v4725 = vrot.slane %v4724, 2
      %v4726 = vadd.f32 %v4724, %v4725
      %v4727 = vrot.slane %v4726, 1
      %v4728 = vadd.f32 %v4726, %v4727
      %v4729 = vsel %vm1324, %v4685, 0.0
      %v4730 = vrot.slane %v4729, 4
      %v4731 = vadd.f32 %v4729, %v4730
      %v4732 = vrot.slane %v4731, 2
      %v4733 = vadd.f32 %v4731, %v4732
      %v4734 = vrot.slane %v4733, 1
      %v4735 = vadd.f32 %v4733, %v4734
      %v4736 = vsel %vm1324, %v4686, 0.0
      %v4737 = vrot.slane %v4736, 4
      %v4738 = vadd.f32 %v4736, %v4737
      %v4739 = vrot.slane %v4738, 2
      %v4740 = vadd.f32 %v4738, %v4739
      %v4741 = vrot.slane %v4740, 1
      %v4742 = vadd.f32 %v4740, %v4741
      %v4743 = vsel %vm1324, %v4687, 0.0
      %v4744 = vrot.slane %v4743, 4
      %v4745 = vadd.f32 %v4743, %v4744
      %v4746 = vrot.slane %v4745, 2
      %v4747 = vadd.f32 %v4745, %v4746
      %v4748 = vrot.slane %v4747, 1
      %v4749 = vadd.f32 %v4747, %v4748
      %v4750 = vsel %vm1324, %v4688, 0.0
      %v4751 = vrot.slane %v4750, 4
      %v4752 = vadd.f32 %v4750, %v4751
      %v4753 = vrot.slane %v4752, 2
      %v4754 = vadd.f32 %v4752, %v4753
      %v4755 = vrot.slane %v4754, 1
      %v4756 = vadd.f32 %v4754, %v4755
      %v4757 = vsel %vm1324, %v4689, 0.0
      %v4758 = vrot.slane %v4757, 4
      %v4759 = vadd.f32 %v4757, %v4758
      %v4760 = vrot.slane %v4759, 2
      %v4761 = vadd.f32 %v4759, %v4760
      %v4762 = vrot.slane %v4761, 1
      %v4763 = vadd.f32 %v4761, %v4762
      %v4764 = vsel %vm1324, %v4690, 0.0
      %v4765 = vrot.slane %v4764, 4
      %v4766 = vadd.f32 %v4764, %v4765
      %v4767 = vrot.slane %v4766, 2
      %v4768 = vadd.f32 %v4766, %v4767
      %v4769 = vrot.slane %v4768, 1
      %v4770 = vadd.f32 %v4768, %v4769
      %v4771 = vsel %vm1324, %v4691, 0.0
      %v4772 = vrot.slane %v4771, 4
      %v4773 = vadd.f32 %v4771, %v4772
      %v4774 = vrot.slane %v4773, 2
      %v4775 = vadd.f32 %v4773, %v4774
      %v4776 = vrot.slane %v4775, 1
      %v4777 = vadd.f32 %v4775, %v4776
      %v4778 = vsel %vm1324, %v4692, 0.0
      %v4779 = vrot.slane %v4778, 4
      %v4780 = vadd.f32 %v4778, %v4779
      %v4781 = vrot.slane %v4780, 2
      %v4782 = vadd.f32 %v4780, %v4781
      %v4783 = vrot.slane %v4782, 1
      %v4784 = vadd.f32 %v4782, %v4783
      %v4785 = vsel %vm1324, %v4693, 0.0
      %v4786 = vrot.slane %v4785, 4
      %v4787 = vadd.f32 %v4785, %v4786
      %v4788 = vrot.slane %v4787, 2
      %v4789 = vadd.f32 %v4787, %v4788
      %v4790 = vrot.slane %v4789, 1
      %v4791 = vadd.f32 %v4789, %v4790
      %v4792 = vsel %vm1324, %v4694, 0.0
      %v4793 = vrot.slane %v4792, 4
      %v4794 = vadd.f32 %v4792, %v4793
      %v4795 = vrot.slane %v4794, 2
      %v4796 = vadd.f32 %v4794, %v4795
      %v4797 = vrot.slane %v4796, 1
      %v4798 = vadd.f32 %v4796, %v4797
      %v4799 = vsel %vm1324, %v4695, 0.0
      %v4800 = vrot.slane %v4799, 4
      %v4801 = vadd.f32 %v4799, %v4800
      %v4802 = vrot.slane %v4801, 2
      %v4803 = vadd.f32 %v4801, %v4802
      %v4804 = vrot.slane %v4803, 1
      %v4805 = vadd.f32 %v4803, %v4804
      %v4806 = vsel %vm1324, %v4696, 0.0
      %v4807 = vrot.slane %v4806, 4
      %v4808 = vadd.f32 %v4806, %v4807
      %v4809 = vrot.slane %v4808, 2
      %v4810 = vadd.f32 %v4808, %v4809
      %v4811 = vrot.slane %v4810, 1
      %v4812 = vadd.f32 %v4810, %v4811
      %v4813 = vsel %vm1324, %v4697, 0.0
      %v4814 = vrot.slane %v4813, 4
      %v4815 = vadd.f32 %v4813, %v4814
      %v4816 = vrot.slane %v4815, 2
      %v4817 = vadd.f32 %v4815, %v4816
      %v4818 = vrot.slane %v4817, 1
      %v4819 = vadd.f32 %v4817, %v4818
      %v4820 = vsel %vm1324, %v4698, 0.0
      %v4821 = vrot.slane %v4820, 4
      %v4822 = vadd.f32 %v4820, %v4821
      %v4823 = vrot.slane %v4822, 2
      %v4824 = vadd.f32 %v4822, %v4823
      %v4825 = vrot.slane %v4824, 1
      %v4826 = vadd.f32 %v4824, %v4825
      %v4827 = vsel %vm1324, %v4699, 0.0
      %v4828 = vrot.slane %v4827, 4
      %v4829 = vadd.f32 %v4827, %v4828
      %v4830 = vrot.slane %v4829, 2
      %v4831 = vadd.f32 %v4829, %v4830
      %v4832 = vrot.slane %v4831, 1
      %v4833 = vadd.f32 %v4831, %v4832
      %v4834 = vsel %vm1324, %v4700, 0.0
      %v4835 = vrot.slane %v4834, 4
      %v4836 = vadd.f32 %v4834, %v4835
      %v4837 = vrot.slane %v4836, 2
      %v4838 = vadd.f32 %v4836, %v4837
      %v4839 = vrot.slane %v4838, 1
      %v4840 = vadd.f32 %v4838, %v4839
      %v4841 = vsel %vm1324, %v4701, 0.0
      %v4842 = vrot.slane %v4841, 4
      %v4843 = vadd.f32 %v4841, %v4842
      %v4844 = vrot.slane %v4843, 2
      %v4845 = vadd.f32 %v4843, %v4844
      %v4846 = vrot.slane %v4845, 1
      %v4847 = vadd.f32 %v4845, %v4846
      %v4848 = vsel %vm1324, %v4702, 0.0
      %v4849 = vrot.slane %v4848, 4
      %v4850 = vadd.f32 %v4848, %v4849
      %v4851 = vrot.slane %v4850, 2
      %v4852 = vadd.f32 %v4850, %v4851
      %v4853 = vrot.slane %v4852, 1
      %v4854 = vadd.f32 %v4852, %v4853
      %v4855 = vsel %vm1324, %v4703, 0.0
      %v4856 = vrot.slane %v4855, 4
      %v4857 = vadd.f32 %v4855, %v4856
      %v4858 = vrot.slane %v4857, 2
      %v4859 = vadd.f32 %v4857, %v4858
      %v4860 = vrot.slane %v4859, 1
      %v4861 = vadd.f32 %v4859, %v4860
      %v4862 = vsel %vm1324, %v4704, 0.0
      %v4863 = vrot.slane %v4862, 4
      %v4864 = vadd.f32 %v4862, %v4863
      %v4865 = vrot.slane %v4864, 2
      %v4866 = vadd.f32 %v4864, %v4865
      %v4867 = vrot.slane %v4866, 1
      %v4868 = vadd.f32 %v4866, %v4867
      %v4869 = vsel %vm1324, %v4705, 0.0
      %v4870 = vrot.slane %v4869, 4
      %v4871 = vadd.f32 %v4869, %v4870
      %v4872 = vrot.slane %v4871, 2
      %v4873 = vadd.f32 %v4871, %v4872
      %v4874 = vrot.slane %v4873, 1
      %v4875 = vadd.f32 %v4873, %v4874
      %v4876 = vsel %vm1324, %v4706, 0.0
      %v4877 = vrot.slane %v4876, 4
      %v4878 = vadd.f32 %v4876, %v4877
      %v4879 = vrot.slane %v4878, 2
      %v4880 = vadd.f32 %v4878, %v4879
      %v4881 = vrot.slane %v4880, 1
      %v4882 = vadd.f32 %v4880, %v4881
      %v4883 = vsel %vm1324, %v4707, 0.0
      %v4884 = vrot.slane %v4883, 4
      %v4885 = vadd.f32 %v4883, %v4884
      %v4886 = vrot.slane %v4885, 2
      %v4887 = vadd.f32 %v4885, %v4886
      %v4888 = vrot.slane %v4887, 1
      %v4889 = vadd.f32 %v4887, %v4888
      %v4890 = vsel %vm1324, %v4708, 0.0
      %v4891 = vrot.slane %v4890, 4
      %v4892 = vadd.f32 %v4890, %v4891
      %v4893 = vrot.slane %v4892, 2
      %v4894 = vadd.f32 %v4892, %v4893
      %v4895 = vrot.slane %v4894, 1
      %v4896 = vadd.f32 %v4894, %v4895
      %v4897 = vsel %vm1324, %v4709, 0.0
      %v4898 = vrot.slane %v4897, 4
      %v4899 = vadd.f32 %v4897, %v4898
      %v4900 = vrot.slane %v4899, 2
      %v4901 = vadd.f32 %v4899, %v4900
      %v4902 = vrot.slane %v4901, 1
      %v4903 = vadd.f32 %v4901, %v4902
      %v4904 = vsel %vm1324, %v4710, 0.0
      %v4905 = vrot.slane %v4904, 4
      %v4906 = vadd.f32 %v4904, %v4905
      %v4907 = vrot.slane %v4906, 2
      %v4908 = vadd.f32 %v4906, %v4907
      %v4909 = vrot.slane %v4908, 1
      %v4910 = vadd.f32 %v4908, %v4909
      %v4911 = vsel %vm1324, %v4711, 0.0
      %v4912 = vrot.slane %v4911, 4
      %v4913 = vadd.f32 %v4911, %v4912
      %v4914 = vrot.slane %v4913, 2
      %v4915 = vadd.f32 %v4913, %v4914
      %v4916 = vrot.slane %v4915, 1
      %v4917 = vadd.f32 %v4915, %v4916
      %v4918 = vsel %vm1324, %v4712, 0.0
      %v4919 = vrot.slane %v4918, 4
      %v4920 = vadd.f32 %v4918, %v4919
      %v4921 = vrot.slane %v4920, 2
      %v4922 = vadd.f32 %v4920, %v4921
      %v4923 = vrot.slane %v4922, 1
      %v4924 = vadd.f32 %v4922, %v4923
      %v4925 = vsel %vm1324, %v4713, 0.0
      %v4926 = vrot.slane %v4925, 4
      %v4927 = vadd.f32 %v4925, %v4926
      %v4928 = vrot.slane %v4927, 2
      %v4929 = vadd.f32 %v4927, %v4928
      %v4930 = vrot.slane %v4929, 1
      %v4931 = vadd.f32 %v4929, %v4930
      %v4932 = vsel %vm1324, %v4714, 0.0
      %v4933 = vrot.slane %v4932, 4
      %v4934 = vadd.f32 %v4932, %v4933
      %v4935 = vrot.slane %v4934, 2
      %v4936 = vadd.f32 %v4934, %v4935
      %v4937 = vrot.slane %v4936, 1
      %v4938 = vadd.f32 %v4936, %v4937
      %v4939 = vrcp.pop %v4023
      %v4940 = vrcp.pop %v4024
      %v4941 = vrcp.pop %v4025
      %v4942 = vrcp.pop %v4026
      %4944 = vset.pattern.permute.xlu0 0
      %4945 = vperm.xlu0 %4944, %v4939
      %v4946 = vpop.permute.xlu0 %4945
      %4948 = vset.pattern.permute.xlu0 0
      %4949 = vperm.xlu0 %4948, %v4940
      %v4950 = vpop.permute.xlu0 %4949
      %4952 = vset.pattern.permute.xlu0 0
      %4953 = vperm.xlu0 %4952, %v4941
      %v4954 = vpop.permute.xlu0 %4953
      %4956 = vset.pattern.permute.xlu0 0
      %4957 = vperm.xlu0 %4956, %v4942
      %v4958 = vpop.permute.xlu0 %4957
      %v4959 = vrot.slane %v4946, 1
      %v4960 = vrot.slane %v4946, 2
      %v4961 = vrot.slane %v4946, 3
      %v4962 = vrot.slane %v4946, 4
      %v4963 = vrot.slane %v4946, 5
      %v4964 = vrot.slane %v4946, 6
      %v4965 = vrot.slane %v4946, 7
      %v4966 = vrot.slane %v4950, 1
      %v4967 = vrot.slane %v4950, 2
      %v4968 = vrot.slane %v4950, 3
      %v4969 = vrot.slane %v4950, 4
      %v4970 = vrot.slane %v4950, 5
      %v4971 = vrot.slane %v4950, 6
      %v4972 = vrot.slane %v4950, 7
      %v4973 = vrot.slane %v4954, 1
      %v4974 = vrot.slane %v4954, 2
      %v4975 = vrot.slane %v4954, 3
      %v4976 = vrot.slane %v4954, 4
      %v4977 = vrot.slane %v4954, 5
      %v4978 = vrot.slane %v4954, 6
      %v4979 = vrot.slane %v4954, 7
      %v4980 = vrot.slane %v4958, 1
      %v4981 = vrot.slane %v4958, 2
      %v4982 = vrot.slane %v4958, 3
      %v4983 = vrot.slane %v4958, 4
      %v4984 = vrot.slane %v4958, 5
      %v4985 = vrot.slane %v4958, 6
      %v4986 = vrot.slane %v4958, 7
      %v5019 = vmul.f32 %v4721, %v4946
      %v5020 = vmul.f32 %v4728, %v4959
      %v5021 = vmul.f32 %v4735, %v4960
      %v5022 = vmul.f32 %v4742, %v4961
      %v5023 = vmul.f32 %v4749, %v4962
      %v5024 = vmul.f32 %v4756, %v4963
      %v5025 = vmul.f32 %v4763, %v4964
      %v5026 = vmul.f32 %v4770, %v4965
      %v5027 = vmul.f32 %v4777, %v4950
      %v5028 = vmul.f32 %v4784, %v4966
      %v5029 = vmul.f32 %v4791, %v4967
      %v5030 = vmul.f32 %v4798, %v4968
      %v5031 = vmul.f32 %v4805, %v4969
      %v5032 = vmul.f32 %v4812, %v4970
      %v5033 = vmul.f32 %v4819, %v4971
      %v5034 = vmul.f32 %v4826, %v4972
      %v5035 = vmul.f32 %v4833, %v4954
      %v5036 = vmul.f32 %v4840, %v4973
      %v5037 = vmul.f32 %v4847, %v4974
      %v5038 = vmul.f32 %v4854, %v4975
      %v5039 = vmul.f32 %v4861, %v4976
      %v5040 = vmul.f32 %v4868, %v4977
      %v5041 = vmul.f32 %v4875, %v4978
      %v5042 = vmul.f32 %v4882, %v4979
      %v5043 = vmul.f32 %v4889, %v4958
      %v5044 = vmul.f32 %v4896, %v4980
      %v5045 = vmul.f32 %v4903, %v4981
      %v5046 = vmul.f32 %v4910, %v4982
      %v5047 = vmul.f32 %v4917, %v4983
      %v5048 = vmul.f32 %v4924, %v4984
      %v5049 = vmul.f32 %v4931, %v4985
      %v5050 = vmul.f32 %v4938, %v4986
      %v5051 = vld [vmem:[%s21] sm:$0xff]
      %v5052 = vld [vmem:[%s21 + $0x8] sm:$0xff]
      %v5053 = vld [vmem:[%s21 + $0x10] sm:$0xff]
      %v5054 = vld [vmem:[%s21 + $0x18] sm:$0xff]
      %v5055 = vld [vmem:[%s22] sm:$0xff]
      %v5056 = vld [vmem:[%s22 + $0x8] sm:$0xff]
      %v5057 = vld [vmem:[%s22 + $0x10] sm:$0xff]
      %v5058 = vld [vmem:[%s22 + $0x18] sm:$0xff]
      %v5091 = vrot.slane %v3928, 7
      %vm5092 = vcmask 1041409
      %v5093 = vsel %vm5092, %v5091, %v3927
      %v5094 = vrot.slane %v3929, 6
      %vm5095 = vcmask 1042434
      %v5096 = vsel %vm5095, %v5094, %v5093
      %v5097 = vrot.slane %v3930, 5
      %vm5098 = vcmask 1043459
      %v5099 = vsel %vm5098, %v5097, %v5096
      %v5100 = vrot.slane %v3931, 4
      %vm5101 = vcmask 1044484
      %v5102 = vsel %vm5101, %v5100, %v5099
      %v5103 = vrot.slane %v3932, 3
      %vm5104 = vcmask 1045509
      %v5105 = vsel %vm5104, %v5103, %v5102
      %v5106 = vrot.slane %v3933, 2
      %vm5107 = vcmask 1046534
      %v5108 = vsel %vm5107, %v5106, %v5105
      %v5109 = vrot.slane %v3934, 1
      %vm5110 = vcmask 1047559
      %v5111 = vsel %vm5110, %v5109, %v5108
      %v5112 = vrot.slane %v3936, 7
      %v5113 = vsel %vm5092, %v5112, %v3935
      %v5114 = vrot.slane %v3937, 6
      %v5115 = vsel %vm5095, %v5114, %v5113
      %v5116 = vrot.slane %v3938, 5
      %v5117 = vsel %vm5098, %v5116, %v5115
      %v5118 = vrot.slane %v3939, 4
      %v5119 = vsel %vm5101, %v5118, %v5117
      %v5120 = vrot.slane %v3940, 3
      %v5121 = vsel %vm5104, %v5120, %v5119
      %v5122 = vrot.slane %v3941, 2
      %v5123 = vsel %vm5107, %v5122, %v5121
      %v5124 = vrot.slane %v3942, 1
      %v5125 = vsel %vm5110, %v5124, %v5123
      %v5126 = vrot.slane %v3944, 7
      %v5127 = vsel %vm5092, %v5126, %v3943
      %v5128 = vrot.slane %v3945, 6
      %v5129 = vsel %vm5095, %v5128, %v5127
      %v5130 = vrot.slane %v3946, 5
      %v5131 = vsel %vm5098, %v5130, %v5129
      %v5132 = vrot.slane %v3947, 4
      %v5133 = vsel %vm5101, %v5132, %v5131
      %v5134 = vrot.slane %v3948, 3
      %v5135 = vsel %vm5104, %v5134, %v5133
      %v5136 = vrot.slane %v3949, 2
      %v5137 = vsel %vm5107, %v5136, %v5135
      %v5138 = vrot.slane %v3950, 1
      %v5139 = vsel %vm5110, %v5138, %v5137
      %v5140 = vrot.slane %v3952, 7
      %v5141 = vsel %vm5092, %v5140, %v3951
      %v5142 = vrot.slane %v3953, 6
      %v5143 = vsel %vm5095, %v5142, %v5141
      %v5144 = vrot.slane %v3954, 5
      %v5145 = vsel %vm5098, %v5144, %v5143
      %v5146 = vrot.slane %v3955, 4
      %v5147 = vsel %vm5101, %v5146, %v5145
      %v5148 = vrot.slane %v3956, 3
      %v5149 = vsel %vm5104, %v5148, %v5147
      %v5150 = vrot.slane %v3957, 2
      %v5151 = vsel %vm5107, %v5150, %v5149
      %v5152 = vrot.slane %v3958, 1
      %v5153 = vsel %vm5110, %v5152, %v5151
      %v5154 = vsel %vm1324, %v5111, 0
      %v5156 = vsel %vm1324, %v5125, 0
      %v5158 = vsel %vm1324, %v5139, 0
      %v5160 = vsel %vm1324, %v5153, 0
      %5162 = vmatpush.msra.mxu0 0.0
      %5163 = vmatpush.msra.mxu0 0.0
      %5164 = vmatpush.msra.mxu0 0.0
      %5165 = vmatpush.msra.mxu0 0.0
      %5166 = vmatpush.msra.mxu0 0.0
      %5167 = vmatpush.msra.mxu0 0.0
      %5168 = vmatpush.msra.mxu0 0.0
      %5169 = vmatpush.msra.mxu0 0.0
      %5170 = vmatpush.msra.mxu0 0.0
      %5171 = vmatpush.msra.mxu0 0.0
      %5172 = vmatpush.msra.mxu0 0.0
      %5173 = vmatpush.msra.mxu0 0.0
      %5174 = vmatpush.msra.mxu0 %v5058
      %5175 = vmatpush.msra.mxu0 %v5057
      %5176 = vmatpush.msra.mxu0 %v5056
      %5177 = vmatpush.msra.mxu0 %v5055
      %5178 = vmatmul.f32.gmra.mxu0 %v5154
      %v5179 = vpop.f32.mrf.mxu0
      %v5180 = vadd.f32 0.0, %v5179
      %5181 = vmatmul.f32.gmra.mxu0 %v5156
      %v5182 = vpop.f32.mrf.mxu0
      %v5183 = vadd.f32 0.0, %v5182
      %5184 = vmatmul.f32.gmra.mxu0 %v5158
      %v5185 = vpop.f32.mrf.mxu0
      %v5186 = vadd.f32 0.0, %v5185
      %5187 = vmatmul.f32.gmra.mxu0 %v5160
      %v5188 = vpop.f32.mrf.mxu0
      %v5189 = vadd.f32 0.0, %v5188
      %5190 = vdwg.mxu0
      %v5223 = vrot.slane %v2063, 7
      %v5224 = vsel %vm5092, %v5223, %v2062
      %v5225 = vrot.slane %v2064, 6
      %v5226 = vsel %vm5095, %v5225, %v5224
      %v5227 = vrot.slane %v2065, 5
      %v5228 = vsel %vm5098, %v5227, %v5226
      %v5229 = vrot.slane %v2066, 4
      %v5230 = vsel %vm5101, %v5229, %v5228
      %v5231 = vrot.slane %v2067, 3
      %v5232 = vsel %vm5104, %v5231, %v5230
      %v5233 = vrot.slane %v2068, 2
      %v5234 = vsel %vm5107, %v5233, %v5232
      %v5235 = vrot.slane %v2069, 1
      %v5236 = vsel %vm5110, %v5235, %v5234
      %v5237 = vrot.slane %v2071, 7
      %v5238 = vsel %vm5092, %v5237, %v2070
      %v5239 = vrot.slane %v2072, 6
      %v5240 = vsel %vm5095, %v5239, %v5238
      %v5241 = vrot.slane %v2073, 5
      %v5242 = vsel %vm5098, %v5241, %v5240
      %v5243 = vrot.slane %v2074, 4
      %v5244 = vsel %vm5101, %v5243, %v5242
      %v5245 = vrot.slane %v2075, 3
      %v5246 = vsel %vm5104, %v5245, %v5244
      %v5247 = vrot.slane %v2076, 2
      %v5248 = vsel %vm5107, %v5247, %v5246
      %v5249 = vrot.slane %v2077, 1
      %v5250 = vsel %vm5110, %v5249, %v5248
      %v5251 = vrot.slane %v2079, 7
      %v5252 = vsel %vm5092, %v5251, %v2078
      %v5253 = vrot.slane %v2080, 6
      %v5254 = vsel %vm5095, %v5253, %v5252
      %v5255 = vrot.slane %v2081, 5
      %v5256 = vsel %vm5098, %v5255, %v5254
      %v5257 = vrot.slane %v2082, 4
      %v5258 = vsel %vm5101, %v5257, %v5256
      %v5259 = vrot.slane %v2083, 3
      %v5260 = vsel %vm5104, %v5259, %v5258
      %v5261 = vrot.slane %v2084, 2
      %v5262 = vsel %vm5107, %v5261, %v5260
      %v5263 = vrot.slane %v2085, 1
      %v5264 = vsel %vm5110, %v5263, %v5262
      %v5265 = vrot.slane %v2087, 7
      %v5266 = vsel %vm5092, %v5265, %v2086
      %v5267 = vrot.slane %v2088, 6
      %v5268 = vsel %vm5095, %v5267, %v5266
      %v5269 = vrot.slane %v2089, 5
      %v5270 = vsel %vm5098, %v5269, %v5268
      %v5271 = vrot.slane %v2090, 4
      %v5272 = vsel %vm5101, %v5271, %v5270
      %v5273 = vrot.slane %v2091, 3
      %v5274 = vsel %vm5104, %v5273, %v5272
      %v5275 = vrot.slane %v2092, 2
      %v5276 = vsel %vm5107, %v5275, %v5274
      %v5277 = vrot.slane %v2093, 1
      %v5278 = vsel %vm5110, %v5277, %v5276
      %v5279 = vsel %vm1324, %v5236, 0
      %v5281 = vsel %vm1324, %v5250, 0
      %v5283 = vsel %vm1324, %v5264, 0
      %v5285 = vsel %vm1324, %v5278, 0
      %5287 = vmatpush.msra.mxu0 0.0
      %5288 = vmatpush.msra.mxu0 0.0
      %5289 = vmatpush.msra.mxu0 0.0
      %5290 = vmatpush.msra.mxu0 0.0
      %5291 = vmatpush.msra.mxu0 0.0
      %5292 = vmatpush.msra.mxu0 0.0
      %5293 = vmatpush.msra.mxu0 0.0
      %5294 = vmatpush.msra.mxu0 0.0
      %5295 = vmatpush.msra.mxu0 0.0
      %5296 = vmatpush.msra.mxu0 0.0
      %5297 = vmatpush.msra.mxu0 0.0
      %5298 = vmatpush.msra.mxu0 0.0
      %5299 = vmatpush.msra.mxu0 %v5054
      %5300 = vmatpush.msra.mxu0 %v5053
      %5301 = vmatpush.msra.mxu0 %v5052
      %5302 = vmatpush.msra.mxu0 %v5051
      %5303 = vmatmul.f32.gmra.mxu0 %v5279
      %v5304 = vpop.f32.mrf.mxu0
      %v5305 = vadd.f32 %v5180, %v5304
      %5306 = vmatmul.f32.gmra.mxu0 %v5281
      %v5307 = vpop.f32.mrf.mxu0
      %v5308 = vadd.f32 %v5183, %v5307
      %5309 = vmatmul.f32.gmra.mxu0 %v5283
      %v5310 = vpop.f32.mrf.mxu0
      %v5311 = vadd.f32 %v5186, %v5310
      %5312 = vmatmul.f32.gmra.mxu0 %v5285
      %v5313 = vpop.f32.mrf.mxu0
      %v5314 = vadd.f32 %v5189, %v5313
      %5315 = vdwg.mxu0
      %v5316 = vld [vmem:[%s23] sm:$0xff]
      %v5317 = vld [vmem:[%s23 + $0x8] sm:$0xff]
      %v5318 = vld [vmem:[%s23 + $0x10] sm:$0xff]
      %v5319 = vld [vmem:[%s23 + $0x18] sm:$0xff]
      %v5352 = vrot.slane %v5020, 7
      %v5353 = vsel %vm5092, %v5352, %v5019
      %v5354 = vrot.slane %v5021, 6
      %v5355 = vsel %vm5095, %v5354, %v5353
      %v5356 = vrot.slane %v5022, 5
      %v5357 = vsel %vm5098, %v5356, %v5355
      %v5358 = vrot.slane %v5023, 4
      %v5359 = vsel %vm5101, %v5358, %v5357
      %v5360 = vrot.slane %v5024, 3
      %v5361 = vsel %vm5104, %v5360, %v5359
      %v5362 = vrot.slane %v5025, 2
      %v5363 = vsel %vm5107, %v5362, %v5361
      %v5364 = vrot.slane %v5026, 1
      %v5365 = vsel %vm5110, %v5364, %v5363
      %v5366 = vrot.slane %v5028, 7
      %v5367 = vsel %vm5092, %v5366, %v5027
      %v5368 = vrot.slane %v5029, 6
      %v5369 = vsel %vm5095, %v5368, %v5367
      %v5370 = vrot.slane %v5030, 5
      %v5371 = vsel %vm5098, %v5370, %v5369
      %v5372 = vrot.slane %v5031, 4
      %v5373 = vsel %vm5101, %v5372, %v5371
      %v5374 = vrot.slane %v5032, 3
      %v5375 = vsel %vm5104, %v5374, %v5373
      %v5376 = vrot.slane %v5033, 2
      %v5377 = vsel %vm5107, %v5376, %v5375
      %v5378 = vrot.slane %v5034, 1
      %v5379 = vsel %vm5110, %v5378, %v5377
      %v5380 = vrot.slane %v5036, 7
      %v5381 = vsel %vm5092, %v5380, %v5035
      %v5382 = vrot.slane %v5037, 6
      %v5383 = vsel %vm5095, %v5382, %v5381
      %v5384 = vrot.slane %v5038, 5
      %v5385 = vsel %vm5098, %v5384, %v5383
      %v5386 = vrot.slane %v5039, 4
      %v5387 = vsel %vm5101, %v5386, %v5385
      %v5388 = vrot.slane %v5040, 3
      %v5389 = vsel %vm5104, %v5388, %v5387
      %v5390 = vrot.slane %v5041, 2
      %v5391 = vsel %vm5107, %v5390, %v5389
      %v5392 = vrot.slane %v5042, 1
      %v5393 = vsel %vm5110, %v5392, %v5391
      %v5394 = vrot.slane %v5044, 7
      %v5395 = vsel %vm5092, %v5394, %v5043
      %v5396 = vrot.slane %v5045, 6
      %v5397 = vsel %vm5095, %v5396, %v5395
      %v5398 = vrot.slane %v5046, 5
      %v5399 = vsel %vm5098, %v5398, %v5397
      %v5400 = vrot.slane %v5047, 4
      %v5401 = vsel %vm5101, %v5400, %v5399
      %v5402 = vrot.slane %v5048, 3
      %v5403 = vsel %vm5104, %v5402, %v5401
      %v5404 = vrot.slane %v5049, 2
      %v5405 = vsel %vm5107, %v5404, %v5403
      %v5406 = vrot.slane %v5050, 1
      %v5407 = vsel %vm5110, %v5406, %v5405
      %v5408 = vsel %vm1324, %v5365, 0
      %v5410 = vsel %vm1324, %v5379, 0
      %v5412 = vsel %vm1324, %v5393, 0
      %v5414 = vsel %vm1324, %v5407, 0
      %5416 = vmatpush.msra.mxu0 0.0
      %5417 = vmatpush.msra.mxu0 0.0
      %5418 = vmatpush.msra.mxu0 0.0
      %5419 = vmatpush.msra.mxu0 0.0
      %5420 = vmatpush.msra.mxu0 0.0
      %5421 = vmatpush.msra.mxu0 0.0
      %5422 = vmatpush.msra.mxu0 0.0
      %5423 = vmatpush.msra.mxu0 0.0
      %5424 = vmatpush.msra.mxu0 0.0
      %5425 = vmatpush.msra.mxu0 0.0
      %5426 = vmatpush.msra.mxu0 0.0
      %5427 = vmatpush.msra.mxu0 0.0
      %5428 = vmatpush.msra.mxu0 %v5319
      %5429 = vmatpush.msra.mxu0 %v5318
      %5430 = vmatpush.msra.mxu0 %v5317
      %5431 = vmatpush.msra.mxu0 %v5316
      %5432 = vmatmul.f32.gmra.mxu0 %v5408
      %v5433 = vpop.f32.mrf.mxu0
      %v5434 = vadd.f32 0.0, %v5433
      %5435 = vmatmul.f32.gmra.mxu0 %v5410
      %v5436 = vpop.f32.mrf.mxu0
      %v5437 = vadd.f32 0.0, %v5436
      %5438 = vmatmul.f32.gmra.mxu0 %v5412
      %v5439 = vpop.f32.mrf.mxu0
      %v5440 = vadd.f32 0.0, %v5439
      %5441 = vmatmul.f32.gmra.mxu0 %v5414
      %v5442 = vpop.f32.mrf.mxu0
      %v5443 = vadd.f32 0.0, %v5442
      %5444 = vdwg.mxu0
      %v5445 = vadd.f32 %v5305, %v5434
      %v5446 = vadd.f32 %v5308, %v5437
      %v5447 = vadd.f32 %v5311, %v5440
      %v5448 = vadd.f32 %v5314, %v5443
      %v5449 = vld [vmem:[%s24] sm:$0x1]
      %v5451 = vperm.slane %v5449, 0
      %v5453 = vadd.f32 %v5445, %v5451
      %v5454 = vadd.f32 %v5446, %v5451
      %v5455 = vadd.f32 %v5447, %v5451
      %v5456 = vadd.f32 %v5448, %v5451
      %v5457 = vmax.f32 %v5453, 0.0
      %v5458 = vmax.f32 %v5454, 0.0
      %v5459 = vmax.f32 %v5455, 0.0
      %v5460 = vmax.f32 %v5456, 0.0
      %v5461 = vld [vmem:[%s25] sm:$0x1]
      %v5463 = vperm.slane %v5461, 0
      %v5465 = vmul.f32 %v5457, %v5463
      %v5466 = vmul.f32 %v5458, %v5463
      %v5467 = vmul.f32 %v5459, %v5463
      %v5468 = vmul.f32 %v5460, %v5463
      %v5469 = vsel %vm1324, %v5465, 0.0
      %5470 = vadd.xlane.f32.xlu0 %v5469
      %v5471 = vpop.xlane.xlu0 %5470
      %v5472 = vsel %vm1324, %v5466, 0.0
      %5473 = vadd.xlane.f32.xlu0 %v5472
      %v5474 = vpop.xlane.xlu0 %5473
      %v5475 = vsel %vm1324, %v5467, 0.0
      %5476 = vadd.xlane.f32.xlu0 %v5475
      %v5477 = vpop.xlane.xlu0 %5476
      %v5478 = vsel %vm1324, %v5468, 0.0
      %5479 = vadd.xlane.f32.xlu0 %v5478
      %v5480 = vpop.xlane.xlu0 %5479
      %v5481 = vld [vmem:[#allocation2] sm:$0x1]
      %v5483 = vperm.slane %v5481, 0
      %v5485 = vadd.f32 %v5471, %v5483
      %v5486 = vadd.f32 %v5474, %v5483
      %v5487 = vadd.f32 %v5477, %v5483
      %v5488 = vadd.f32 %v5480, %v5483
      %v5489 = vxor.u32 %v5485, 2147483648
      %v5490 = vxor.u32 %v5486, 2147483648
      %v5491 = vxor.u32 %v5487, 2147483648
      %v5492 = vxor.u32 %v5488, 2147483648
      %v5493 = vmul.f32 %v5489, 1.442695
      %v5494 = vpow.pop %v5493
      %v5495 = vmul.f32 %v5490, 1.442695
      %v5496 = vpow.pop %v5495
      %v5497 = vmul.f32 %v5491, 1.442695
      %v5498 = vpow.pop %v5497
      %v5499 = vmul.f32 %v5492, 1.442695
      %v5500 = vpow.pop %v5499
      %v5501 = vadd.f32 %v5494, 1.0
      %v5502 = vadd.f32 %v5496, 1.0
      %v5503 = vadd.f32 %v5498, 1.0
      %v5504 = vadd.f32 %v5500, 1.0
      %v5505 = vrcp.pop %v5501
      %v5506 = vmul.f32 %v5501, %v5505
      %v5507 = vsub.f32 1.0, %v5506
      %v5508 = vmul.f32 %v5505, %v5507
      %v5509 = vadd.f32 %v5505, %v5508
      %vm5510 = vweird.f32 %v5501
      %vm5511 = vweird.f32 %v5505
      %vm5512 = vmor %vm5510, %vm5511
      %v5513 = vsel %vm5512, %v5505, %v5509
      %v5514 = vand.u32 2147483647, %v5501
      %vm5515 = vcmp.eq.f32.partialorder %v5514, 8.507059e+37
      %v5516 = vand.u32 %v5501, 2147483648
      %v5517 = vor.u32 1.1754944e-38, %v5516
      %v5518 = vsel %vm5515, %v5517, %v5513
      %v5519 = vmul.f32 1.0, %v5518
      %v5520 = vrcp.pop %v5502
      %v5521 = vmul.f32 %v5502, %v5520
      %v5522 = vsub.f32 1.0, %v5521
      %v5523 = vmul.f32 %v5520, %v5522
      %v5524 = vadd.f32 %v5520, %v5523
      %vm5525 = vweird.f32 %v5502
      %vm5526 = vweird.f32 %v5520
      %vm5527 = vmor %vm5525, %vm5526
      %v5528 = vsel %vm5527, %v5520, %v5524
      %v5529 = vand.u32 2147483647, %v5502
      %vm5530 = vcmp.eq.f32.partialorder %v5529, 8.507059e+37
      %v5531 = vand.u32 %v5502, 2147483648
      %v5532 = vor.u32 1.1754944e-38, %v5531
      %v5533 = vsel %vm5530, %v5532, %v5528
      %v5534 = vmul.f32 1.0, %v5533
      %v5535 = vrcp.pop %v5503
      %v5536 = vmul.f32 %v5503, %v5535
      %v5537 = vsub.f32 1.0, %v5536
      %v5538 = vmul.f32 %v5535, %v5537
      %v5539 = vadd.f32 %v5535, %v5538
      %vm5540 = vweird.f32 %v5503
      %vm5541 = vweird.f32 %v5535
      %vm5542 = vmor %vm5540, %vm5541
      %v5543 = vsel %vm5542, %v5535, %v5539
      %v5544 = vand.u32 2147483647, %v5503
      %vm5545 = vcmp.eq.f32.partialorder %v5544, 8.507059e+37
      %v5546 = vand.u32 %v5503, 2147483648
      %v5547 = vor.u32 1.1754944e-38, %v5546
      %v5548 = vsel %vm5545, %v5547, %v5543
      %v5549 = vmul.f32 1.0, %v5548
      %v5550 = vrcp.pop %v5504
      %v5551 = vmul.f32 %v5504, %v5550
      %v5552 = vsub.f32 1.0, %v5551
      %v5553 = vmul.f32 %v5550, %v5552
      %v5554 = vadd.f32 %v5550, %v5553
      %vm5555 = vweird.f32 %v5504
      %vm5556 = vweird.f32 %v5550
      %vm5557 = vmor %vm5555, %vm5556
      %v5558 = vsel %vm5557, %v5550, %v5554
      %v5559 = vand.u32 2147483647, %v5504
      %vm5560 = vcmp.eq.f32.partialorder %v5559, 8.507059e+37
      %v5561 = vand.u32 %v5504, 2147483648
      %v5562 = vor.u32 1.1754944e-38, %v5561
      %v5563 = vsel %vm5560, %v5562, %v5558
      %v5564 = vmul.f32 1.0, %v5563
      %5566 = vset.pattern.permute.xlu0 0
      %5567 = vperm.xlu0 %5566, %v5519
      %v5568 = vpop.permute.xlu0 %5567
      %5571 = vset.pattern.permute.xlu0 0
      %5572 = vperm.xlu0 %5571, %v5534
      %v5573 = vpop.permute.xlu0 %5572
      %5576 = vset.pattern.permute.xlu0 0
      %5577 = vperm.xlu0 %5576, %v5549
      %v5578 = vpop.permute.xlu0 %5577
      %5581 = vset.pattern.permute.xlu0 0
      %5582 = vperm.xlu0 %5581, %v5564
      %v5583 = vpop.permute.xlu0 %5582
      %5585 = vst [vmem:[%s998] sm:$0xff] %v5568
      %5586 = vst [vmem:[%s998 + $0x8] sm:$0xff] %v5573
      %5587 = vst [vmem:[%s998 + $0x10] sm:$0xff] %v5578
      %5588 = vst [vmem:[%s998 + $0x18] sm:$0xff] %v5583
      %s5589 = smul.u32 4, %s40
      %p5590 = scmp.lt.s32.totalorder %s5589, 7
      %s5591 = scalar_select %p5590, %s5589, 7
      %s5592 = smul.addr %s5591, 8
      %s5593 = scalar_lea.vmem %s27, %s5592
      // Predicated region
      $region129: #{set_conv_forward.1} parent=127 // pred_check
        %p5594 = pneg %p670
      $region130: #{set_conv_forward.1} parent=127 // pred_check_branch
        %5596 = sbr.rel (%p5594) target = $region132
      $region131: #{set_conv_forward.1} parent=127 // pred_region
        %s5597 = smul.u32 4, %s40
      $region132: #{set_conv_forward.1} parent=127 // pred_fallthru
        _
    $region128: #{set_conv_forward.1} parent=5 // pred_fallthru
      _
    %p5598 = scmp.le.s32.totalorder 2, %s35
    // Predicated region
    $region133: #{set_conv_forward.1} parent=5 // pred_check
      %p5599 = pneg %p5598
    $region134: #{set_conv_forward.1} parent=5 // pred_check_branch
      %5601 = sbr.rel (%p5599) target = $region136
    $region135: #{set_conv_forward.1} parent=5 // pred_region
      %s5602 = ssub.s32 %s35, 2
      // Predicated region
      $region137: #{set_conv_forward.1} parent=135 // pred_check
        %p5603 = pneg %p676
      $region138: #{set_conv_forward.1} parent=135 // pred_check_branch
        %5605 = sbr.rel (%p5603) target = $region140
      $region139: #{set_conv_forward.1} parent=135 // pred_region
        %s5606 = smul.u32 4, %s41
        %p5607 = scmp.lt.s32.totalorder %s5606, 7
        %s5608 = scalar_select %p5607, %s5606, 7
        %s5609 = smul.addr %s5608, 8
        %s5610 = scalar_lea.vmem %s27, %s5609
      $region140: #{set_conv_forward.1} parent=135 // pred_fallthru
        _
    $region136: #{set_conv_forward.1} parent=5 // pred_fallthru
      _
  $region6: #{set_conv_forward.1} parent=0 // loop_footer
    %s39 = sadd.s32 1, %s35
  $region7: #{set_conv_forward.1} parent=0 // loop_footer_branch
    %34 = sbr.rel target = $region3
  $region8: #{set_conv_forward.1} parent=0 // loop_exit
    _

</llo_original>
